<compile_context>
chip_gen: v6e
topology: v6e:2x2x1
jax: 0.10.0
libtpu: 0.0.40
codegen_flags: <defaults>
</compile_context>

<pallas_src>
import functools
import math

import jax
import jax.numpy as jnp
from jax.experimental import pallas as pl
from jax.experimental.pallas import tpu as pltpu

LN_EPS = 1e-5
_VMEM_LIMIT = 32 * 1024 * 1024  # safe on v5e/v6e (128 MiB phys) and v7x (64 MiB)


# ---------------------------------------------------------------------------
# Fused transformer-block kernel (one grid step = one batch element)
# ---------------------------------------------------------------------------
def _layernorm_f32(x, g, b):
    mean = jnp.mean(x, axis=-1, keepdims=True)
    xc = x - mean
    var = jnp.mean(xc * xc, axis=-1, keepdims=True)
    return xc * jax.lax.rsqrt(var + LN_EPS) * g + b


def _gelu_tanh(x):
    c = 0.7978845608028654  # sqrt(2/pi)
    return 0.5 * x * (1.0 + jnp.tanh(c * (x + 0.044715 * x * x * x)))


def _block_kernel(x_ref, ln1_g_ref, ln1_b_ref, ln2_g_ref, ln2_b_ref,
                  w_qkv_ref, w_proj_ref, b_proj_ref,
                  w_fc1_ref, b_fc1_ref, w_fc2_ref, b_fc2_ref,
                  o_ref, *, num_heads, head_dim):
    f32 = jnp.float32
    bf16 = jnp.bfloat16

    x = x_ref[...].astype(f32)                                  # (S, D)
    S, D = x.shape

    # ---- attention branch: LN1 fused into QKV projection (no bias) ----
    ln1 = _layernorm_f32(x, ln1_g_ref[...], ln1_b_ref[...])     # (S, D) f32
    qkv = jnp.dot(ln1.astype(bf16), w_qkv_ref[...],
                  preferred_element_type=f32)                   # (S, 3D) f32

    scale = 1.0 / math.sqrt(head_dim)
    head_outs = []
    for h in range(num_heads):                                  # static unroll
        o = h * head_dim
        q = (qkv[:, o:o + head_dim] * scale).astype(bf16)       # (S, hd)
        k = qkv[:, D + o:D + o + head_dim].astype(bf16)         # (S, hd)
        v = qkv[:, 2 * D + o:2 * D + o + head_dim].astype(bf16)  # (S, hd)
        # scores = q @ k^T  (contract last dims; MXU handles the transpose)
        s = jax.lax.dot_general(q, k, (((1,), (1,)), ((), ())),
                                preferred_element_type=f32)     # (S, S)
        s = s - jnp.max(s, axis=-1, keepdims=True)
        p = jnp.exp(s)
        p = p * pl.reciprocal(jnp.sum(p, axis=-1, keepdims=True), approx=True)
        head_outs.append(jnp.dot(p.astype(bf16), v,
                                 preferred_element_type=f32))   # (S, hd)
    attn = jnp.concatenate(head_outs, axis=-1)                  # (S, D) f32

    # proj + residual:  y = x + attn @ w_proj + b_proj
    y = x + jnp.dot(attn.astype(bf16), w_proj_ref[...],
                    preferred_element_type=f32) + b_proj_ref[...]

    # ---- MLP branch: LN2 -> fc1 -> GELU -> fc2 -> residual ----
    ln2 = _layernorm_f32(y, ln2_g_ref[...], ln2_b_ref[...])
    h1 = jnp.dot(ln2.astype(bf16), w_fc1_ref[...],
                 preferred_element_type=f32) + b_fc1_ref[...]   # (S, mlp)
    h1 = _gelu_tanh(h1)
    out = y + jnp.dot(h1.astype(bf16), w_fc2_ref[...],
                      preferred_element_type=f32) + b_fc2_ref[...]
    o_ref[...] = out.astype(o_ref.dtype)


# ---------------------------------------------------------------------------
# Wrapper
# ---------------------------------------------------------------------------
@functools.partial(jax.jit, static_argnames=("num_heads",))
def transformer_block(x, params, num_heads):
    B, S, D = x.shape
    hd = D // num_heads
    mlp = params["w_fc1"].shape[1]

    kernel = functools.partial(_block_kernel, num_heads=num_heads, head_dim=hd)

    flops = (2 * B * S * D * (3 * D)        # qkv
             + 4 * B * S * S * D            # qk^T and p@v over all heads
             + 2 * B * S * D * D            # proj
             + 4 * B * S * D * mlp)         # fc1 + fc2
    bytes_accessed = (2 * B * S * D * 4                              # x in, out
                      + (D * 3 * D + D * D + D * mlp + mlp * D) * 2  # bf16 weights
                      + (6 * D + mlp) * 4)                           # ln/bias vecs

    return pl.pallas_call(
        kernel,
        out_shape=jax.ShapeDtypeStruct((B, S, D), jnp.float32),
        grid=(B,),
        in_specs=[
            pl.BlockSpec((None, S, D), lambda b: (b, 0, 0)),      # x
            pl.BlockSpec((1, D), lambda b: (0, 0)),               # ln1_g
            pl.BlockSpec((1, D), lambda b: (0, 0)),               # ln1_b
            pl.BlockSpec((1, D), lambda b: (0, 0)),               # ln2_g
            pl.BlockSpec((1, D), lambda b: (0, 0)),               # ln2_b
            pl.BlockSpec((D, 3 * D), lambda b: (0, 0)),           # w_qkv (bf16)
            pl.BlockSpec((D, D), lambda b: (0, 0)),               # w_proj (bf16)
            pl.BlockSpec((1, D), lambda b: (0, 0)),               # b_proj
            pl.BlockSpec((D, mlp), lambda b: (0, 0)),             # w_fc1 (bf16)
            pl.BlockSpec((1, mlp), lambda b: (0, 0)),             # b_fc1
            pl.BlockSpec((mlp, D), lambda b: (0, 0)),             # w_fc2 (bf16)
            pl.BlockSpec((1, D), lambda b: (0, 0)),               # b_fc2
        ],
        out_specs=pl.BlockSpec((None, S, D), lambda b: (b, 0, 0)),
        compiler_params=pltpu.CompilerParams(
            dimension_semantics=("parallel",),
            vmem_limit_bytes=_VMEM_LIMIT,
        ),
        cost_estimate=pl.CostEstimate(
            flops=flops,
            transcendentals=B * num_heads * S * S + B * S * mlp,
            bytes_accessed=bytes_accessed,
        ),
    )(x,
      params["ln1_g"].reshape(1, D), params["ln1_b"].reshape(1, D),
      params["ln2_g"].reshape(1, D), params["ln2_b"].reshape(1, D),
      params["w_qkv"], params["w_proj"], params["b_proj"].reshape(1, D),
      params["w_fc1"], params["b_fc1"].reshape(1, mlp),
      params["w_fc2"], params["b_fc2"].reshape(1, D))


# ---------------------------------------------------------------------------
# Parameters (deterministic, in-script; PyTorch nn.Linear-style init).
# Weight matrices are stored persistently in bf16 (MXU input dtype).
# ---------------------------------------------------------------------------
def _linear(key, fan_in, fan_out, bias=True):
    k1, k2 = jax.random.split(key)
    bound = 1.0 / math.sqrt(fan_in)
    w = jax.random.uniform(k1, (fan_in, fan_out), jnp.float32, -bound, bound)
    b = (jax.random.uniform(k2, (fan_out,), jnp.float32, -bound, bound)
         if bias else None)
    return w, b


def init_params(key, embed_dim, mlp_dim):
    ks = jax.random.split(key, 4)
    w_qkv, _ = _linear(ks[0], embed_dim, 3 * embed_dim, bias=False)
    w_proj, b_proj = _linear(ks[1], embed_dim, embed_dim)
    w_fc1, b_fc1 = _linear(ks[2], embed_dim, mlp_dim)
    w_fc2, b_fc2 = _linear(ks[3], mlp_dim, embed_dim)
    return {
        "ln1_g": jnp.ones((embed_dim,), jnp.float32),
        "ln1_b": jnp.zeros((embed_dim,), jnp.float32),
        "ln2_g": jnp.ones((embed_dim,), jnp.float32),
        "ln2_b": jnp.zeros((embed_dim,), jnp.float32),
        "w_qkv": w_qkv.astype(jnp.bfloat16),
        "w_proj": w_proj.astype(jnp.bfloat16), "b_proj": b_proj,
        "w_fc1": w_fc1.astype(jnp.bfloat16), "b_fc1": b_fc1,
        "w_fc2": w_fc2.astype(jnp.bfloat16), "b_fc2": b_fc2,
    }


# ---------------------------------------------------------------------------
# Pure-JAX reference (same bf16-quantized weights, tanh GELU) for sanity check.
# ---------------------------------------------------------------------------
def reference_forward(x, params, num_heads):
    B, S, D = x.shape
    hd = D // num_heads

    def ln(v, g, b):
        m = jnp.mean(v, -1, keepdims=True)
        var = jnp.mean((v - m) ** 2, -1, keepdims=True)
        return (v - m) / jnp.sqrt(var + LN_EPS) * g + b

    w_qkv = params["w_qkv"].astype(jnp.float32)
    w_proj = params["w_proj"].astype(jnp.float32)
    w_fc1 = params["w_fc1"].astype(jnp.float32)
    w_fc2 = params["w_fc2"].astype(jnp.float32)

    h = ln(x, params["ln1_g"], params["ln1_b"])
    qkv = (h @ w_qkv).reshape(B, S, 3, num_heads, hd)
    qkv = jnp.transpose(qkv, (2, 0, 3, 1, 4))                 # (3,B,H,S,hd)
    q, k, v = qkv[0], qkv[1], qkv[2]
    s = jnp.einsum("bhqd,bhkd->bhqk", q, k) / math.sqrt(hd)
    p = jax.nn.softmax(s, axis=-1)
    a = jnp.einsum("bhqk,bhkd->bhqd", p, v)
    a = jnp.transpose(a, (0, 2, 1, 3)).reshape(B, S, D)
    y = x + a @ w_proj + params["b_proj"]
    h2 = ln(y, params["ln2_g"], params["ln2_b"])
    m1 = jax.nn.gelu(h2 @ w_fc1 + params["b_fc1"], approximate=True)
    return y + m1 @ w_fc2 + params["b_fc2"]


if __name__ == "__main__":
    B, S = 2, 16
    embed_dim = 256
    num_heads = 4
    mlp_dim = embed_dim * 4
    assert embed_dim % num_heads == 0

    key = jax.random.PRNGKey(0)
    kx, kp = jax.random.split(key)
    x = jax.random.normal(kx, (B, S, embed_dim), jnp.float32)
    params = init_params(kp, embed_dim, mlp_dim)

    out = transformer_block(x, params, num_heads)
    out = jax.block_until_ready(out)

    assert out.shape == (B, S, embed_dim), out.shape
    assert out.dtype == jnp.float32
    assert bool(jnp.all(jnp.isfinite(out)))

    # loose sanity check vs. pure-JAX reference (bf16 MXU activations + approx
    # reciprocal are the only deviations; catches gross errors only)
    ref = reference_forward(x, params, num_heads)
    err = float(jnp.max(jnp.abs(out - ref)))
    assert err < 0.25, f"max abs err vs reference too large: {err}"

    print("KERNEL_OK")
</pallas_src>

<mosaic_0001>
module attributes {stable_mosaic.version = 11 : i64} {
  func.func @_block_kernel(%arg0: i32, %arg1: memref<1x16x256xf32, #tpu.memory_space<vmem>>, %arg2: memref<1x256xf32, #tpu.memory_space<vmem>>, %arg3: memref<1x256xf32, #tpu.memory_space<vmem>>, %arg4: memref<1x256xf32, #tpu.memory_space<vmem>>, %arg5: memref<1x256xf32, #tpu.memory_space<vmem>>, %arg6: memref<256x768xbf16, #tpu.memory_space<vmem>>, %arg7: memref<256x256xbf16, #tpu.memory_space<vmem>>, %arg8: memref<1x256xf32, #tpu.memory_space<vmem>>, %arg9: memref<256x1024xbf16, #tpu.memory_space<vmem>>, %arg10: memref<1x1024xf32, #tpu.memory_space<vmem>>, %arg11: memref<1024x256xbf16, #tpu.memory_space<vmem>>, %arg12: memref<1x256xf32, #tpu.memory_space<vmem>>, %arg13: memref<1x16x256xf32, #tpu.memory_space<vmem>>) attributes {dimension_semantics = [#tpu.dimension_semantics<parallel>], iteration_bounds = array<i64: 2>, scalar_prefetch = 0 : i64, scratch_operands = 0 : i64, tpu.core_type = #tpu.core_type<tc>, window_params = [{transform_indices = @transform_0, window_bounds = array<i64: 1, 16, 256>}, {pipeline_mode = #tpu.pipeline_mode<synchronous>, transform_indices = @transform_1, window_bounds = array<i64: 1, 256>}, {pipeline_mode = #tpu.pipeline_mode<synchronous>, transform_indices = @transform_2, window_bounds = array<i64: 1, 256>}, {pipeline_mode = #tpu.pipeline_mode<synchronous>, transform_indices = @transform_3, window_bounds = array<i64: 1, 256>}, {pipeline_mode = #tpu.pipeline_mode<synchronous>, transform_indices = @transform_4, window_bounds = array<i64: 1, 256>}, {pipeline_mode = #tpu.pipeline_mode<synchronous>, transform_indices = @transform_5, window_bounds = array<i64: 256, 768>}, {pipeline_mode = #tpu.pipeline_mode<synchronous>, transform_indices = @transform_6, window_bounds = array<i64: 256, 256>}, {pipeline_mode = #tpu.pipeline_mode<synchronous>, transform_indices = @transform_7, window_bounds = array<i64: 1, 256>}, {pipeline_mode = #tpu.pipeline_mode<synchronous>, transform_indices = @transform_8, window_bounds = array<i64: 256, 1024>}, {pipeline_mode = #tpu.pipeline_mode<synchronous>, transform_indices = @transform_9, window_bounds = array<i64: 1, 1024>}, {pipeline_mode = #tpu.pipeline_mode<synchronous>, transform_indices = @transform_10, window_bounds = array<i64: 1024, 256>}, {pipeline_mode = #tpu.pipeline_mode<synchronous>, transform_indices = @transform_11, window_bounds = array<i64: 1, 256>}, {transform_indices = @transform_12, window_bounds = array<i64: 1, 16, 256>}]} {
    %c0 = arith.constant 0 : index
    %c0_0 = arith.constant 0 : index
    %c0_1 = arith.constant 0 : index
    %0 = vector.load %arg1[%c0, %c0_0, %c0_1] : memref<1x16x256xf32, #tpu.memory_space<vmem>>, vector<1x16x256xf32>
    %1 = vector.shape_cast %0 : vector<1x16x256xf32> to vector<16x256xf32>
    %c0_2 = arith.constant 0 : index
    %c0_3 = arith.constant 0 : index
    %2 = vector.load %arg2[%c0_2, %c0_3] : memref<1x256xf32, #tpu.memory_space<vmem>>, vector<1x256xf32>
    %c0_4 = arith.constant 0 : index
    %c0_5 = arith.constant 0 : index
    %3 = vector.load %arg3[%c0_4, %c0_5] : memref<1x256xf32, #tpu.memory_space<vmem>>, vector<1x256xf32>
    %cst = arith.constant dense<0.000000e+00> : vector<16xf32>
    %4 = vector.multi_reduction <add>, %1, %cst [1] : vector<16x256xf32> to vector<16xf32>
    %5 = vector.shape_cast %4 : vector<16xf32> to vector<16x1xf32>
    %cst_6 = arith.constant 2.560000e+02 : f32
    %6 = vector.broadcast %cst_6 : f32 to vector<16x1xf32>
    %7 = arith.divf %5, %6 : vector<16x1xf32>
    %8 = vector.broadcast %7 : vector<16x1xf32> to vector<16x256xf32>
    %9 = arith.subf %1, %8 : vector<16x256xf32>
    %10 = arith.mulf %9, %9 : vector<16x256xf32>
    %cst_7 = arith.constant dense<0.000000e+00> : vector<16xf32>
    %11 = vector.multi_reduction <add>, %10, %cst_7 [1] : vector<16x256xf32> to vector<16xf32>
    %12 = vector.shape_cast %11 : vector<16xf32> to vector<16x1xf32>
    %cst_8 = arith.constant 2.560000e+02 : f32
    %13 = vector.broadcast %cst_8 : f32 to vector<16x1xf32>
    %14 = arith.divf %12, %13 : vector<16x1xf32>
    %cst_9 = arith.constant 9.99999974E-6 : f32
    %15 = vector.broadcast %cst_9 : f32 to vector<16x1xf32>
    %16 = arith.addf %14, %15 : vector<16x1xf32>
    %17 = math.rsqrt %16 : vector<16x1xf32>
    %18 = vector.broadcast %17 : vector<16x1xf32> to vector<16x256xf32>
    %19 = arith.mulf %9, %18 : vector<16x256xf32>
    %20 = vector.broadcast %2 : vector<1x256xf32> to vector<16x256xf32>
    %21 = arith.mulf %19, %20 : vector<16x256xf32>
    %22 = vector.broadcast %3 : vector<1x256xf32> to vector<16x256xf32>
    %23 = arith.addf %21, %22 : vector<16x256xf32>
    %24 = arith.truncf %23 : vector<16x256xf32> to vector<16x256xbf16>
    %c0_10 = arith.constant 0 : index
    %c0_11 = arith.constant 0 : index
    %25 = vector.load %arg6[%c0_10, %c0_11] : memref<256x768xbf16, #tpu.memory_space<vmem>>, vector<256x768xbf16>
    %cst_12 = arith.constant dense<0.000000e+00> : vector<16x768xf32>
    %26 = tpu.matmul %24, %25, %cst_12 {dimension_numbers = #tpu.dot_dimension_numbers<[1], [0], [0], [1], [0, 0, 1, 1], [], []>} : vector<16x256xbf16>, vector<256x768xbf16>, vector<16x768xf32> -> vector<16x768xf32>
    %27 = vector.extract_strided_slice %26 {offsets = [0, 0], sizes = [16, 64], strides = [1, 1]} : vector<16x768xf32> to vector<16x64xf32>
    %cst_13 = arith.constant 1.250000e-01 : f32
    %28 = vector.broadcast %cst_13 : f32 to vector<16x64xf32>
    %29 = arith.mulf %27, %28 : vector<16x64xf32>
    %30 = arith.truncf %29 : vector<16x64xf32> to vector<16x64xbf16>
    %31 = vector.extract_strided_slice %26 {offsets = [0, 256], sizes = [16, 64], strides = [1, 1]} : vector<16x768xf32> to vector<16x64xf32>
    %32 = arith.truncf %31 : vector<16x64xf32> to vector<16x64xbf16>
    %33 = vector.extract_strided_slice %26 {offsets = [0, 512], sizes = [16, 64], strides = [1, 1]} : vector<16x768xf32> to vector<16x64xf32>
    %34 = arith.truncf %33 : vector<16x64xf32> to vector<16x64xbf16>
    %cst_14 = arith.constant dense<0.000000e+00> : vector<16x16xf32>
    %35 = tpu.matmul %30, %32, %cst_14 {dimension_numbers = #tpu.dot_dimension_numbers<[1], [1], [0], [0], [0, 0, 1, 0], [], []>} : vector<16x64xbf16>, vector<16x64xbf16>, vector<16x16xf32> -> vector<16x16xf32>
    %cst_15 = arith.constant dense<0xFF800000> : vector<16xf32>
    %36 = vector.multi_reduction <maximumf>, %35, %cst_15 [1] : vector<16x16xf32> to vector<16xf32>
    %37 = vector.shape_cast %36 : vector<16xf32> to vector<16x1xf32>
    %38 = vector.broadcast %37 : vector<16x1xf32> to vector<16x16xf32>
    %39 = arith.subf %35, %38 : vector<16x16xf32>
    %40 = math.exp %39 : vector<16x16xf32>
    %cst_16 = arith.constant dense<0.000000e+00> : vector<16xf32>
    %41 = vector.multi_reduction <add>, %40, %cst_16 [1] : vector<16x16xf32> to vector<16xf32>
    %42 = vector.shape_cast %41 : vector<16xf32> to vector<16x1xf32>
    %43 = tpu.reciprocal %42 {approx = true} : vector<16x1xf32> -> vector<16x1xf32>
    %44 = vector.broadcast %43 : vector<16x1xf32> to vector<16x16xf32>
    %45 = arith.mulf %40, %44 : vector<16x16xf32>
    %46 = arith.truncf %45 : vector<16x16xf32> to vector<16x16xbf16>
    %cst_17 = arith.constant dense<0.000000e+00> : vector<16x64xf32>
    %47 = tpu.matmul %46, %34, %cst_17 {dimension_numbers = #tpu.dot_dimension_numbers<[1], [0], [0], [1], [0, 0, 1, 1], [], []>} : vector<16x16xbf16>, vector<16x64xbf16>, vector<16x64xf32> -> vector<16x64xf32>
    %48 = vector.extract_strided_slice %26 {offsets = [0, 64], sizes = [16, 64], strides = [1, 1]} : vector<16x768xf32> to vector<16x64xf32>
    %cst_18 = arith.constant 1.250000e-01 : f32
    %49 = vector.broadcast %cst_18 : f32 to vector<16x64xf32>
    %50 = arith.mulf %48, %49 : vector<16x64xf32>
    %51 = arith.truncf %50 : vector<16x64xf32> to vector<16x64xbf16>
    %52 = vector.extract_strided_slice %26 {offsets = [0, 320], sizes = [16, 64], strides = [1, 1]} : vector<16x768xf32> to vector<16x64xf32>
    %53 = arith.truncf %52 : vector<16x64xf32> to vector<16x64xbf16>
    %54 = vector.extract_strided_slice %26 {offsets = [0, 576], sizes = [16, 64], strides = [1, 1]} : vector<16x768xf32> to vector<16x64xf32>
    %55 = arith.truncf %54 : vector<16x64xf32> to vector<16x64xbf16>
    %cst_19 = arith.constant dense<0.000000e+00> : vector<16x16xf32>
    %56 = tpu.matmul %51, %53, %cst_19 {dimension_numbers = #tpu.dot_dimension_numbers<[1], [1], [0], [0], [0, 0, 1, 0], [], []>} : vector<16x64xbf16>, vector<16x64xbf16>, vector<16x16xf32> -> vector<16x16xf32>
    %cst_20 = arith.constant dense<0xFF800000> : vector<16xf32>
    %57 = vector.multi_reduction <maximumf>, %56, %cst_20 [1] : vector<16x16xf32> to vector<16xf32>
    %58 = vector.shape_cast %57 : vector<16xf32> to vector<16x1xf32>
    %59 = vector.broadcast %58 : vector<16x1xf32> to vector<16x16xf32>
    %60 = arith.subf %56, %59 : vector<16x16xf32>
    %61 = math.exp %60 : vector<16x16xf32>
    %cst_21 = arith.constant dense<0.000000e+00> : vector<16xf32>
    %62 = vector.multi_reduction <add>, %61, %cst_21 [1] : vector<16x16xf32> to vector<16xf32>
    %63 = vector.shape_cast %62 : vector<16xf32> to vector<16x1xf32>
    %64 = tpu.reciprocal %63 {approx = true} : vector<16x1xf32> -> vector<16x1xf32>
    %65 = vector.broadcast %64 : vector<16x1xf32> to vector<16x16xf32>
    %66 = arith.mulf %61, %65 : vector<16x16xf32>
    %67 = arith.truncf %66 : vector<16x16xf32> to vector<16x16xbf16>
    %cst_22 = arith.constant dense<0.000000e+00> : vector<16x64xf32>
    %68 = tpu.matmul %67, %55, %cst_22 {dimension_numbers = #tpu.dot_dimension_numbers<[1], [0], [0], [1], [0, 0, 1, 1], [], []>} : vector<16x16xbf16>, vector<16x64xbf16>, vector<16x64xf32> -> vector<16x64xf32>
    %69 = vector.extract_strided_slice %26 {offsets = [0, 128], sizes = [16, 64], strides = [1, 1]} : vector<16x768xf32> to vector<16x64xf32>
    %cst_23 = arith.constant 1.250000e-01 : f32
    %70 = vector.broadcast %cst_23 : f32 to vector<16x64xf32>
    %71 = arith.mulf %69, %70 : vector<16x64xf32>
    %72 = arith.truncf %71 : vector<16x64xf32> to vector<16x64xbf16>
    %73 = vector.extract_strided_slice %26 {offsets = [0, 384], sizes = [16, 64], strides = [1, 1]} : vector<16x768xf32> to vector<16x64xf32>
    %74 = arith.truncf %73 : vector<16x64xf32> to vector<16x64xbf16>
    %75 = vector.extract_strided_slice %26 {offsets = [0, 640], sizes = [16, 64], strides = [1, 1]} : vector<16x768xf32> to vector<16x64xf32>
    %76 = arith.truncf %75 : vector<16x64xf32> to vector<16x64xbf16>
    %cst_24 = arith.constant dense<0.000000e+00> : vector<16x16xf32>
    %77 = tpu.matmul %72, %74, %cst_24 {dimension_numbers = #tpu.dot_dimension_numbers<[1], [1], [0], [0], [0, 0, 1, 0], [], []>} : vector<16x64xbf16>, vector<16x64xbf16>, vector<16x16xf32> -> vector<16x16xf32>
    %cst_25 = arith.constant dense<0xFF800000> : vector<16xf32>
    %78 = vector.multi_reduction <maximumf>, %77, %cst_25 [1] : vector<16x16xf32> to vector<16xf32>
    %79 = vector.shape_cast %78 : vector<16xf32> to vector<16x1xf32>
    %80 = vector.broadcast %79 : vector<16x1xf32> to vector<16x16xf32>
    %81 = arith.subf %77, %80 : vector<16x16xf32>
    %82 = math.exp %81 : vector<16x16xf32>
    %cst_26 = arith.constant dense<0.000000e+00> : vector<16xf32>
    %83 = vector.multi_reduction <add>, %82, %cst_26 [1] : vector<16x16xf32> to vector<16xf32>
    %84 = vector.shape_cast %83 : vector<16xf32> to vector<16x1xf32>
    %85 = tpu.reciprocal %84 {approx = true} : vector<16x1xf32> -> vector<16x1xf32>
    %86 = vector.broadcast %85 : vector<16x1xf32> to vector<16x16xf32>
    %87 = arith.mulf %82, %86 : vector<16x16xf32>
    %88 = arith.truncf %87 : vector<16x16xf32> to vector<16x16xbf16>
    %cst_27 = arith.constant dense<0.000000e+00> : vector<16x64xf32>
    %89 = tpu.matmul %88, %76, %cst_27 {dimension_numbers = #tpu.dot_dimension_numbers<[1], [0], [0], [1], [0, 0, 1, 1], [], []>} : vector<16x16xbf16>, vector<16x64xbf16>, vector<16x64xf32> -> vector<16x64xf32>
    %90 = vector.extract_strided_slice %26 {offsets = [0, 192], sizes = [16, 64], strides = [1, 1]} : vector<16x768xf32> to vector<16x64xf32>
    %cst_28 = arith.constant 1.250000e-01 : f32
    %91 = vector.broadcast %cst_28 : f32 to vector<16x64xf32>
    %92 = arith.mulf %90, %91 : vector<16x64xf32>
    %93 = arith.truncf %92 : vector<16x64xf32> to vector<16x64xbf16>
    %94 = vector.extract_strided_slice %26 {offsets = [0, 448], sizes = [16, 64], strides = [1, 1]} : vector<16x768xf32> to vector<16x64xf32>
    %95 = arith.truncf %94 : vector<16x64xf32> to vector<16x64xbf16>
    %96 = vector.extract_strided_slice %26 {offsets = [0, 704], sizes = [16, 64], strides = [1, 1]} : vector<16x768xf32> to vector<16x64xf32>
    %97 = arith.truncf %96 : vector<16x64xf32> to vector<16x64xbf16>
    %cst_29 = arith.constant dense<0.000000e+00> : vector<16x16xf32>
    %98 = tpu.matmul %93, %95, %cst_29 {dimension_numbers = #tpu.dot_dimension_numbers<[1], [1], [0], [0], [0, 0, 1, 0], [], []>} : vector<16x64xbf16>, vector<16x64xbf16>, vector<16x16xf32> -> vector<16x16xf32>
    %cst_30 = arith.constant dense<0xFF800000> : vector<16xf32>
    %99 = vector.multi_reduction <maximumf>, %98, %cst_30 [1] : vector<16x16xf32> to vector<16xf32>
    %100 = vector.shape_cast %99 : vector<16xf32> to vector<16x1xf32>
    %101 = vector.broadcast %100 : vector<16x1xf32> to vector<16x16xf32>
    %102 = arith.subf %98, %101 : vector<16x16xf32>
    %103 = math.exp %102 : vector<16x16xf32>
    %cst_31 = arith.constant dense<0.000000e+00> : vector<16xf32>
    %104 = vector.multi_reduction <add>, %103, %cst_31 [1] : vector<16x16xf32> to vector<16xf32>
    %105 = vector.shape_cast %104 : vector<16xf32> to vector<16x1xf32>
    %106 = tpu.reciprocal %105 {approx = true} : vector<16x1xf32> -> vector<16x1xf32>
    %107 = vector.broadcast %106 : vector<16x1xf32> to vector<16x16xf32>
    %108 = arith.mulf %103, %107 : vector<16x16xf32>
    %109 = arith.truncf %108 : vector<16x16xf32> to vector<16x16xbf16>
    %cst_32 = arith.constant dense<0.000000e+00> : vector<16x64xf32>
    %110 = tpu.matmul %109, %97, %cst_32 {dimension_numbers = #tpu.dot_dimension_numbers<[1], [0], [0], [1], [0, 0, 1, 1], [], []>} : vector<16x16xbf16>, vector<16x64xbf16>, vector<16x64xf32> -> vector<16x64xf32>
    %111 = tpu.concatenate %47, %68, %89, %110 in 1 : vector<16x64xf32>, vector<16x64xf32>, vector<16x64xf32>, vector<16x64xf32> -> vector<16x256xf32>
    %112 = arith.truncf %111 : vector<16x256xf32> to vector<16x256xbf16>
    %c0_33 = arith.constant 0 : index
    %c0_34 = arith.constant 0 : index
    %113 = vector.load %arg7[%c0_33, %c0_34] : memref<256x256xbf16, #tpu.memory_space<vmem>>, vector<256x256xbf16>
    %cst_35 = arith.constant dense<0.000000e+00> : vector<16x256xf32>
    %114 = tpu.matmul %112, %113, %cst_35 {dimension_numbers = #tpu.dot_dimension_numbers<[1], [0], [0], [1], [0, 0, 1, 1], [], []>} : vector<16x256xbf16>, vector<256x256xbf16>, vector<16x256xf32> -> vector<16x256xf32>
    %115 = arith.addf %1, %114 : vector<16x256xf32>
    %c0_36 = arith.constant 0 : index
    %c0_37 = arith.constant 0 : index
    %116 = vector.load %arg8[%c0_36, %c0_37] : memref<1x256xf32, #tpu.memory_space<vmem>>, vector<1x256xf32>
    %117 = vector.broadcast %116 : vector<1x256xf32> to vector<16x256xf32>
    %118 = arith.addf %115, %117 : vector<16x256xf32>
    %c0_38 = arith.constant 0 : index
    %c0_39 = arith.constant 0 : index
    %119 = vector.load %arg4[%c0_38, %c0_39] : memref<1x256xf32, #tpu.memory_space<vmem>>, vector<1x256xf32>
    %c0_40 = arith.constant 0 : index
    %c0_41 = arith.constant 0 : index
    %120 = vector.load %arg5[%c0_40, %c0_41] : memref<1x256xf32, #tpu.memory_space<vmem>>, vector<1x256xf32>
    %cst_42 = arith.constant dense<0.000000e+00> : vector<16xf32>
    %121 = vector.multi_reduction <add>, %118, %cst_42 [1] : vector<16x256xf32> to vector<16xf32>
    %122 = vector.shape_cast %121 : vector<16xf32> to vector<16x1xf32>
    %cst_43 = arith.constant 2.560000e+02 : f32
    %123 = vector.broadcast %cst_43 : f32 to vector<16x1xf32>
    %124 = arith.divf %122, %123 : vector<16x1xf32>
    %125 = vector.broadcast %124 : vector<16x1xf32> to vector<16x256xf32>
    %126 = arith.subf %118, %125 : vector<16x256xf32>
    %127 = arith.mulf %126, %126 : vector<16x256xf32>
    %cst_44 = arith.constant dense<0.000000e+00> : vector<16xf32>
    %128 = vector.multi_reduction <add>, %127, %cst_44 [1] : vector<16x256xf32> to vector<16xf32>
    %129 = vector.shape_cast %128 : vector<16xf32> to vector<16x1xf32>
    %cst_45 = arith.constant 2.560000e+02 : f32
    %130 = vector.broadcast %cst_45 : f32 to vector<16x1xf32>
    %131 = arith.divf %129, %130 : vector<16x1xf32>
    %cst_46 = arith.constant 9.99999974E-6 : f32
    %132 = vector.broadcast %cst_46 : f32 to vector<16x1xf32>
    %133 = arith.addf %131, %132 : vector<16x1xf32>
    %134 = math.rsqrt %133 : vector<16x1xf32>
    %135 = vector.broadcast %134 : vector<16x1xf32> to vector<16x256xf32>
    %136 = arith.mulf %126, %135 : vector<16x256xf32>
    %137 = vector.broadcast %119 : vector<1x256xf32> to vector<16x256xf32>
    %138 = arith.mulf %136, %137 : vector<16x256xf32>
    %139 = vector.broadcast %120 : vector<1x256xf32> to vector<16x256xf32>
    %140 = arith.addf %138, %139 : vector<16x256xf32>
    %141 = arith.truncf %140 : vector<16x256xf32> to vector<16x256xbf16>
    %c0_47 = arith.constant 0 : index
    %c0_48 = arith.constant 0 : index
    %142 = vector.load %arg9[%c0_47, %c0_48] : memref<256x1024xbf16, #tpu.memory_space<vmem>>, vector<256x1024xbf16>
    %cst_49 = arith.constant dense<0.000000e+00> : vector<16x1024xf32>
    %143 = tpu.matmul %141, %142, %cst_49 {dimension_numbers = #tpu.dot_dimension_numbers<[1], [0], [0], [1], [0, 0, 1, 1], [], []>} : vector<16x256xbf16>, vector<256x1024xbf16>, vector<16x1024xf32> -> vector<16x1024xf32>
    %c0_50 = arith.constant 0 : index
    %c0_51 = arith.constant 0 : index
    %144 = vector.load %arg10[%c0_50, %c0_51] : memref<1x1024xf32, #tpu.memory_space<vmem>>, vector<1x1024xf32>
    %145 = vector.broadcast %144 : vector<1x1024xf32> to vector<16x1024xf32>
    %146 = arith.addf %143, %145 : vector<16x1024xf32>
    %cst_52 = arith.constant 5.000000e-01 : f32
    %147 = vector.broadcast %cst_52 : f32 to vector<16x1024xf32>
    %148 = arith.mulf %147, %146 : vector<16x1024xf32>
    %cst_53 = arith.constant 4.471500e-02 : f32
    %149 = vector.broadcast %cst_53 : f32 to vector<16x1024xf32>
    %150 = arith.mulf %149, %146 : vector<16x1024xf32>
    %151 = arith.mulf %150, %146 : vector<16x1024xf32>
    %152 = arith.mulf %151, %146 : vector<16x1024xf32>
    %153 = arith.addf %146, %152 : vector<16x1024xf32>
    %cst_54 = arith.constant 0.797884583 : f32
    %154 = vector.broadcast %cst_54 : f32 to vector<16x1024xf32>
    %155 = arith.mulf %154, %153 : vector<16x1024xf32>
    %156 = math.tanh %155 : vector<16x1024xf32>
    %cst_55 = arith.constant 1.000000e+00 : f32
    %157 = vector.broadcast %cst_55 : f32 to vector<16x1024xf32>
    %158 = arith.addf %157, %156 : vector<16x1024xf32>
    %159 = arith.mulf %148, %158 : vector<16x1024xf32>
    %160 = arith.truncf %159 : vector<16x1024xf32> to vector<16x1024xbf16>
    %c0_56 = arith.constant 0 : index
    %c0_57 = arith.constant 0 : index
    %161 = vector.load %arg11[%c0_56, %c0_57] : memref<1024x256xbf16, #tpu.memory_space<vmem>>, vector<1024x256xbf16>
    %cst_58 = arith.constant dense<0.000000e+00> : vector<16x256xf32>
    %162 = tpu.matmul %160, %161, %cst_58 {dimension_numbers = #tpu.dot_dimension_numbers<[1], [0], [0], [1], [0, 0, 1, 1], [], []>} : vector<16x1024xbf16>, vector<1024x256xbf16>, vector<16x256xf32> -> vector<16x256xf32>
    %163 = arith.addf %118, %162 : vector<16x256xf32>
    %c0_59 = arith.constant 0 : index
    %c0_60 = arith.constant 0 : index
    %164 = vector.load %arg12[%c0_59, %c0_60] : memref<1x256xf32, #tpu.memory_space<vmem>>, vector<1x256xf32>
    %165 = vector.broadcast %164 : vector<1x256xf32> to vector<16x256xf32>
    %166 = arith.addf %163, %165 : vector<16x256xf32>
    %c0_61 = arith.constant 0 : index
    %c0_62 = arith.constant 0 : index
    %c0_63 = arith.constant 0 : index
    %167 = vector.load %arg13[%c0_61, %c0_62, %c0_63] : memref<1x16x256xf32, #tpu.memory_space<vmem>>, vector<1x16x256xf32>
    %168 = vector.shape_cast %167 : vector<1x16x256xf32> to vector<16x256xf32>
    %169 = vector.shape_cast %166 : vector<16x256xf32> to vector<1x16x256xf32>
    tpu.vector_store %arg13[%c0_61, %c0_62, %c0_63], %169 {strides = array<i32>} : memref<1x16x256xf32, #tpu.memory_space<vmem>>, vector<1x16x256xf32>,
    return
  }
  func.func @transform_0(%arg0: i32) -> (i32, i32, i32) {
    %c0_i32 = arith.constant 0 : i32
    %c0_i32_0 = arith.constant 0 : i32
    %c0_i32_1 = arith.constant 0 : i32
    return %arg0, %c0_i32, %c0_i32_0 : i32, i32, i32
  }
  func.func @transform_1(%arg0: i32) -> (i32, i32) {
    %c0_i32 = arith.constant 0 : i32
    %c0_i32_0 = arith.constant 0 : i32
    %c0_i32_1 = arith.constant 0 : i32
    return %c0_i32, %c0_i32_0 : i32, i32
  }
  func.func @transform_2(%arg0: i32) -> (i32, i32) {
    %c0_i32 = arith.constant 0 : i32
    %c0_i32_0 = arith.constant 0 : i32
    %c0_i32_1 = arith.constant 0 : i32
    return %c0_i32, %c0_i32_0 : i32, i32
  }
  func.func @transform_3(%arg0: i32) -> (i32, i32) {
    %c0_i32 = arith.constant 0 : i32
    %c0_i32_0 = arith.constant 0 : i32
    %c0_i32_1 = arith.constant 0 : i32
    return %c0_i32, %c0_i32_0 : i32, i32
  }
  func.func @transform_4(%arg0: i32) -> (i32, i32) {
    %c0_i32 = arith.constant 0 : i32
    %c0_i32_0 = arith.constant 0 : i32
    %c0_i32_1 = arith.constant 0 : i32
    return %c0_i32, %c0_i32_0 : i32, i32
  }
  func.func @transform_5(%arg0: i32) -> (i32, i32) {
    %c0_i32 = arith.constant 0 : i32
    %c0_i32_0 = arith.constant 0 : i32
    %c0_i32_1 = arith.constant 0 : i32
    return %c0_i32, %c0_i32_0 : i32, i32
  }
  func.func @transform_6(%arg0: i32) -> (i32, i32) {
    %c0_i32 = arith.constant 0 : i32
    %c0_i32_0 = arith.constant 0 : i32
    %c0_i32_1 = arith.constant 0 : i32
    return %c0_i32, %c0_i32_0 : i32, i32
  }
  func.func @transform_7(%arg0: i32) -> (i32, i32) {
    %c0_i32 = arith.constant 0 : i32
    %c0_i32_0 = arith.constant 0 : i32
    %c0_i32_1 = arith.constant 0 : i32
    return %c0_i32, %c0_i32_0 : i32, i32
  }
  func.func @transform_8(%arg0: i32) -> (i32, i32) {
    %c0_i32 = arith.constant 0 : i32
    %c0_i32_0 = arith.constant 0 : i32
    %c0_i32_1 = arith.constant 0 : i32
    return %c0_i32, %c0_i32_0 : i32, i32
  }
  func.func @transform_9(%arg0: i32) -> (i32, i32) {
    %c0_i32 = arith.constant 0 : i32
    %c0_i32_0 = arith.constant 0 : i32
    %c0_i32_1 = arith.constant 0 : i32
    return %c0_i32, %c0_i32_0 : i32, i32
  }
  func.func @transform_10(%arg0: i32) -> (i32, i32) {
    %c0_i32 = arith.constant 0 : i32
    %c0_i32_0 = arith.constant 0 : i32
    %c0_i32_1 = arith.constant 0 : i32
    return %c0_i32, %c0_i32_0 : i32, i32
  }
  func.func @transform_11(%arg0: i32) -> (i32, i32) {
    %c0_i32 = arith.constant 0 : i32
    %c0_i32_0 = arith.constant 0 : i32
    %c0_i32_1 = arith.constant 0 : i32
    return %c0_i32, %c0_i32_0 : i32, i32
  }
  func.func @transform_12(%arg0: i32) -> (i32, i32, i32) {
    %c0_i32 = arith.constant 0 : i32
    %c0_i32_0 = arith.constant 0 : i32
    %c0_i32_1 = arith.constant 0 : i32
    return %arg0, %c0_i32, %c0_i32_0 : i32, i32, i32
  }
}

</mosaic_0001>

<llo_original>
// kernel: transformer_block.1
$region0: #{transformer_block.1}
  #allocation0 [shape = 'u32[]', space=smem, size = 0x4, offset = 0x4, fixed_abs, tag = 'smem constant byte address 0x4 - core index']
  #allocation1 [shape = 'u32[144,128]{1,0:T(1,128)}', space=vmem, size = 0x12000, scoped, tag = 'internal scratch']
  %s0 = inlined_call_operand.hbm [shape: f32[2,16,256], index: 0, kind: input, shape index: {}]
  %s1 = inlined_call_operand.vmem [shape: f32[1,256], index: 1, kind: input, shape index: {}]
  %s2 = inlined_call_operand.vmem [shape: f32[1,256], index: 2, kind: input, shape index: {}]
  %s3 = inlined_call_operand.vmem [shape: f32[1,256], index: 3, kind: input, shape index: {}]
  %s4 = inlined_call_operand.vmem [shape: f32[1,256], index: 4, kind: input, shape index: {}]
  %s5 = inlined_call_operand.hbm [shape: bf16[256,768], index: 5, kind: input, shape index: {}]
  %s6 = inlined_call_operand.hbm [shape: bf16[256,256], index: 6, kind: input, shape index: {}]
  %s7 = inlined_call_operand.vmem [shape: f32[1,256], index: 7, kind: input, shape index: {}]
  %s8 = inlined_call_operand.hbm [shape: bf16[256,1024], index: 8, kind: input, shape index: {}]
  %s9 = inlined_call_operand.vmem [shape: f32[1,1024], index: 9, kind: input, shape index: {}]
  %s10 = inlined_call_operand.hbm [shape: bf16[1024,256], index: 10, kind: input, shape index: {}]
  %s11 = inlined_call_operand.hbm [shape: f32[1,256], index: 11, kind: input, shape index: {}]
  %s12 = inlined_call_operand.hbm [shape: f32[2,16,256], index: 12, kind: output, shape index: {}]
  %s13 = sld [smem:[#allocation0]]
  $region105: #{transformer_block.1} parent=0
    _
  %s15 = ssub.s32 1, %s13
  %s16 = scalar_select 0, %s15, %s13
  $region1: #{transformer_block.1} parent=0
    #allocation2 [shape = 'u8[32768]{0}', space=vmem, size = 0x8000, scoped, tag = 'input window, operand 0']
    #allocation3 [shape = 's32[2]{0}', space=sflag, size = 0x8, scoped, tag = 'scoped memory for transformer_block.1']
    #allocation4 [shape = 's32[2]{0}', space=sflag, size = 0x8, scoped, tag = 'scoped memory for transformer_block.1']
    #allocation5 [shape = 'u8[393216]{0}', space=vmem, size = 0x60000, scoped, tag = 'input window, operand 5, single buffered']
    #allocation6 [shape = 's32[1]{0}', space=sflag, size = 0x4, scoped, tag = 'scoped memory for transformer_block.1']
    #allocation7 [shape = 'u8[131072]{0}', space=vmem, size = 0x20000, scoped, tag = 'input window, operand 6, single buffered']
    #allocation8 [shape = 'u8[524288]{0}', space=vmem, size = 0x80000, scoped, tag = 'input window, operand 8, single buffered']
    #allocation9 [shape = 's32[1]{0}', space=sflag, size = 0x4, scoped, tag = 'scoped memory for transformer_block.1']
    #allocation10 [shape = 'u8[524288]{0}', space=vmem, size = 0x80000, scoped, tag = 'input window, operand 10, single buffered']
    #allocation11 [shape = 'u8[1024]{0}', space=vmem, size = 0x400, scoped, tag = 'input window, operand 11, single buffered']
    #allocation12 [shape = 's32[1]{0}', space=sflag, size = 0x4, scoped, tag = 'scoped memory for transformer_block.1']
    #allocation13 [shape = 'u8[32768]{0}', space=vmem, size = 0x8000, scoped, tag = 'output window, operand 0']
    %17 = vsyncpa [#allocation3], 0
    %s18 = scalar_lea.sflag [#allocation3], 1
    %19 = vsyncpa %s18, 0
    %20 = vsyncpa [#allocation6], 0
    %21 = vsyncpa [#allocation9], 0
    %22 = vsyncpa [#allocation12], 0
    %23 = vsyncpa [#allocation4], 0
    %s24 = scalar_lea.sflag [#allocation4], 1
    %25 = vsyncpa %s24, 0
    loop: start=0, step=1, limit=4
    $region2: #{transformer_block.1} parent=1 // loop_pre_header
      _
    $region3: #{transformer_block.1} parent=1 // loop_header
      %s27 = sphi 0, %s31
      %p28 = scmp.ge.s32.totalorder %s27, 4
      %s37 = sphi 0, %s39
      %s40 = sphi 0, %s37
      %s41 = sphi 0, %s40
      %s57 = sphi 0, %s41
      %s61 = sphi 0, %s61
      %s63 = sphi 0, %s61
      %s64 = sphi 0, %s63
      %s78 = sphi 0, %s64
      %s82 = sphi 0, %s82
      %s84 = sphi 0, %s82
      %s85 = sphi 0, %s84
      %s99 = sphi 0, %s85
      %s103 = sphi 0, %s103
      %s105 = sphi 0, %s103
      %s106 = sphi 0, %s105
      %s120 = sphi 0, %s106
      %s124 = sphi 0, %s124
      %s126 = sphi 0, %s124
      %s127 = sphi 0, %s126
      %s141 = sphi 0, %s127
      %s145 = sphi 0, %s145
      %s147 = sphi 0, %s145
      %s148 = sphi 0, %s147
      %s162 = sphi 0, %s148
      %s166 = sphi 0, %s166
      %s168 = sphi 0, %s166
      %s169 = sphi 0, %s168
      %s183 = sphi 0, %s169
      %s187 = sphi 0, %s187
      %s189 = sphi 0, %s187
      %s190 = sphi 0, %s189
      %s204 = sphi 0, %s190
      %s208 = sphi 0, %s208
      %s210 = sphi 0, %s208
      %s211 = sphi 0, %s210
      %s225 = sphi 0, %s211
      %s229 = sphi 0, %s229
      %s231 = sphi 0, %s229
      %s232 = sphi 0, %s231
      %s246 = sphi 0, %s232
      %s250 = sphi 0, %s250
      %s252 = sphi 0, %s250
      %s253 = sphi 0, %s252
      %s267 = sphi 0, %s253
      %s271 = sphi 0, %s271
      %s273 = sphi 0, %s271
      %s274 = sphi 0, %s273
      %s288 = sphi 0, %s274
      %s294 = sphi 0, %s296
      %s297 = sphi 0, %s294
      %s298 = sphi 0, %s297
      %s314 = sphi 0, %s298
    $region4: #{transformer_block.1} parent=1 // loop_header_branch
      %30 = sbr.rel (%p28) target = $region8
    $region5: #{transformer_block.1} parent=1 // loop_body
      %s32 = ssub.s32 %s27, 1
      %s33 = ssub.s32 %s27, 2
      %s34 = sadd.s32 %s27, 1
      %s35 = ssub.s32 %s27, %s34
      %p36 = scmp.eq.s32.totalorder %s35, 0
      %s38 = sadd.s32 %s37, 1
      %s39 = scalar_select %p36, %s37, %s38
      %p42 = pneg %p36
      %p43 = scmp.eq.s32.totalorder %s27, 1
      %p44 = por %p42, %p43
      %p45 = scmp.ne.s32.totalorder %s37, %s40
      %p46 = scmp.eq.s32.totalorder %s27, 0
      %p47 = por %p45, %p46
      %p48 = scmp.ne.s32.totalorder %s37, %s40
      %p49 = scmp.eq.s32.totalorder %s32, 1
      %p50 = por %p48, %p49
      %p51 = scmp.ne.s32.totalorder %s40, %s41
      %p52 = scmp.eq.s32.totalorder %s32, 0
      %p53 = por %p51, %p52
      %p54 = scmp.ne.s32.totalorder %s40, %s41
      %p55 = scmp.eq.s32.totalorder %s33, 1
      %p56 = por %p54, %p55
      %p58 = scmp.ne.s32.totalorder %s41, %s57
      %p59 = scmp.eq.s32.totalorder %s33, 0
      %p60 = por %p58, %p59
      %s62 = sadd.s32 %s61, 1
      %p65 = scmp.eq.s32.totalorder %s27, 1
      %p66 = scmp.ne.s32.totalorder %s61, %s63
      %p67 = scmp.eq.s32.totalorder %s27, 0
      %p68 = por %p66, %p67
      %p69 = scmp.ne.s32.totalorder %s61, %s63
      %p70 = scmp.eq.s32.totalorder %s32, 1
      %p71 = por %p69, %p70
      %p72 = scmp.ne.s32.totalorder %s63, %s64
      %p73 = scmp.eq.s32.totalorder %s32, 0
      %p74 = por %p72, %p73
      %p75 = scmp.ne.s32.totalorder %s63, %s64
      %p76 = scmp.eq.s32.totalorder %s33, 1
      %p77 = por %p75, %p76
      %p79 = scmp.ne.s32.totalorder %s64, %s78
      %p80 = scmp.eq.s32.totalorder %s33, 0
      %p81 = por %p79, %p80
      %s83 = sadd.s32 %s82, 1
      %p86 = scmp.eq.s32.totalorder %s27, 1
      %p87 = scmp.ne.s32.totalorder %s82, %s84
      %p88 = scmp.eq.s32.totalorder %s27, 0
      %p89 = por %p87, %p88
      %p90 = scmp.ne.s32.totalorder %s82, %s84
      %p91 = scmp.eq.s32.totalorder %s32, 1
      %p92 = por %p90, %p91
      %p93 = scmp.ne.s32.totalorder %s84, %s85
      %p94 = scmp.eq.s32.totalorder %s32, 0
      %p95 = por %p93, %p94
      %p96 = scmp.ne.s32.totalorder %s84, %s85
      %p97 = scmp.eq.s32.totalorder %s33, 1
      %p98 = por %p96, %p97
      %p100 = scmp.ne.s32.totalorder %s85, %s99
      %p101 = scmp.eq.s32.totalorder %s33, 0
      %p102 = por %p100, %p101
      %s104 = sadd.s32 %s103, 1
      %p107 = scmp.eq.s32.totalorder %s27, 1
      %p108 = scmp.ne.s32.totalorder %s103, %s105
      %p109 = scmp.eq.s32.totalorder %s27, 0
      %p110 = por %p108, %p109
      %p111 = scmp.ne.s32.totalorder %s103, %s105
      %p112 = scmp.eq.s32.totalorder %s32, 1
      %p113 = por %p111, %p112
      %p114 = scmp.ne.s32.totalorder %s105, %s106
      %p115 = scmp.eq.s32.totalorder %s32, 0
      %p116 = por %p114, %p115
      %p117 = scmp.ne.s32.totalorder %s105, %s106
      %p118 = scmp.eq.s32.totalorder %s33, 1
      %p119 = por %p117, %p118
      %p121 = scmp.ne.s32.totalorder %s106, %s120
      %p122 = scmp.eq.s32.totalorder %s33, 0
      %p123 = por %p121, %p122
      %s125 = sadd.s32 %s124, 1
      %p128 = scmp.eq.s32.totalorder %s27, 1
      %p129 = scmp.ne.s32.totalorder %s124, %s126
      %p130 = scmp.eq.s32.totalorder %s27, 0
      %p131 = por %p129, %p130
      %p132 = scmp.ne.s32.totalorder %s124, %s126
      %p133 = scmp.eq.s32.totalorder %s32, 1
      %p134 = por %p132, %p133
      %p135 = scmp.ne.s32.totalorder %s126, %s127
      %p136 = scmp.eq.s32.totalorder %s32, 0
      %p137 = por %p135, %p136
      %p138 = scmp.ne.s32.totalorder %s126, %s127
      %p139 = scmp.eq.s32.totalorder %s33, 1
      %p140 = por %p138, %p139
      %p142 = scmp.ne.s32.totalorder %s127, %s141
      %p143 = scmp.eq.s32.totalorder %s33, 0
      %p144 = por %p142, %p143
      %s146 = sadd.s32 %s145, 1
      %p149 = scmp.eq.s32.totalorder %s27, 1
      %p150 = scmp.ne.s32.totalorder %s145, %s147
      %p151 = scmp.eq.s32.totalorder %s27, 0
      %p152 = por %p150, %p151
      %p153 = scmp.ne.s32.totalorder %s145, %s147
      %p154 = scmp.eq.s32.totalorder %s32, 1
      %p155 = por %p153, %p154
      %p156 = scmp.ne.s32.totalorder %s147, %s148
      %p157 = scmp.eq.s32.totalorder %s32, 0
      %p158 = por %p156, %p157
      %p159 = scmp.ne.s32.totalorder %s147, %s148
      %p160 = scmp.eq.s32.totalorder %s33, 1
      %p161 = por %p159, %p160
      %p163 = scmp.ne.s32.totalorder %s148, %s162
      %p164 = scmp.eq.s32.totalorder %s33, 0
      %p165 = por %p163, %p164
      %s167 = sadd.s32 %s166, 1
      %p170 = scmp.eq.s32.totalorder %s27, 1
      %p171 = scmp.ne.s32.totalorder %s166, %s168
      %p172 = scmp.eq.s32.totalorder %s27, 0
      %p173 = por %p171, %p172
      %p174 = scmp.ne.s32.totalorder %s166, %s168
      %p175 = scmp.eq.s32.totalorder %s32, 1
      %p176 = por %p174, %p175
      %p177 = scmp.ne.s32.totalorder %s168, %s169
      %p178 = scmp.eq.s32.totalorder %s32, 0
      %p179 = por %p177, %p178
      %p180 = scmp.ne.s32.totalorder %s168, %s169
      %p181 = scmp.eq.s32.totalorder %s33, 1
      %p182 = por %p180, %p181
      %p184 = scmp.ne.s32.totalorder %s169, %s183
      %p185 = scmp.eq.s32.totalorder %s33, 0
      %p186 = por %p184, %p185
      %s188 = sadd.s32 %s187, 1
      %p191 = scmp.eq.s32.totalorder %s27, 1
      %p192 = scmp.ne.s32.totalorder %s187, %s189
      %p193 = scmp.eq.s32.totalorder %s27, 0
      %p194 = por %p192, %p193
      %p195 = scmp.ne.s32.totalorder %s187, %s189
      %p196 = scmp.eq.s32.totalorder %s32, 1
      %p197 = por %p195, %p196
      %p198 = scmp.ne.s32.totalorder %s189, %s190
      %p199 = scmp.eq.s32.totalorder %s32, 0
      %p200 = por %p198, %p199
      %p201 = scmp.ne.s32.totalorder %s189, %s190
      %p202 = scmp.eq.s32.totalorder %s33, 1
      %p203 = por %p201, %p202
      %p205 = scmp.ne.s32.totalorder %s190, %s204
      %p206 = scmp.eq.s32.totalorder %s33, 0
      %p207 = por %p205, %p206
      %s209 = sadd.s32 %s208, 1
      %p212 = scmp.eq.s32.totalorder %s27, 1
      %p213 = scmp.ne.s32.totalorder %s208, %s210
      %p214 = scmp.eq.s32.totalorder %s27, 0
      %p215 = por %p213, %p214
      %p216 = scmp.ne.s32.totalorder %s208, %s210
      %p217 = scmp.eq.s32.totalorder %s32, 1
      %p218 = por %p216, %p217
      %p219 = scmp.ne.s32.totalorder %s210, %s211
      %p220 = scmp.eq.s32.totalorder %s32, 0
      %p221 = por %p219, %p220
      %p222 = scmp.ne.s32.totalorder %s210, %s211
      %p223 = scmp.eq.s32.totalorder %s33, 1
      %p224 = por %p222, %p223
      %p226 = scmp.ne.s32.totalorder %s211, %s225
      %p227 = scmp.eq.s32.totalorder %s33, 0
      %p228 = por %p226, %p227
      %s230 = sadd.s32 %s229, 1
      %p233 = scmp.eq.s32.totalorder %s27, 1
      %p234 = scmp.ne.s32.totalorder %s229, %s231
      %p235 = scmp.eq.s32.totalorder %s27, 0
      %p236 = por %p234, %p235
      %p237 = scmp.ne.s32.totalorder %s229, %s231
      %p238 = scmp.eq.s32.totalorder %s32, 1
      %p239 = por %p237, %p238
      %p240 = scmp.ne.s32.totalorder %s231, %s232
      %p241 = scmp.eq.s32.totalorder %s32, 0
      %p242 = por %p240, %p241
      %p243 = scmp.ne.s32.totalorder %s231, %s232
      %p244 = scmp.eq.s32.totalorder %s33, 1
      %p245 = por %p243, %p244
      %p247 = scmp.ne.s32.totalorder %s232, %s246
      %p248 = scmp.eq.s32.totalorder %s33, 0
      %p249 = por %p247, %p248
      %s251 = sadd.s32 %s250, 1
      %p254 = scmp.eq.s32.totalorder %s27, 1
      %p255 = scmp.ne.s32.totalorder %s250, %s252
      %p256 = scmp.eq.s32.totalorder %s27, 0
      %p257 = por %p255, %p256
      %p258 = scmp.ne.s32.totalorder %s250, %s252
      %p259 = scmp.eq.s32.totalorder %s32, 1
      %p260 = por %p258, %p259
      %p261 = scmp.ne.s32.totalorder %s252, %s253
      %p262 = scmp.eq.s32.totalorder %s32, 0
      %p263 = por %p261, %p262
      %p264 = scmp.ne.s32.totalorder %s252, %s253
      %p265 = scmp.eq.s32.totalorder %s33, 1
      %p266 = por %p264, %p265
      %p268 = scmp.ne.s32.totalorder %s253, %s267
      %p269 = scmp.eq.s32.totalorder %s33, 0
      %p270 = por %p268, %p269
      %s272 = sadd.s32 %s271, 1
      %p275 = scmp.eq.s32.totalorder %s27, 1
      %p276 = scmp.ne.s32.totalorder %s271, %s273
      %p277 = scmp.eq.s32.totalorder %s27, 0
      %p278 = por %p276, %p277
      %p279 = scmp.ne.s32.totalorder %s271, %s273
      %p280 = scmp.eq.s32.totalorder %s32, 1
      %p281 = por %p279, %p280
      %p282 = scmp.ne.s32.totalorder %s273, %s274
      %p283 = scmp.eq.s32.totalorder %s32, 0
      %p284 = por %p282, %p283
      %p285 = scmp.ne.s32.totalorder %s273, %s274
      %p286 = scmp.eq.s32.totalorder %s33, 1
      %p287 = por %p285, %p286
      %p289 = scmp.ne.s32.totalorder %s274, %s288
      %p290 = scmp.eq.s32.totalorder %s33, 0
      %p291 = por %p289, %p290
      %s292 = ssub.s32 %s27, %s34
      %p293 = scmp.eq.s32.totalorder %s292, 0
      %s295 = sadd.s32 %s294, 1
      %s296 = scalar_select %p293, %s294, %s295
      %p299 = pneg %p293
      %p300 = scmp.eq.s32.totalorder %s27, 1
      %p301 = por %p299, %p300
      %p302 = scmp.ne.s32.totalorder %s294, %s297
      %p303 = scmp.eq.s32.totalorder %s27, 0
      %p304 = por %p302, %p303
      %p305 = scmp.ne.s32.totalorder %s294, %s297
      %p306 = scmp.eq.s32.totalorder %s32, 1
      %p307 = por %p305, %p306
      %p308 = scmp.ne.s32.totalorder %s297, %s298
      %p309 = scmp.eq.s32.totalorder %s32, 0
      %p310 = por %p308, %p309
      %p311 = scmp.ne.s32.totalorder %s297, %s298
      %p312 = scmp.eq.s32.totalorder %s33, 1
      %p313 = por %p311, %p312
      %p315 = scmp.ne.s32.totalorder %s298, %s314
      %p316 = scmp.eq.s32.totalorder %s33, 0
      %p317 = por %p315, %p316
      %p318 = scmp.le.s32.totalorder 1, %s27
      %p319 = scmp.lt.s32.totalorder %s27, 3
      %p320 = pnand %p318, %p319
      %p321 = pneg %p320
      // Predicated region
      $region9: #{transformer_block.1} parent=5 // pred_check
        _
      $region10: #{transformer_block.1} parent=5 // pred_check_branch
        %323 = sbr.rel (%p320) target = $region12
      $region11: #{transformer_block.1} parent=5 // pred_region
        %s324 = ssub.s32 %s27, 1
        // Predicated region
        $region13: #{transformer_block.1} parent=11 // pred_check
          %p325 = pneg %p74
        $region14: #{transformer_block.1} parent=11 // pred_check_branch
          %327 = sbr.rel (%p325) target = $region16
        $region15: #{transformer_block.1} parent=11 // pred_region
          _
        $region16: #{transformer_block.1} parent=11 // pred_fallthru
          _
        // Predicated region
        $region17: #{transformer_block.1} parent=11 // pred_check
          %p328 = pneg %p95
        $region18: #{transformer_block.1} parent=11 // pred_check_branch
          %330 = sbr.rel (%p328) target = $region20
        $region19: #{transformer_block.1} parent=11 // pred_region
          _
        $region20: #{transformer_block.1} parent=11 // pred_fallthru
          _
        // Predicated region
        $region21: #{transformer_block.1} parent=11 // pred_check
          %p331 = pneg %p116
        $region22: #{transformer_block.1} parent=11 // pred_check_branch
          %333 = sbr.rel (%p331) target = $region24
        $region23: #{transformer_block.1} parent=11 // pred_region
          _
        $region24: #{transformer_block.1} parent=11 // pred_fallthru
          _
        // Predicated region
        $region25: #{transformer_block.1} parent=11 // pred_check
          %p334 = pneg %p137
        $region26: #{transformer_block.1} parent=11 // pred_check_branch
          %336 = sbr.rel (%p334) target = $region28
        $region27: #{transformer_block.1} parent=11 // pred_region
          _
        $region28: #{transformer_block.1} parent=11 // pred_fallthru
          _
        // Predicated region
        $region29: #{transformer_block.1} parent=11 // pred_check
          %p337 = pneg %p158
        $region30: #{transformer_block.1} parent=11 // pred_check_branch
          %339 = sbr.rel (%p337) target = $region32
        $region31: #{transformer_block.1} parent=11 // pred_region
          %s341 = ssub.s32 12288, 12288
          %342 = vsyncadd [#allocation6], %s341
          %s343 = sshll.u32 [#allocation5], 4
          %s344 = int_to_ptr.vmem [resolvable:$true] %s343
          %349 = dma.hbm_to_vmem [thread:$0]  %s5, 12288, %s344, [#allocation6], 384, 384, 24
        $region32: #{transformer_block.1} parent=11 // pred_fallthru
          _
        // Predicated region
        $region33: #{transformer_block.1} parent=11 // pred_check
          %p350 = pneg %p179
        $region34: #{transformer_block.1} parent=11 // pred_check_branch
          %352 = sbr.rel (%p350) target = $region36
        $region35: #{transformer_block.1} parent=11 // pred_region
          %s354 = ssub.s32 4096, 4096
          %355 = vsyncadd [#allocation6], %s354
          %s356 = sshll.u32 [#allocation7], 4
          %s357 = int_to_ptr.vmem [resolvable:$true] %s356
          %362 = dma.hbm_to_vmem [thread:$0]  %s6, 4096, %s357, [#allocation6], 128, 128, 8
        $region36: #{transformer_block.1} parent=11 // pred_fallthru
          _
        // Predicated region
        $region37: #{transformer_block.1} parent=11 // pred_check
          %p363 = pneg %p200
        $region38: #{transformer_block.1} parent=11 // pred_check_branch
          %365 = sbr.rel (%p363) target = $region40
        $region39: #{transformer_block.1} parent=11 // pred_region
          _
        $region40: #{transformer_block.1} parent=11 // pred_fallthru
          _
        // Predicated region
        $region41: #{transformer_block.1} parent=11 // pred_check
          %p366 = pneg %p221
        $region42: #{transformer_block.1} parent=11 // pred_check_branch
          %368 = sbr.rel (%p366) target = $region44
        $region43: #{transformer_block.1} parent=11 // pred_region
          %s370 = ssub.s32 16384, 16384
          %371 = vsyncadd [#allocation9], %s370
          %s372 = sshll.u32 [#allocation8], 4
          %s373 = int_to_ptr.vmem [resolvable:$true] %s372
          %378 = dma.hbm_to_vmem [thread:$0]  %s8, 16384, %s373, [#allocation9], 512, 512, 32
        $region44: #{transformer_block.1} parent=11 // pred_fallthru
          _
        // Predicated region
        $region45: #{transformer_block.1} parent=11 // pred_check
          %p379 = pneg %p242
        $region46: #{transformer_block.1} parent=11 // pred_check_branch
          %381 = sbr.rel (%p379) target = $region48
        $region47: #{transformer_block.1} parent=11 // pred_region
          _
        $region48: #{transformer_block.1} parent=11 // pred_fallthru
          _
        // Predicated region
        $region49: #{transformer_block.1} parent=11 // pred_check
          %p382 = pneg %p263
        $region50: #{transformer_block.1} parent=11 // pred_check_branch
          %384 = sbr.rel (%p382) target = $region52
        $region51: #{transformer_block.1} parent=11 // pred_region
          %s386 = ssub.s32 16384, 16384
          %387 = vsyncadd [#allocation9], %s386
          %s388 = sshll.u32 [#allocation10], 4
          %s389 = int_to_ptr.vmem [resolvable:$true] %s388
          %394 = dma.hbm_to_vmem [thread:$0]  %s10, 16384, %s389, [#allocation9], 128, 128, 8
        $region52: #{transformer_block.1} parent=11 // pred_fallthru
          _
        // Predicated region
        $region53: #{transformer_block.1} parent=11 // pred_check
          %p395 = pneg %p284
        $region54: #{transformer_block.1} parent=11 // pred_check_branch
          %397 = sbr.rel (%p395) target = $region56
        $region55: #{transformer_block.1} parent=11 // pred_region
          %s399 = ssub.s32 32, 32
          %400 = vsyncadd [#allocation12], %s399
          %s402 = sshll.u32 [#allocation11], 4
          %s403 = int_to_ptr.vmem [resolvable:$true] %s402
          %405 = dma.hbm_to_vmem [thread:$0]  %s11, 32, %s403, [#allocation12]
        $region56: #{transformer_block.1} parent=11 // pred_fallthru
          _
      $region12: #{transformer_block.1} parent=5 // pred_fallthru
        _
      %p406 = scmp.lt.s32.totalorder %s27, 2
      // Predicated region
      $region57: #{transformer_block.1} parent=5 // pred_check
        %p407 = pneg %p406
      $region58: #{transformer_block.1} parent=5 // pred_check_branch
        %409 = sbr.rel (%p407) target = $region60
      $region59: #{transformer_block.1} parent=5 // pred_region
        // Predicated region
        $region61: #{transformer_block.1} parent=59 // pred_check
          %p410 = pneg %p47
        $region62: #{transformer_block.1} parent=59 // pred_check_branch
          %412 = sbr.rel (%p410) target = $region64
        $region63: #{transformer_block.1} parent=59 // pred_region
          %s413 = sand.u32 %s37, 1
          %s414 = scalar_lea.sflag [#allocation3], %s413
          %s415 = sand.u32 %s37, 1
          %s416 = smul.addr %s415, 32
          %s417 = scalar_lea.vmem [#allocation2], %s416
          %s419 = ssub.s32 512, 512
          %420 = vsyncadd %s414, %s419
          %s421 = smul.addr %s27, 4
          %s422 = smul.addr %s421, 128
          %s423 = scalar_lea.hbm %s0, %s422
          %s424 = sshll.u32 %s417, 4
          %s425 = int_to_ptr.vmem [resolvable:$true] %s424
          %430 = dma.hbm_to_vmem [thread:$0]  %s423, 512, %s425, %s414, 256, 256, 16
        $region64: #{transformer_block.1} parent=59 // pred_fallthru
          _
      $region60: #{transformer_block.1} parent=5 // pred_fallthru
        _
      %p431 = scmp.le.s32.totalorder 1, %s27
      %p432 = scmp.lt.s32.totalorder %s27, 3
      %p433 = pnand %p431, %p432
      %p434 = pneg %p433
      // Predicated region
      $region65: #{transformer_block.1} parent=5 // pred_check
        _
      $region66: #{transformer_block.1} parent=5 // pred_check_branch
        %436 = sbr.rel (%p433) target = $region68
      $region67: #{transformer_block.1} parent=5 // pred_region
        %s437 = ssub.s32 %s27, 1
        %s438 = sand.u32 %s40, 1
        %s439 = scalar_lea.sflag [#allocation3], %s438
        %s440 = sand.u32 %s40, 1
        %s441 = smul.addr %s440, 32
        %s442 = scalar_lea.vmem [#allocation2], %s441
        // Predicated region
        $region69: #{transformer_block.1} parent=67 // pred_check
          %p443 = pneg %p53
        $region70: #{transformer_block.1} parent=67 // pred_check_branch
          %445 = sbr.rel (%p443) target = $region72
        $region71: #{transformer_block.1} parent=67 // pred_region
          %446 = dma.done %s439, 512
        $region72: #{transformer_block.1} parent=67 // pred_fallthru
          _
        // Predicated region
        $region73: #{transformer_block.1} parent=67 // pred_check
          %p447 = pneg %p158
        $region74: #{transformer_block.1} parent=67 // pred_check_branch
          %449 = sbr.rel (%p447) target = $region76
        $region75: #{transformer_block.1} parent=67 // pred_region
          %450 = dma.done [#allocation6], 12288
        $region76: #{transformer_block.1} parent=67 // pred_fallthru
          _
        // Predicated region
        $region77: #{transformer_block.1} parent=67 // pred_check
          %p451 = pneg %p179
        $region78: #{transformer_block.1} parent=67 // pred_check_branch
          %453 = sbr.rel (%p451) target = $region80
        $region79: #{transformer_block.1} parent=67 // pred_region
          %454 = dma.done [#allocation6], 4096
        $region80: #{transformer_block.1} parent=67 // pred_fallthru
          _
        // Predicated region
        $region81: #{transformer_block.1} parent=67 // pred_check
          %p455 = pneg %p221
        $region82: #{transformer_block.1} parent=67 // pred_check_branch
          %457 = sbr.rel (%p455) target = $region84
        $region83: #{transformer_block.1} parent=67 // pred_region
          %458 = dma.done [#allocation9], 16384
        $region84: #{transformer_block.1} parent=67 // pred_fallthru
          _
        // Predicated region
        $region85: #{transformer_block.1} parent=67 // pred_check
          %p459 = pneg %p263
        $region86: #{transformer_block.1} parent=67 // pred_check_branch
          %461 = sbr.rel (%p459) target = $region88
        $region87: #{transformer_block.1} parent=67 // pred_region
          %462 = dma.done [#allocation9], 16384
        $region88: #{transformer_block.1} parent=67 // pred_fallthru
          _
        // Predicated region
        $region89: #{transformer_block.1} parent=67 // pred_check
          %p463 = pneg %p284
        $region90: #{transformer_block.1} parent=67 // pred_check_branch
          %465 = sbr.rel (%p463) target = $region92
        $region91: #{transformer_block.1} parent=67 // pred_region
          %466 = dma.done [#allocation12], 32
        $region92: #{transformer_block.1} parent=67 // pred_fallthru
          _
        %s467 = sand.u32 %s40, 1
        %s468 = scalar_lea.sflag [#allocation3], %s467
        %s469 = sand.u32 %s40, 1
        %s470 = smul.addr %s469, 32
        %s471 = scalar_lea.vmem [#allocation2], %s470
        %p472 = pneg %p53
        %p473 = pneg %p50
        %p474 = pneg %p74
        %p475 = pneg %p71
        %p476 = pneg %p95
        %p477 = pneg %p92
        %p478 = pneg %p116
        %p479 = pneg %p113
        %p480 = pneg %p137
        %p481 = pneg %p134
        %p482 = pneg %p158
        %p483 = pneg %p155
        %p484 = pneg %p179
        %p485 = pneg %p176
        %p486 = pneg %p200
        %p487 = pneg %p197
        %p488 = pneg %p221
        %p489 = pneg %p218
        %p490 = pneg %p242
        %p491 = pneg %p239
        %p492 = pneg %p263
        %p493 = pneg %p260
        %p494 = pneg %p284
        %p495 = pneg %p281
        %p496 = pneg %p310
        %p497 = pneg %p307
        %s498 = sand.u32 %s297, 1
        %s499 = scalar_lea.sflag [#allocation4], %s498
        %s500 = sand.u32 %s297, 1
        %s501 = smul.addr %s500, 32
        %s502 = scalar_lea.vmem [#allocation13], %s501
        %v504 = vld [vmem:[%s442] sm:$0xff]
        %v505 = vld [vmem:[%s442 + $0x8] sm:$0xff]
        %v506 = vld [vmem:[%s442 + $0x10] sm:$0xff]
        %v507 = vld [vmem:[%s442 + $0x18] sm:$0xff]
        %v508 = vld [vmem:[%s1] sm:$0x3]
        %v509 = vld [vmem:[%s2] sm:$0x3]
        %v510 = vadd.f32 %v504, %v505
        %511 = vadd.xlane.f32.xlu0 %v510
        %v512 = vpop.xlane.xlu0 %511
        %v513 = vadd.f32 %v506, %v507
        %514 = vadd.xlane.f32.xlu0 %v513
        %v515 = vpop.xlane.xlu0 %514
        %v516 = vrcp.pop 256.0
        %v517 = vmul.f32 %v512, %v516
        %v518 = vmul.f32 %v515, %v516
        %v519 = vsub.f32 %v504, %v517
        %v520 = vsub.f32 %v505, %v517
        %v521 = vsub.f32 %v506, %v518
        %v522 = vsub.f32 %v507, %v518
        %v523 = vmul.f32 %v519, %v519
        %v524 = vmul.f32 %v520, %v520
        %v525 = vmul.f32 %v521, %v521
        %v526 = vmul.f32 %v522, %v522
        %v527 = vadd.f32 %v523, %v524
        %528 = vadd.xlane.f32.xlu0 %v527
        %v529 = vpop.xlane.xlu0 %528
        %v530 = vadd.f32 %v525, %v526
        %531 = vadd.xlane.f32.xlu0 %v530
        %v532 = vpop.xlane.xlu0 %531
        %v533 = vmul.f32 %v529, %v516
        %v534 = vmul.f32 %v532, %v516
        %v535 = vadd.f32 %v533, 1e-05
        %v536 = vadd.f32 %v534, 1e-05
        %v537 = vrsqrt.pop %v535
        %v538 = vrsqrt.pop %v536
        %v539 = vmul.f32 %v519, %v537
        %v540 = vmul.f32 %v520, %v537
        %v541 = vmul.f32 %v521, %v538
        %v542 = vmul.f32 %v522, %v538
        %v544 = vlaneseq
        %v545 = vshrl.u32 %v544, 7
        %v546 = vsub.s32 0, %v545
        %v547 = vrot.slane %v508, %v546
        %v548 = vlaneseq
        %v549 = vshrl.u32 %v548, 7
        %v550 = vsub.s32 1, %v549
        %v551 = vrot.slane %v508, %v550
        %v554 = vmul.f32 %v539, %v547
        %v555 = vmul.f32 %v540, %v551
        %v556 = vmul.f32 %v541, %v547
        %v557 = vmul.f32 %v542, %v551
        %v559 = vlaneseq
        %v560 = vshrl.u32 %v559, 7
        %v561 = vsub.s32 0, %v560
        %v562 = vrot.slane %v509, %v561
        %v563 = vlaneseq
        %v564 = vshrl.u32 %v563, 7
        %v565 = vsub.s32 1, %v564
        %v566 = vrot.slane %v509, %v565
        %v569 = vadd.f32 %v554, %v562
        %v570 = vadd.f32 %v555, %v566
        %v571 = vadd.f32 %v556, %v562
        %v572 = vadd.f32 %v557, %v566
        %v573 = vpack.c.bf16 %v571, %v569
        %v574 = vpack.c.bf16 %v572, %v570
        %v575 = vld [vmem:[#allocation5] sm:$0xff]
        %v576 = vld [vmem:[#allocation5 + $0x8] sm:$0xff]
        %v577 = vld [vmem:[#allocation5 + $0x10] sm:$0xff]
        %v578 = vld [vmem:[#allocation5 + $0x18] sm:$0xff]
        %v579 = vld [vmem:[#allocation5 + $0x20] sm:$0xff]
        %v580 = vld [vmem:[#allocation5 + $0x28] sm:$0xff]
        %v581 = vld [vmem:[#allocation5 + $0x30] sm:$0xff]
        %v582 = vld [vmem:[#allocation5 + $0x38] sm:$0xff]
        %v583 = vld [vmem:[#allocation5 + $0x40] sm:$0xff]
        %v584 = vld [vmem:[#allocation5 + $0x48] sm:$0xff]
        %v585 = vld [vmem:[#allocation5 + $0x50] sm:$0xff]
        %v586 = vld [vmem:[#allocation5 + $0x58] sm:$0xff]
        %v587 = vld [vmem:[#allocation5 + $0x60] sm:$0xff]
        %v588 = vld [vmem:[#allocation5 + $0x68] sm:$0xff]
        %v589 = vld [vmem:[#allocation5 + $0x70] sm:$0xff]
        %v590 = vld [vmem:[#allocation5 + $0x78] sm:$0xff]
        %v591 = vld [vmem:[#allocation5 + $0x80] sm:$0xff]
        %v592 = vld [vmem:[#allocation5 + $0x88] sm:$0xff]
        %v593 = vld [vmem:[#allocation5 + $0x90] sm:$0xff]
        %v594 = vld [vmem:[#allocation5 + $0x98] sm:$0xff]
        %v595 = vld [vmem:[#allocation5 + $0xa0] sm:$0xff]
        %v596 = vld [vmem:[#allocation5 + $0xa8] sm:$0xff]
        %v597 = vld [vmem:[#allocation5 + $0xb0] sm:$0xff]
        %v598 = vld [vmem:[#allocation5 + $0xb8] sm:$0xff]
        %v599 = vld [vmem:[#allocation5 + $0xc0] sm:$0xff]
        %v600 = vld [vmem:[#allocation5 + $0xc8] sm:$0xff]
        %v601 = vld [vmem:[#allocation5 + $0xd0] sm:$0xff]
        %v602 = vld [vmem:[#allocation5 + $0xd8] sm:$0xff]
        %v603 = vld [vmem:[#allocation5 + $0xe0] sm:$0xff]
        %v604 = vld [vmem:[#allocation5 + $0xe8] sm:$0xff]
        %v605 = vld [vmem:[#allocation5 + $0xf0] sm:$0xff]
        %v606 = vld [vmem:[#allocation5 + $0xf8] sm:$0xff]
        %v607 = vld [vmem:[#allocation5 + $0x100] sm:$0xff]
        %v608 = vld [vmem:[#allocation5 + $0x108] sm:$0xff]
        %v609 = vld [vmem:[#allocation5 + $0x110] sm:$0xff]
        %v610 = vld [vmem:[#allocation5 + $0x118] sm:$0xff]
        %v611 = vld [vmem:[#allocation5 + $0x120] sm:$0xff]
        %v612 = vld [vmem:[#allocation5 + $0x128] sm:$0xff]
        %v613 = vld [vmem:[#allocation5 + $0x130] sm:$0xff]
        %v614 = vld [vmem:[#allocation5 + $0x138] sm:$0xff]
        %v615 = vld [vmem:[#allocation5 + $0x140] sm:$0xff]
        %v616 = vld [vmem:[#allocation5 + $0x148] sm:$0xff]
        %v617 = vld [vmem:[#allocation5 + $0x150] sm:$0xff]
        %v618 = vld [vmem:[#allocation5 + $0x158] sm:$0xff]
        %v619 = vld [vmem:[#allocation5 + $0x160] sm:$0xff]
        %v620 = vld [vmem:[#allocation5 + $0x168] sm:$0xff]
        %v621 = vld [vmem:[#allocation5 + $0x170] sm:$0xff]
        %v622 = vld [vmem:[#allocation5 + $0x178] sm:$0xff]
        %v623 = vld [vmem:[#allocation5 + $0x180] sm:$0xff]
        %v624 = vld [vmem:[#allocation5 + $0x188] sm:$0xff]
        %v625 = vld [vmem:[#allocation5 + $0x190] sm:$0xff]
        %v626 = vld [vmem:[#allocation5 + $0x198] sm:$0xff]
        %v627 = vld [vmem:[#allocation5 + $0x1a0] sm:$0xff]
        %v628 = vld [vmem:[#allocation5 + $0x1a8] sm:$0xff]
        %v629 = vld [vmem:[#allocation5 + $0x1b0] sm:$0xff]
        %v630 = vld [vmem:[#allocation5 + $0x1b8] sm:$0xff]
        %v631 = vld [vmem:[#allocation5 + $0x1c0] sm:$0xff]
        %v632 = vld [vmem:[#allocation5 + $0x1c8] sm:$0xff]
        %v633 = vld [vmem:[#allocation5 + $0x1d0] sm:$0xff]
        %v634 = vld [vmem:[#allocation5 + $0x1d8] sm:$0xff]
        %v635 = vld [vmem:[#allocation5 + $0x1e0] sm:$0xff]
        %v636 = vld [vmem:[#allocation5 + $0x1e8] sm:$0xff]
        %v637 = vld [vmem:[#allocation5 + $0x1f0] sm:$0xff]
        %v638 = vld [vmem:[#allocation5 + $0x1f8] sm:$0xff]
        %v639 = vld [vmem:[#allocation5 + $0x200] sm:$0xff]
        %v640 = vld [vmem:[#allocation5 + $0x208] sm:$0xff]
        %v641 = vld [vmem:[#allocation5 + $0x210] sm:$0xff]
        %v642 = vld [vmem:[#allocation5 + $0x218] sm:$0xff]
        %v643 = vld [vmem:[#allocation5 + $0x220] sm:$0xff]
        %v644 = vld [vmem:[#allocation5 + $0x228] sm:$0xff]
        %v645 = vld [vmem:[#allocation5 + $0x230] sm:$0xff]
        %v646 = vld [vmem:[#allocation5 + $0x238] sm:$0xff]
        %v647 = vld [vmem:[#allocation5 + $0x240] sm:$0xff]
        %v648 = vld [vmem:[#allocation5 + $0x248] sm:$0xff]
        %v649 = vld [vmem:[#allocation5 + $0x250] sm:$0xff]
        %v650 = vld [vmem:[#allocation5 + $0x258] sm:$0xff]
        %v651 = vld [vmem:[#allocation5 + $0x260] sm:$0xff]
        %v652 = vld [vmem:[#allocation5 + $0x268] sm:$0xff]
        %v653 = vld [vmem:[#allocation5 + $0x270] sm:$0xff]
        %v654 = vld [vmem:[#allocation5 + $0x278] sm:$0xff]
        %v655 = vld [vmem:[#allocation5 + $0x280] sm:$0xff]
        %v656 = vld [vmem:[#allocation5 + $0x288] sm:$0xff]
        %v657 = vld [vmem:[#allocation5 + $0x290] sm:$0xff]
        %v658 = vld [vmem:[#allocation5 + $0x298] sm:$0xff]
        %v659 = vld [vmem:[#allocation5 + $0x2a0] sm:$0xff]
        %v660 = vld [vmem:[#allocation5 + $0x2a8] sm:$0xff]
        %v661 = vld [vmem:[#allocation5 + $0x2b0] sm:$0xff]
        %v662 = vld [vmem:[#allocation5 + $0x2b8] sm:$0xff]
        %v663 = vld [vmem:[#allocation5 + $0x2c0] sm:$0xff]
        %v664 = vld [vmem:[#allocation5 + $0x2c8] sm:$0xff]
        %v665 = vld [vmem:[#allocation5 + $0x2d0] sm:$0xff]
        %v666 = vld [vmem:[#allocation5 + $0x2d8] sm:$0xff]
        %v667 = vld [vmem:[#allocation5 + $0x2e0] sm:$0xff]
        %v668 = vld [vmem:[#allocation5 + $0x2e8] sm:$0xff]
        %v669 = vld [vmem:[#allocation5 + $0x2f0] sm:$0xff]
        %v670 = vld [vmem:[#allocation5 + $0x2f8] sm:$0xff]
        %v767 = vunpack.c.l.b16 %v575
        %v768 = vunpack.c.h.b16 %v575
        %v769 = vunpack.c.l.b16 %v576
        %v770 = vunpack.c.h.b16 %v576
        %v771 = vunpack.c.l.b16 %v577
        %v772 = vunpack.c.h.b16 %v577
        %v773 = vunpack.c.l.b16 %v578
        %v774 = vunpack.c.h.b16 %v578
        %v775 = vunpack.c.l.b16 %v579
        %v776 = vunpack.c.h.b16 %v579
        %v777 = vunpack.c.l.b16 %v580
        %v778 = vunpack.c.h.b16 %v580
        %v779 = vunpack.c.l.b16 %v581
        %v780 = vunpack.c.h.b16 %v581
        %v781 = vunpack.c.l.b16 %v582
        %v782 = vunpack.c.h.b16 %v582
        %v783 = vunpack.c.l.b16 %v583
        %v784 = vunpack.c.h.b16 %v583
        %v785 = vunpack.c.l.b16 %v584
        %v786 = vunpack.c.h.b16 %v584
        %v787 = vunpack.c.l.b16 %v585
        %v788 = vunpack.c.h.b16 %v585
        %v789 = vunpack.c.l.b16 %v586
        %v790 = vunpack.c.h.b16 %v586
        %v791 = vunpack.c.l.b16 %v587
        %v792 = vunpack.c.h.b16 %v587
        %v793 = vunpack.c.l.b16 %v588
        %v794 = vunpack.c.h.b16 %v588
        %v795 = vunpack.c.l.b16 %v589
        %v796 = vunpack.c.h.b16 %v589
        %v797 = vunpack.c.l.b16 %v590
        %v798 = vunpack.c.h.b16 %v590
        %v799 = vunpack.c.l.b16 %v591
        %v800 = vunpack.c.h.b16 %v591
        %v801 = vunpack.c.l.b16 %v592
        %v802 = vunpack.c.h.b16 %v592
        %v803 = vunpack.c.l.b16 %v593
        %v804 = vunpack.c.h.b16 %v593
        %v805 = vunpack.c.l.b16 %v594
        %v806 = vunpack.c.h.b16 %v594
        %v807 = vunpack.c.l.b16 %v595
        %v808 = vunpack.c.h.b16 %v595
        %v809 = vunpack.c.l.b16 %v596
        %v810 = vunpack.c.h.b16 %v596
        %v811 = vunpack.c.l.b16 %v597
        %v812 = vunpack.c.h.b16 %v597
        %v813 = vunpack.c.l.b16 %v598
        %v814 = vunpack.c.h.b16 %v598
        %v815 = vunpack.c.l.b16 %v599
        %v816 = vunpack.c.h.b16 %v599
        %v817 = vunpack.c.l.b16 %v600
        %v818 = vunpack.c.h.b16 %v600
        %v819 = vunpack.c.l.b16 %v601
        %v820 = vunpack.c.h.b16 %v601
        %v821 = vunpack.c.l.b16 %v602
        %v822 = vunpack.c.h.b16 %v602
        %v823 = vunpack.c.l.b16 %v603
        %v824 = vunpack.c.h.b16 %v603
        %v825 = vunpack.c.l.b16 %v604
        %v826 = vunpack.c.h.b16 %v604
        %v827 = vunpack.c.l.b16 %v605
        %v828 = vunpack.c.h.b16 %v605
        %v829 = vunpack.c.l.b16 %v606
        %v830 = vunpack.c.h.b16 %v606
        %v831 = vunpack.c.l.b16 %v607
        %v832 = vunpack.c.h.b16 %v607
        %v833 = vunpack.c.l.b16 %v608
        %v834 = vunpack.c.h.b16 %v608
        %v835 = vunpack.c.l.b16 %v609
        %v836 = vunpack.c.h.b16 %v609
        %v837 = vunpack.c.l.b16 %v610
        %v838 = vunpack.c.h.b16 %v610
        %v839 = vunpack.c.l.b16 %v611
        %v840 = vunpack.c.h.b16 %v611
        %v841 = vunpack.c.l.b16 %v612
        %v842 = vunpack.c.h.b16 %v612
        %v843 = vunpack.c.l.b16 %v613
        %v844 = vunpack.c.h.b16 %v613
        %v845 = vunpack.c.l.b16 %v614
        %v846 = vunpack.c.h.b16 %v614
        %v847 = vunpack.c.l.b16 %v615
        %v848 = vunpack.c.h.b16 %v615
        %v849 = vunpack.c.l.b16 %v616
        %v850 = vunpack.c.h.b16 %v616
        %v851 = vunpack.c.l.b16 %v617
        %v852 = vunpack.c.h.b16 %v617
        %v853 = vunpack.c.l.b16 %v618
        %v854 = vunpack.c.h.b16 %v618
        %v855 = vunpack.c.l.b16 %v619
        %v856 = vunpack.c.h.b16 %v619
        %v857 = vunpack.c.l.b16 %v620
        %v858 = vunpack.c.h.b16 %v620
        %v859 = vunpack.c.l.b16 %v621
        %v860 = vunpack.c.h.b16 %v621
        %v861 = vunpack.c.l.b16 %v622
        %v862 = vunpack.c.h.b16 %v622
        %v863 = vunpack.c.l.b16 %v623
        %v864 = vunpack.c.h.b16 %v623
        %v865 = vunpack.c.l.b16 %v624
        %v866 = vunpack.c.h.b16 %v624
        %v867 = vunpack.c.l.b16 %v625
        %v868 = vunpack.c.h.b16 %v625
        %v869 = vunpack.c.l.b16 %v626
        %v870 = vunpack.c.h.b16 %v626
        %v871 = vunpack.c.l.b16 %v627
        %v872 = vunpack.c.h.b16 %v627
        %v873 = vunpack.c.l.b16 %v628
        %v874 = vunpack.c.h.b16 %v628
        %v875 = vunpack.c.l.b16 %v629
        %v876 = vunpack.c.h.b16 %v629
        %v877 = vunpack.c.l.b16 %v630
        %v878 = vunpack.c.h.b16 %v630
        %v879 = vunpack.c.l.b16 %v631
        %v880 = vunpack.c.h.b16 %v631
        %v881 = vunpack.c.l.b16 %v632
        %v882 = vunpack.c.h.b16 %v632
        %v883 = vunpack.c.l.b16 %v633
        %v884 = vunpack.c.h.b16 %v633
        %v885 = vunpack.c.l.b16 %v634
        %v886 = vunpack.c.h.b16 %v634
        %v887 = vunpack.c.l.b16 %v635
        %v888 = vunpack.c.h.b16 %v635
        %v889 = vunpack.c.l.b16 %v636
        %v890 = vunpack.c.h.b16 %v636
        %v891 = vunpack.c.l.b16 %v637
        %v892 = vunpack.c.h.b16 %v637
        %v893 = vunpack.c.l.b16 %v638
        %v894 = vunpack.c.h.b16 %v638
        %v895 = vunpack.c.l.b16 %v639
        %v896 = vunpack.c.h.b16 %v639
        %v897 = vunpack.c.l.b16 %v640
        %v898 = vunpack.c.h.b16 %v640
        %v899 = vunpack.c.l.b16 %v641
        %v900 = vunpack.c.h.b16 %v641
        %v901 = vunpack.c.l.b16 %v642
        %v902 = vunpack.c.h.b16 %v642
        %v903 = vunpack.c.l.b16 %v643
        %v904 = vunpack.c.h.b16 %v643
        %v905 = vunpack.c.l.b16 %v644
        %v906 = vunpack.c.h.b16 %v644
        %v907 = vunpack.c.l.b16 %v645
        %v908 = vunpack.c.h.b16 %v645
        %v909 = vunpack.c.l.b16 %v646
        %v910 = vunpack.c.h.b16 %v646
        %v911 = vunpack.c.l.b16 %v647
        %v912 = vunpack.c.h.b16 %v647
        %v913 = vunpack.c.l.b16 %v648
        %v914 = vunpack.c.h.b16 %v648
        %v915 = vunpack.c.l.b16 %v649
        %v916 = vunpack.c.h.b16 %v649
        %v917 = vunpack.c.l.b16 %v650
        %v918 = vunpack.c.h.b16 %v650
        %v919 = vunpack.c.l.b16 %v651
        %v920 = vunpack.c.h.b16 %v651
        %v921 = vunpack.c.l.b16 %v652
        %v922 = vunpack.c.h.b16 %v652
        %v923 = vunpack.c.l.b16 %v653
        %v924 = vunpack.c.h.b16 %v653
        %v925 = vunpack.c.l.b16 %v654
        %v926 = vunpack.c.h.b16 %v654
        %v927 = vunpack.c.l.b16 %v655
        %v928 = vunpack.c.h.b16 %v655
        %v929 = vunpack.c.l.b16 %v656
        %v930 = vunpack.c.h.b16 %v656
        %v931 = vunpack.c.l.b16 %v657
        %v932 = vunpack.c.h.b16 %v657
        %v933 = vunpack.c.l.b16 %v658
        %v934 = vunpack.c.h.b16 %v658
        %v935 = vunpack.c.l.b16 %v659
        %v936 = vunpack.c.h.b16 %v659
        %v937 = vunpack.c.l.b16 %v660
        %v938 = vunpack.c.h.b16 %v660
        %v939 = vunpack.c.l.b16 %v661
        %v940 = vunpack.c.h.b16 %v661
        %v941 = vunpack.c.l.b16 %v662
        %v942 = vunpack.c.h.b16 %v662
        %v943 = vunpack.c.l.b16 %v663
        %v944 = vunpack.c.h.b16 %v663
        %v945 = vunpack.c.l.b16 %v664
        %v946 = vunpack.c.h.b16 %v664
        %v947 = vunpack.c.l.b16 %v665
        %v948 = vunpack.c.h.b16 %v665
        %v949 = vunpack.c.l.b16 %v666
        %v950 = vunpack.c.h.b16 %v666
        %v951 = vunpack.c.l.b16 %v667
        %v952 = vunpack.c.h.b16 %v667
        %v953 = vunpack.c.l.b16 %v668
        %v954 = vunpack.c.h.b16 %v668
        %v955 = vunpack.c.l.b16 %v669
        %v956 = vunpack.c.h.b16 %v669
        %v957 = vunpack.c.l.b16 %v670
        %v958 = vunpack.c.h.b16 %v670
        %v959 = vpack.c.b16 %v773, %v767
        %v960 = vpack.c.b16 %v774, %v768
        %v961 = vpack.c.b16 %v775, %v769
        %v962 = vpack.c.b16 %v776, %v770
        %v963 = vpack.c.b16 %v777, %v771
        %v964 = vpack.c.b16 %v778, %v772
        %v965 = vpack.c.b16 %v785, %v779
        %v966 = vpack.c.b16 %v786, %v780
        %v967 = vpack.c.b16 %v787, %v781
        %v968 = vpack.c.b16 %v788, %v782
        %v969 = vpack.c.b16 %v789, %v783
        %v970 = vpack.c.b16 %v790, %v784
        %v971 = vpack.c.b16 %v797, %v791
        %v972 = vpack.c.b16 %v798, %v792
        %v973 = vpack.c.b16 %v799, %v793
        %v974 = vpack.c.b16 %v800, %v794
        %v975 = vpack.c.b16 %v801, %v795
        %v976 = vpack.c.b16 %v802, %v796
        %v977 = vpack.c.b16 %v809, %v803
        %v978 = vpack.c.b16 %v810, %v804
        %v979 = vpack.c.b16 %v811, %v805
        %v980 = vpack.c.b16 %v812, %v806
        %v981 = vpack.c.b16 %v813, %v807
        %v982 = vpack.c.b16 %v814, %v808
        %v983 = vpack.c.b16 %v821, %v815
        %v984 = vpack.c.b16 %v822, %v816
        %v985 = vpack.c.b16 %v823, %v817
        %v986 = vpack.c.b16 %v824, %v818
        %v987 = vpack.c.b16 %v825, %v819
        %v988 = vpack.c.b16 %v826, %v820
        %v989 = vpack.c.b16 %v833, %v827
        %v990 = vpack.c.b16 %v834, %v828
        %v991 = vpack.c.b16 %v835, %v829
        %v992 = vpack.c.b16 %v836, %v830
        %v993 = vpack.c.b16 %v837, %v831
        %v994 = vpack.c.b16 %v838, %v832
        %v995 = vpack.c.b16 %v845, %v839
        %v996 = vpack.c.b16 %v846, %v840
        %v997 = vpack.c.b16 %v847, %v841
        %v998 = vpack.c.b16 %v848, %v842
        %v999 = vpack.c.b16 %v849, %v843
        %v1000 = vpack.c.b16 %v850, %v844
        %v1001 = vpack.c.b16 %v857, %v851
        %v1002 = vpack.c.b16 %v858, %v852
        %v1003 = vpack.c.b16 %v859, %v853
        %v1004 = vpack.c.b16 %v860, %v854
        %v1005 = vpack.c.b16 %v861, %v855
        %v1006 = vpack.c.b16 %v862, %v856
        %v1007 = vpack.c.b16 %v869, %v863
        %v1008 = vpack.c.b16 %v870, %v864
        %v1009 = vpack.c.b16 %v871, %v865
        %v1010 = vpack.c.b16 %v872, %v866
        %v1011 = vpack.c.b16 %v873, %v867
        %v1012 = vpack.c.b16 %v874, %v868
        %v1013 = vpack.c.b16 %v881, %v875
        %v1014 = vpack.c.b16 %v882, %v876
        %v1015 = vpack.c.b16 %v883, %v877
        %v1016 = vpack.c.b16 %v884, %v878
        %v1017 = vpack.c.b16 %v885, %v879
        %v1018 = vpack.c.b16 %v886, %v880
        %v1019 = vpack.c.b16 %v893, %v887
        %v1020 = vpack.c.b16 %v894, %v888
        %v1021 = vpack.c.b16 %v895, %v889
        %v1022 = vpack.c.b16 %v896, %v890
        %v1023 = vpack.c.b16 %v897, %v891
        %v1024 = vpack.c.b16 %v898, %v892
        %v1025 = vpack.c.b16 %v905, %v899
        %v1026 = vpack.c.b16 %v906, %v900
        %v1027 = vpack.c.b16 %v907, %v901
        %v1028 = vpack.c.b16 %v908, %v902
        %v1029 = vpack.c.b16 %v909, %v903
        %v1030 = vpack.c.b16 %v910, %v904
        %v1031 = vpack.c.b16 %v917, %v911
        %v1032 = vpack.c.b16 %v918, %v912
        %v1033 = vpack.c.b16 %v919, %v913
        %v1034 = vpack.c.b16 %v920, %v914
        %v1035 = vpack.c.b16 %v921, %v915
        %v1036 = vpack.c.b16 %v922, %v916
        %v1037 = vpack.c.b16 %v929, %v923
        %v1038 = vpack.c.b16 %v930, %v924
        %v1039 = vpack.c.b16 %v931, %v925
        %v1040 = vpack.c.b16 %v932, %v926
        %v1041 = vpack.c.b16 %v933, %v927
        %v1042 = vpack.c.b16 %v934, %v928
        %v1043 = vpack.c.b16 %v941, %v935
        %v1044 = vpack.c.b16 %v942, %v936
        %v1045 = vpack.c.b16 %v943, %v937
        %v1046 = vpack.c.b16 %v944, %v938
        %v1047 = vpack.c.b16 %v945, %v939
        %v1048 = vpack.c.b16 %v946, %v940
        %v1049 = vpack.c.b16 %v953, %v947
        %v1050 = vpack.c.b16 %v954, %v948
        %v1051 = vpack.c.b16 %v955, %v949
        %v1052 = vpack.c.b16 %v956, %v950
        %v1053 = vpack.c.b16 %v957, %v951
        %v1054 = vpack.c.b16 %v958, %v952
        %1151 = vmatprep.subr.bf16.mxu0 %v1002
        %1152 = vmatpush1.bf16.msra.mxu0 %v1001
        %1153 = vmatprep.subr.bf16.mxu0 %v996
        %1154 = vmatpush1.bf16.msra.mxu0 %v995
        %1155 = vmatprep.subr.bf16.mxu0 %v990
        %1156 = vmatpush1.bf16.msra.mxu0 %v989
        %1157 = vmatprep.subr.bf16.mxu0 %v984
        %1158 = vmatpush1.bf16.msra.mxu0 %v983
        %1159 = vmatprep.subr.bf16.mxu0 %v978
        %1160 = vmatpush1.bf16.msra.mxu0 %v977
        %1161 = vmatprep.subr.bf16.mxu0 %v972
        %1162 = vmatpush1.bf16.msra.mxu0 %v971
        %1163 = vmatprep.subr.bf16.mxu0 %v966
        %1164 = vmatpush1.bf16.msra.mxu0 %v965
        %1165 = vmatprep.subr.bf16.mxu0 %v960
        %1166 = vmatpush1.bf16.msra.mxu0 %v959
        %1167 = vmatprep.subr.bf16.mxu0 %v1050
        %1168 = vmatpush2.bf16.msra.mxu0 %v1049
        %1169 = vmatprep.subr.bf16.mxu0 %v1044
        %1170 = vmatpush2.bf16.msra.mxu0 %v1043
        %1171 = vmatprep.subr.bf16.mxu0 %v1038
        %1172 = vmatpush2.bf16.msra.mxu0 %v1037
        %1173 = vmatprep.subr.bf16.mxu0 %v1032
        %1174 = vmatpush2.bf16.msra.mxu0 %v1031
        %1175 = vmatprep.subr.bf16.mxu0 %v1026
        %1176 = vmatpush2.bf16.msra.mxu0 %v1025
        %1177 = vmatprep.subr.bf16.mxu0 %v1020
        %1178 = vmatpush2.bf16.msra.mxu0 %v1019
        %1179 = vmatprep.subr.bf16.mxu0 %v1014
        %1180 = vmatpush2.bf16.msra.mxu0 %v1013
        %1181 = vmatprep.subr.bf16.mxu0 %v1008
        %1182 = vmatpush2.bf16.msra.mxu0 %v1007
        %1183 = vmatprep.mubr.bf16.mxu0 %v574
        %1184 = vmatmul.mubr.bf16.gmra.mxu0 %v573
        %v1185 = vpop.f32.mrf.mxu0
        %v1186 = vadd.f32 0.0, %v1185
        %v1187 = vpop.f32.mrf.mxu0
        %v1188 = vadd.f32 0.0, %v1187
        %v1189 = vpop.f32.mrf.mxu0
        %v1190 = vadd.f32 0.0, %v1189
        %v1191 = vpop.f32.mrf.mxu0
        %v1192 = vadd.f32 0.0, %v1191
        %1193 = vdwg.mxu0
        %1194 = vmatprep.subr.bf16.mxu0 %v1004
        %1195 = vmatpush1.bf16.msra.mxu0 %v1003
        %1196 = vmatprep.subr.bf16.mxu0 %v998
        %1197 = vmatpush1.bf16.msra.mxu0 %v997
        %1198 = vmatprep.subr.bf16.mxu0 %v992
        %1199 = vmatpush1.bf16.msra.mxu0 %v991
        %1200 = vmatprep.subr.bf16.mxu0 %v986
        %1201 = vmatpush1.bf16.msra.mxu0 %v985
        %1202 = vmatprep.subr.bf16.mxu0 %v980
        %1203 = vmatpush1.bf16.msra.mxu0 %v979
        %1204 = vmatprep.subr.bf16.mxu0 %v974
        %1205 = vmatpush1.bf16.msra.mxu0 %v973
        %1206 = vmatprep.subr.bf16.mxu0 %v968
        %1207 = vmatpush1.bf16.msra.mxu0 %v967
        %1208 = vmatprep.subr.bf16.mxu0 %v962
        %1209 = vmatpush1.bf16.msra.mxu0 %v961
        %1210 = vmatprep.subr.bf16.mxu0 %v1052
        %1211 = vmatpush2.bf16.msra.mxu0 %v1051
        %1212 = vmatprep.subr.bf16.mxu0 %v1046
        %1213 = vmatpush2.bf16.msra.mxu0 %v1045
        %1214 = vmatprep.subr.bf16.mxu0 %v1040
        %1215 = vmatpush2.bf16.msra.mxu0 %v1039
        %1216 = vmatprep.subr.bf16.mxu0 %v1034
        %1217 = vmatpush2.bf16.msra.mxu0 %v1033
        %1218 = vmatprep.subr.bf16.mxu0 %v1028
        %1219 = vmatpush2.bf16.msra.mxu0 %v1027
        %1220 = vmatprep.subr.bf16.mxu0 %v1022
        %1221 = vmatpush2.bf16.msra.mxu0 %v1021
        %1222 = vmatprep.subr.bf16.mxu0 %v1016
        %1223 = vmatpush2.bf16.msra.mxu0 %v1015
        %1224 = vmatprep.subr.bf16.mxu0 %v1010
        %1225 = vmatpush2.bf16.msra.mxu0 %v1009
        %1226 = vmatprep.mubr.bf16.mxu0 %v574
        %1227 = vmatmul.mubr.bf16.gmra.mxu0 %v573
        %v1228 = vpop.f32.mrf.mxu0
        %v1229 = vadd.f32 0.0, %v1228
        %v1230 = vpop.f32.mrf.mxu0
        %v1231 = vadd.f32 0.0, %v1230
        %v1232 = vpop.f32.mrf.mxu0
        %v1233 = vadd.f32 0.0, %v1232
        %v1234 = vpop.f32.mrf.mxu0
        %v1235 = vadd.f32 0.0, %v1234
        %1236 = vdwg.mxu0
        %1237 = vmatprep.subr.bf16.mxu0 %v1006
        %1238 = vmatpush1.bf16.msra.mxu0 %v1005
        %1239 = vmatprep.subr.bf16.mxu0 %v1000
        %1240 = vmatpush1.bf16.msra.mxu0 %v999
        %1241 = vmatprep.subr.bf16.mxu0 %v994
        %1242 = vmatpush1.bf16.msra.mxu0 %v993
        %1243 = vmatprep.subr.bf16.mxu0 %v988
        %1244 = vmatpush1.bf16.msra.mxu0 %v987
        %1245 = vmatprep.subr.bf16.mxu0 %v982
        %1246 = vmatpush1.bf16.msra.mxu0 %v981
        %1247 = vmatprep.subr.bf16.mxu0 %v976
        %1248 = vmatpush1.bf16.msra.mxu0 %v975
        %1249 = vmatprep.subr.bf16.mxu0 %v970
        %1250 = vmatpush1.bf16.msra.mxu0 %v969
        %1251 = vmatprep.subr.bf16.mxu0 %v964
        %1252 = vmatpush1.bf16.msra.mxu0 %v963
        %1253 = vmatprep.subr.bf16.mxu0 %v1054
        %1254 = vmatpush2.bf16.msra.mxu0 %v1053
        %1255 = vmatprep.subr.bf16.mxu0 %v1048
        %1256 = vmatpush2.bf16.msra.mxu0 %v1047
        %1257 = vmatprep.subr.bf16.mxu0 %v1042
        %1258 = vmatpush2.bf16.msra.mxu0 %v1041
        %1259 = vmatprep.subr.bf16.mxu0 %v1036
        %1260 = vmatpush2.bf16.msra.mxu0 %v1035
        %1261 = vmatprep.subr.bf16.mxu0 %v1030
        %1262 = vmatpush2.bf16.msra.mxu0 %v1029
        %1263 = vmatprep.subr.bf16.mxu0 %v1024
        %1264 = vmatpush2.bf16.msra.mxu0 %v1023
        %1265 = vmatprep.subr.bf16.mxu0 %v1018
        %1266 = vmatpush2.bf16.msra.mxu0 %v1017
        %1267 = vmatprep.subr.bf16.mxu0 %v1012
        %1268 = vmatpush2.bf16.msra.mxu0 %v1011
        %1269 = vmatprep.mubr.bf16.mxu0 %v574
        %1270 = vmatmul.mubr.bf16.gmra.mxu0 %v573
        %v1271 = vpop.f32.mrf.mxu0
        %v1272 = vadd.f32 0.0, %v1271
        %v1273 = vpop.f32.mrf.mxu0
        %v1274 = vadd.f32 0.0, %v1273
        %v1275 = vpop.f32.mrf.mxu0
        %v1276 = vadd.f32 0.0, %v1275
        %v1277 = vpop.f32.mrf.mxu0
        %v1278 = vadd.f32 0.0, %v1277
        %1279 = vdwg.mxu0
        %v1280 = vmul.f32 %v1186, 0.125
        %v1281 = vmul.f32 %v1190, 0.125
        %v1282 = vpack.c.bf16 %v1281, %v1280
        %v1283 = vpack.c.bf16 %v1233, %v1229
        %v1284 = vpack.c.bf16 %v1276, %v1272
        %vm1285 = vcmask 523264
        %v1287 = vsel %vm1285, %v1282, 0
        %v1290 = vsel %vm1285, %v1283, 0
        %1292 = vmatprep.subr.bf16.mxu0 0
        %1293 = vmatpush1.bf16.xpose.msra.mxu0 0
        %1294 = vmatprep.subr.bf16.mxu0 0
        %1295 = vmatpush1.bf16.xpose.msra.mxu0 0
        %1296 = vmatprep.subr.bf16.mxu0 0
        %1297 = vmatpush1.bf16.xpose.msra.mxu0 0
        %1298 = vmatprep.subr.bf16.mxu0 0
        %1299 = vmatpush1.bf16.xpose.msra.mxu0 0
        %1300 = vmatprep.subr.bf16.mxu0 0
        %1301 = vmatpush1.bf16.xpose.msra.mxu0 0
        %1302 = vmatprep.subr.bf16.mxu0 0
        %1303 = vmatpush1.bf16.xpose.msra.mxu0 0
        %1304 = vmatprep.subr.bf16.mxu0 0
        %1305 = vmatpush1.bf16.xpose.msra.mxu0 0
        %1306 = vmatprep.subr.bf16.mxu0 0
        %1307 = vmatpush1.bf16.xpose.msra.mxu0 %v1290
        %1308 = vmatprep.subr.bf16.mxu0 0
        %1309 = vmatpush2.bf16.xpose.msra.mxu0 0
        %1310 = vmatprep.subr.bf16.mxu0 0
        %1311 = vmatpush2.bf16.xpose.msra.mxu0 0
        %1312 = vmatprep.subr.bf16.mxu0 0
        %1313 = vmatpush2.bf16.xpose.msra.mxu0 0
        %1314 = vmatprep.subr.bf16.mxu0 0
        %1315 = vmatpush2.bf16.xpose.msra.mxu0 0
        %1316 = vmatprep.subr.bf16.mxu0 0
        %1317 = vmatpush2.bf16.xpose.msra.mxu0 0
        %1318 = vmatprep.subr.bf16.mxu0 0
        %1319 = vmatpush2.bf16.xpose.msra.mxu0 0
        %1320 = vmatprep.subr.bf16.mxu0 0
        %1321 = vmatpush2.bf16.xpose.msra.mxu0 0
        %1322 = vmatprep.subr.bf16.mxu0 0
        %1323 = vmatpush2.bf16.xpose.msra.mxu0 0
        %1324 = vmatprep.mubr.bf16.mxu0 0
        %1325 = vmatmul.mubr.bf16.gmra.mxu0 %v1287
        %v1326 = vpop.f32.mrf.mxu0
        %v1327 = vadd.f32 0.0, %v1326
        %v1328 = vpop.f32.mrf.mxu0
        %v1329 = vpop.f32.mrf.mxu0
        %v1330 = vadd.f32 0.0, %v1329
        %v1331 = vpop.f32.mrf.mxu0
        %1332 = vdwg.mxu0
        %vm1333 = vcmask 130048
        %v1334 = vsel %vm1333, %v1327, -inf
        %1335 = vmax.xlane.f32.xlu0 %v1334
        %v1336 = vpop.xlane.xlu0 %1335
        %v1337 = vsel %vm1333, %v1330, -inf
        %1338 = vmax.xlane.f32.xlu0 %v1337
        %v1339 = vpop.xlane.xlu0 %1338
        %v1340 = vsub.f32 %v1327, %v1336
        %v1341 = vsub.f32 %v1330, %v1339
        %v1342 = vmul.f32 %v1340, 1.442695
        %v1343 = vpow.pop %v1342
        %v1344 = vmul.f32 %v1341, 1.442695
        %v1345 = vpow.pop %v1344
        %v1346 = vsel %vm1333, %v1343, 0.0
        %1347 = vadd.xlane.f32.xlu0 %v1346
        %v1348 = vpop.xlane.xlu0 %1347
        %v1349 = vsel %vm1333, %v1345, 0.0
        %1350 = vadd.xlane.f32.xlu0 %v1349
        %v1351 = vpop.xlane.xlu0 %1350
        %v1352 = vrcp.pop %v1348
        %v1353 = vrcp.pop %v1351
        %v1354 = vmul.f32 %v1343, %v1352
        %v1355 = vmul.f32 %v1345, %v1353
        %v1356 = vpack.c.bf16 %v1355, %v1354
        %v1358 = vsel %vm1333, %v1356, 0
        %1360 = vmatprep.subr.bf16.mxu0 0
        %1361 = vmatpush1.bf16.msra.mxu0 0
        %1362 = vmatprep.subr.bf16.mxu0 0
        %1363 = vmatpush1.bf16.msra.mxu0 0
        %1364 = vmatprep.subr.bf16.mxu0 0
        %1365 = vmatpush1.bf16.msra.mxu0 0
        %1366 = vmatprep.subr.bf16.mxu0 0
        %1367 = vmatpush1.bf16.msra.mxu0 0
        %1368 = vmatprep.subr.bf16.mxu0 0
        %1369 = vmatpush1.bf16.msra.mxu0 0
        %1370 = vmatprep.subr.bf16.mxu0 0
        %1371 = vmatpush1.bf16.msra.mxu0 0
        %1372 = vmatprep.subr.bf16.mxu0 0
        %1373 = vmatpush1.bf16.msra.mxu0 0
        %1374 = vmatprep.subr.bf16.mxu0 0
        %1375 = vmatpush1.bf16.msra.mxu0 %v1284
        %1376 = vmatprep.subr.bf16.mxu0 0
        %1377 = vmatpush2.bf16.msra.mxu0 0
        %1378 = vmatprep.subr.bf16.mxu0 0
        %1379 = vmatpush2.bf16.msra.mxu0 0
        %1380 = vmatprep.subr.bf16.mxu0 0
        %1381 = vmatpush2.bf16.msra.mxu0 0
        %1382 = vmatprep.subr.bf16.mxu0 0
        %1383 = vmatpush2.bf16.msra.mxu0 0
        %1384 = vmatprep.subr.bf16.mxu0 0
        %1385 = vmatpush2.bf16.msra.mxu0 0
        %1386 = vmatprep.subr.bf16.mxu0 0
        %1387 = vmatpush2.bf16.msra.mxu0 0
        %1388 = vmatprep.subr.bf16.mxu0 0
        %1389 = vmatpush2.bf16.msra.mxu0 0
        %1390 = vmatprep.subr.bf16.mxu0 0
        %1391 = vmatpush2.bf16.msra.mxu0 0
        %1392 = vmatprep.mubr.bf16.mxu0 0
        %1393 = vmatmul.mubr.bf16.gmra.mxu0 %v1358
        %v1394 = vpop.f32.mrf.mxu0
        %v1395 = vadd.f32 0.0, %v1394
        %v1396 = vpop.f32.mrf.mxu0
        %v1397 = vpop.f32.mrf.mxu0
        %v1398 = vadd.f32 0.0, %v1397
        %v1399 = vpop.f32.mrf.mxu0
        %1400 = vdwg.mxu0
        %1402 = vrot.lane.b32.xlu0 %v1282, 64
        %v1403 = vpop.permute.xlu0 %1402
        %1405 = vrot.lane.b32.xlu0 %v1283, 64
        %v1406 = vpop.permute.xlu0 %1405
        %v1408 = vsel %vm1285, %v1403, 0
        %v1411 = vsel %vm1285, %v1406, 0
        %1413 = vmatprep.subr.bf16.mxu0 0
        %1414 = vmatpush1.bf16.xpose.msra.mxu0 0
        %1415 = vmatprep.subr.bf16.mxu0 0
        %1416 = vmatpush1.bf16.xpose.msra.mxu0 0
        %1417 = vmatprep.subr.bf16.mxu0 0
        %1418 = vmatpush1.bf16.xpose.msra.mxu0 0
        %1419 = vmatprep.subr.bf16.mxu0 0
        %1420 = vmatpush1.bf16.xpose.msra.mxu0 0
        %1421 = vmatprep.subr.bf16.mxu0 0
        %1422 = vmatpush1.bf16.xpose.msra.mxu0 0
        %1423 = vmatprep.subr.bf16.mxu0 0
        %1424 = vmatpush1.bf16.xpose.msra.mxu0 0
        %1425 = vmatprep.subr.bf16.mxu0 0
        %1426 = vmatpush1.bf16.xpose.msra.mxu0 0
        %1427 = vmatprep.subr.bf16.mxu0 0
        %1428 = vmatpush1.bf16.xpose.msra.mxu0 %v1411
        %1429 = vmatprep.subr.bf16.mxu0 0
        %1430 = vmatpush2.bf16.xpose.msra.mxu0 0
        %1431 = vmatprep.subr.bf16.mxu0 0
        %1432 = vmatpush2.bf16.xpose.msra.mxu0 0
        %1433 = vmatprep.subr.bf16.mxu0 0
        %1434 = vmatpush2.bf16.xpose.msra.mxu0 0
        %1435 = vmatprep.subr.bf16.mxu0 0
        %1436 = vmatpush2.bf16.xpose.msra.mxu0 0
        %1437 = vmatprep.subr.bf16.mxu0 0
        %1438 = vmatpush2.bf16.xpose.msra.mxu0 0
        %1439 = vmatprep.subr.bf16.mxu0 0
        %1440 = vmatpush2.bf16.xpose.msra.mxu0 0
        %1441 = vmatprep.subr.bf16.mxu0 0
        %1442 = vmatpush2.bf16.xpose.msra.mxu0 0
        %1443 = vmatprep.subr.bf16.mxu0 0
        %1444 = vmatpush2.bf16.xpose.msra.mxu0 0
        %1445 = vmatprep.mubr.bf16.mxu0 0
        %1446 = vmatmul.mubr.bf16.gmra.mxu0 %v1408
        %v1447 = vpop.f32.mrf.mxu0
        %v1448 = vadd.f32 0.0, %v1447
        %v1449 = vpop.f32.mrf.mxu0
        %v1450 = vpop.f32.mrf.mxu0
        %v1451 = vadd.f32 0.0, %v1450
        %v1452 = vpop.f32.mrf.mxu0
        %1453 = vdwg.mxu0
        %v1454 = vsel %vm1333, %v1448, -inf
        %1455 = vmax.xlane.f32.xlu0 %v1454
        %v1456 = vpop.xlane.xlu0 %1455
        %v1457 = vsel %vm1333, %v1451, -inf
        %1458 = vmax.xlane.f32.xlu0 %v1457
        %v1459 = vpop.xlane.xlu0 %1458
        %v1460 = vsub.f32 %v1448, %v1456
        %v1461 = vsub.f32 %v1451, %v1459
        %v1462 = vmul.f32 %v1460, 1.442695
        %v1463 = vpow.pop %v1462
        %v1464 = vmul.f32 %v1461, 1.442695
        %v1465 = vpow.pop %v1464
        %v1466 = vsel %vm1333, %v1463, 0.0
        %1467 = vadd.xlane.f32.xlu0 %v1466
        %v1468 = vpop.xlane.xlu0 %1467
        %v1469 = vsel %vm1333, %v1465, 0.0
        %1470 = vadd.xlane.f32.xlu0 %v1469
        %v1471 = vpop.xlane.xlu0 %1470
        %v1472 = vrcp.pop %v1468
        %v1473 = vrcp.pop %v1471
        %v1474 = vmul.f32 %v1463, %v1472
        %v1475 = vmul.f32 %v1465, %v1473
        %v1476 = vpack.c.bf16 %v1475, %v1474
        %1478 = vrot.lane.b32.xlu0 %v1284, 64
        %v1479 = vpop.permute.xlu0 %1478
        %v1482 = vsel %vm1333, %v1476, 0
        %1484 = vmatprep.subr.bf16.mxu0 0
        %1485 = vmatpush1.bf16.msra.mxu0 0
        %1486 = vmatprep.subr.bf16.mxu0 0
        %1487 = vmatpush1.bf16.msra.mxu0 0
        %1488 = vmatprep.subr.bf16.mxu0 0
        %1489 = vmatpush1.bf16.msra.mxu0 0
        %1490 = vmatprep.subr.bf16.mxu0 0
        %1491 = vmatpush1.bf16.msra.mxu0 0
        %1492 = vmatprep.subr.bf16.mxu0 0
        %1493 = vmatpush1.bf16.msra.mxu0 0
        %1494 = vmatprep.subr.bf16.mxu0 0
        %1495 = vmatpush1.bf16.msra.mxu0 0
        %1496 = vmatprep.subr.bf16.mxu0 0
        %1497 = vmatpush1.bf16.msra.mxu0 0
        %1498 = vmatprep.subr.bf16.mxu0 0
        %1499 = vmatpush1.bf16.msra.mxu0 %v1479
        %1500 = vmatprep.subr.bf16.mxu0 0
        %1501 = vmatpush2.bf16.msra.mxu0 0
        %1502 = vmatprep.subr.bf16.mxu0 0
        %1503 = vmatpush2.bf16.msra.mxu0 0
        %1504 = vmatprep.subr.bf16.mxu0 0
        %1505 = vmatpush2.bf16.msra.mxu0 0
        %1506 = vmatprep.subr.bf16.mxu0 0
        %1507 = vmatpush2.bf16.msra.mxu0 0
        %1508 = vmatprep.subr.bf16.mxu0 0
        %1509 = vmatpush2.bf16.msra.mxu0 0
        %1510 = vmatprep.subr.bf16.mxu0 0
        %1511 = vmatpush2.bf16.msra.mxu0 0
        %1512 = vmatprep.subr.bf16.mxu0 0
        %1513 = vmatpush2.bf16.msra.mxu0 0
        %1514 = vmatprep.subr.bf16.mxu0 0
        %1515 = vmatpush2.bf16.msra.mxu0 0
        %1516 = vmatprep.mubr.bf16.mxu0 0
        %1517 = vmatmul.mubr.bf16.gmra.mxu0 %v1482
        %v1518 = vpop.f32.mrf.mxu0
        %v1519 = vadd.f32 0.0, %v1518
        %v1520 = vpop.f32.mrf.mxu0
        %v1521 = vpop.f32.mrf.mxu0
        %v1522 = vadd.f32 0.0, %v1521
        %v1523 = vpop.f32.mrf.mxu0
        %1524 = vdwg.mxu0
        %v1525 = vmul.f32 %v1188, 0.125
        %v1526 = vmul.f32 %v1192, 0.125
        %v1527 = vpack.c.bf16 %v1526, %v1525
        %v1528 = vpack.c.bf16 %v1235, %v1231
        %v1529 = vpack.c.bf16 %v1278, %v1274
        %v1531 = vsel %vm1285, %v1527, 0
        %v1534 = vsel %vm1285, %v1528, 0
        %1536 = vmatprep.subr.bf16.mxu0 0
        %1537 = vmatpush1.bf16.xpose.msra.mxu0 0
        %1538 = vmatprep.subr.bf16.mxu0 0
        %1539 = vmatpush1.bf16.xpose.msra.mxu0 0
        %1540 = vmatprep.subr.bf16.mxu0 0
        %1541 = vmatpush1.bf16.xpose.msra.mxu0 0
        %1542 = vmatprep.subr.bf16.mxu0 0
        %1543 = vmatpush1.bf16.xpose.msra.mxu0 0
        %1544 = vmatprep.subr.bf16.mxu0 0
        %1545 = vmatpush1.bf16.xpose.msra.mxu0 0
        %1546 = vmatprep.subr.bf16.mxu0 0
        %1547 = vmatpush1.bf16.xpose.msra.mxu0 0
        %1548 = vmatprep.subr.bf16.mxu0 0
        %1549 = vmatpush1.bf16.xpose.msra.mxu0 0
        %1550 = vmatprep.subr.bf16.mxu0 0
        %1551 = vmatpush1.bf16.xpose.msra.mxu0 %v1534
        %1552 = vmatprep.subr.bf16.mxu0 0
        %1553 = vmatpush2.bf16.xpose.msra.mxu0 0
        %1554 = vmatprep.subr.bf16.mxu0 0
        %1555 = vmatpush2.bf16.xpose.msra.mxu0 0
        %1556 = vmatprep.subr.bf16.mxu0 0
        %1557 = vmatpush2.bf16.xpose.msra.mxu0 0
        %1558 = vmatprep.subr.bf16.mxu0 0
        %1559 = vmatpush2.bf16.xpose.msra.mxu0 0
        %1560 = vmatprep.subr.bf16.mxu0 0
        %1561 = vmatpush2.bf16.xpose.msra.mxu0 0
        %1562 = vmatprep.subr.bf16.mxu0 0
        %1563 = vmatpush2.bf16.xpose.msra.mxu0 0
        %1564 = vmatprep.subr.bf16.mxu0 0
        %1565 = vmatpush2.bf16.xpose.msra.mxu0 0
        %1566 = vmatprep.subr.bf16.mxu0 0
        %1567 = vmatpush2.bf16.xpose.msra.mxu0 0
        %1568 = vmatprep.mubr.bf16.mxu0 0
        %1569 = vmatmul.mubr.bf16.gmra.mxu0 %v1531
        %v1570 = vpop.f32.mrf.mxu0
        %v1571 = vadd.f32 0.0, %v1570
        %v1572 = vpop.f32.mrf.mxu0
        %v1573 = vpop.f32.mrf.mxu0
        %v1574 = vadd.f32 0.0, %v1573
        %v1575 = vpop.f32.mrf.mxu0
        %1576 = vdwg.mxu0
        %v1577 = vsel %vm1333, %v1571, -inf
        %1578 = vmax.xlane.f32.xlu0 %v1577
        %v1579 = vpop.xlane.xlu0 %1578
        %v1580 = vsel %vm1333, %v1574, -inf
        %1581 = vmax.xlane.f32.xlu0 %v1580
        %v1582 = vpop.xlane.xlu0 %1581
        %v1583 = vsub.f32 %v1571, %v1579
        %v1584 = vsub.f32 %v1574, %v1582
        %v1585 = vmul.f32 %v1583, 1.442695
        %v1586 = vpow.pop %v1585
        %v1587 = vmul.f32 %v1584, 1.442695
        %v1588 = vpow.pop %v1587
        %v1589 = vsel %vm1333, %v1586, 0.0
        %1590 = vadd.xlane.f32.xlu0 %v1589
        %v1591 = vpop.xlane.xlu0 %1590
        %v1592 = vsel %vm1333, %v1588, 0.0
        %1593 = vadd.xlane.f32.xlu0 %v1592
        %v1594 = vpop.xlane.xlu0 %1593
        %v1595 = vrcp.pop %v1591
        %v1596 = vrcp.pop %v1594
        %v1597 = vmul.f32 %v1586, %v1595
        %v1598 = vmul.f32 %v1588, %v1596
        %v1599 = vpack.c.bf16 %v1598, %v1597
        %v1601 = vsel %vm1333, %v1599, 0
        %1603 = vmatprep.subr.bf16.mxu0 0
        %1604 = vmatpush1.bf16.msra.mxu0 0
        %1605 = vmatprep.subr.bf16.mxu0 0
        %1606 = vmatpush1.bf16.msra.mxu0 0
        %1607 = vmatprep.subr.bf16.mxu0 0
        %1608 = vmatpush1.bf16.msra.mxu0 0
        %1609 = vmatprep.subr.bf16.mxu0 0
        %1610 = vmatpush1.bf16.msra.mxu0 0
        %1611 = vmatprep.subr.bf16.mxu0 0
        %1612 = vmatpush1.bf16.msra.mxu0 0
        %1613 = vmatprep.subr.bf16.mxu0 0
        %1614 = vmatpush1.bf16.msra.mxu0 0
        %1615 = vmatprep.subr.bf16.mxu0 0
        %1616 = vmatpush1.bf16.msra.mxu0 0
        %1617 = vmatprep.subr.bf16.mxu0 0
        %1618 = vmatpush1.bf16.msra.mxu0 %v1529
        %1619 = vmatprep.subr.bf16.mxu0 0
        %1620 = vmatpush2.bf16.msra.mxu0 0
        %1621 = vmatprep.subr.bf16.mxu0 0
        %1622 = vmatpush2.bf16.msra.mxu0 0
        %1623 = vmatprep.subr.bf16.mxu0 0
        %1624 = vmatpush2.bf16.msra.mxu0 0
        %1625 = vmatprep.subr.bf16.mxu0 0
        %1626 = vmatpush2.bf16.msra.mxu0 0
        %1627 = vmatprep.subr.bf16.mxu0 0
        %1628 = vmatpush2.bf16.msra.mxu0 0
        %1629 = vmatprep.subr.bf16.mxu0 0
        %1630 = vmatpush2.bf16.msra.mxu0 0
        %1631 = vmatprep.subr.bf16.mxu0 0
        %1632 = vmatpush2.bf16.msra.mxu0 0
        %1633 = vmatprep.subr.bf16.mxu0 0
        %1634 = vmatpush2.bf16.msra.mxu0 0
        %1635 = vmatprep.mubr.bf16.mxu0 0
        %1636 = vmatmul.mubr.bf16.gmra.mxu0 %v1601
        %v1637 = vpop.f32.mrf.mxu0
        %v1638 = vadd.f32 0.0, %v1637
        %v1639 = vpop.f32.mrf.mxu0
        %v1640 = vpop.f32.mrf.mxu0
        %v1641 = vadd.f32 0.0, %v1640
        %v1642 = vpop.f32.mrf.mxu0
        %1643 = vdwg.mxu0
        %1645 = vrot.lane.b32.xlu0 %v1527, 64
        %v1646 = vpop.permute.xlu0 %1645
        %1648 = vrot.lane.b32.xlu0 %v1528, 64
        %v1649 = vpop.permute.xlu0 %1648
        %v1651 = vsel %vm1285, %v1646, 0
        %v1654 = vsel %vm1285, %v1649, 0
        %1656 = vmatprep.subr.bf16.mxu0 0
        %1657 = vmatpush1.bf16.xpose.msra.mxu0 0
        %1658 = vmatprep.subr.bf16.mxu0 0
        %1659 = vmatpush1.bf16.xpose.msra.mxu0 0
        %1660 = vmatprep.subr.bf16.mxu0 0
        %1661 = vmatpush1.bf16.xpose.msra.mxu0 0
        %1662 = vmatprep.subr.bf16.mxu0 0
        %1663 = vmatpush1.bf16.xpose.msra.mxu0 0
        %1664 = vmatprep.subr.bf16.mxu0 0
        %1665 = vmatpush1.bf16.xpose.msra.mxu0 0
        %1666 = vmatprep.subr.bf16.mxu0 0
        %1667 = vmatpush1.bf16.xpose.msra.mxu0 0
        %1668 = vmatprep.subr.bf16.mxu0 0
        %1669 = vmatpush1.bf16.xpose.msra.mxu0 0
        %1670 = vmatprep.subr.bf16.mxu0 0
        %1671 = vmatpush1.bf16.xpose.msra.mxu0 %v1654
        %1672 = vmatprep.subr.bf16.mxu0 0
        %1673 = vmatpush2.bf16.xpose.msra.mxu0 0
        %1674 = vmatprep.subr.bf16.mxu0 0
        %1675 = vmatpush2.bf16.xpose.msra.mxu0 0
        %1676 = vmatprep.subr.bf16.mxu0 0
        %1677 = vmatpush2.bf16.xpose.msra.mxu0 0
        %1678 = vmatprep.subr.bf16.mxu0 0
        %1679 = vmatpush2.bf16.xpose.msra.mxu0 0
        %1680 = vmatprep.subr.bf16.mxu0 0
        %1681 = vmatpush2.bf16.xpose.msra.mxu0 0
        %1682 = vmatprep.subr.bf16.mxu0 0
        %1683 = vmatpush2.bf16.xpose.msra.mxu0 0
        %1684 = vmatprep.subr.bf16.mxu0 0
        %1685 = vmatpush2.bf16.xpose.msra.mxu0 0
        %1686 = vmatprep.subr.bf16.mxu0 0
        %1687 = vmatpush2.bf16.xpose.msra.mxu0 0
        %1688 = vmatprep.mubr.bf16.mxu0 0
        %1689 = vmatmul.mubr.bf16.gmra.mxu0 %v1651
        %v1690 = vpop.f32.mrf.mxu0
        %v1691 = vadd.f32 0.0, %v1690
        %v1692 = vpop.f32.mrf.mxu0
        %v1693 = vpop.f32.mrf.mxu0
        %v1694 = vadd.f32 0.0, %v1693
        %v1695 = vpop.f32.mrf.mxu0
        %1696 = vdwg.mxu0
        %v1697 = vsel %vm1333, %v1691, -inf
        %1698 = vmax.xlane.f32.xlu0 %v1697
        %v1699 = vpop.xlane.xlu0 %1698
        %v1700 = vsel %vm1333, %v1694, -inf
        %1701 = vmax.xlane.f32.xlu0 %v1700
        %v1702 = vpop.xlane.xlu0 %1701
        %v1703 = vsub.f32 %v1691, %v1699
        %v1704 = vsub.f32 %v1694, %v1702
        %v1705 = vmul.f32 %v1703, 1.442695
        %v1706 = vpow.pop %v1705
        %v1707 = vmul.f32 %v1704, 1.442695
        %v1708 = vpow.pop %v1707
        %v1709 = vsel %vm1333, %v1706, 0.0
        %1710 = vadd.xlane.f32.xlu0 %v1709
        %v1711 = vpop.xlane.xlu0 %1710
        %v1712 = vsel %vm1333, %v1708, 0.0
        %1713 = vadd.xlane.f32.xlu0 %v1712
        %v1714 = vpop.xlane.xlu0 %1713
        %v1715 = vrcp.pop %v1711
        %v1716 = vrcp.pop %v1714
        %v1717 = vmul.f32 %v1706, %v1715
        %v1718 = vmul.f32 %v1708, %v1716
        %v1719 = vpack.c.bf16 %v1718, %v1717
        %1721 = vrot.lane.b32.xlu0 %v1529, 64
        %v1722 = vpop.permute.xlu0 %1721
        %v1725 = vsel %vm1333, %v1719, 0
        %1727 = vmatprep.subr.bf16.mxu0 0
        %1728 = vmatpush1.bf16.msra.mxu0 0
        %1729 = vmatprep.subr.bf16.mxu0 0
        %1730 = vmatpush1.bf16.msra.mxu0 0
        %1731 = vmatprep.subr.bf16.mxu0 0
        %1732 = vmatpush1.bf16.msra.mxu0 0
        %1733 = vmatprep.subr.bf16.mxu0 0
        %1734 = vmatpush1.bf16.msra.mxu0 0
        %1735 = vmatprep.subr.bf16.mxu0 0
        %1736 = vmatpush1.bf16.msra.mxu0 0
        %1737 = vmatprep.subr.bf16.mxu0 0
        %1738 = vmatpush1.bf16.msra.mxu0 0
        %1739 = vmatprep.subr.bf16.mxu0 0
        %1740 = vmatpush1.bf16.msra.mxu0 0
        %1741 = vmatprep.subr.bf16.mxu0 0
        %1742 = vmatpush1.bf16.msra.mxu0 %v1722
        %1743 = vmatprep.subr.bf16.mxu0 0
        %1744 = vmatpush2.bf16.msra.mxu0 0
        %1745 = vmatprep.subr.bf16.mxu0 0
        %1746 = vmatpush2.bf16.msra.mxu0 0
        %1747 = vmatprep.subr.bf16.mxu0 0
        %1748 = vmatpush2.bf16.msra.mxu0 0
        %1749 = vmatprep.subr.bf16.mxu0 0
        %1750 = vmatpush2.bf16.msra.mxu0 0
        %1751 = vmatprep.subr.bf16.mxu0 0
        %1752 = vmatpush2.bf16.msra.mxu0 0
        %1753 = vmatprep.subr.bf16.mxu0 0
        %1754 = vmatpush2.bf16.msra.mxu0 0
        %1755 = vmatprep.subr.bf16.mxu0 0
        %1756 = vmatpush2.bf16.msra.mxu0 0
        %1757 = vmatprep.subr.bf16.mxu0 0
        %1758 = vmatpush2.bf16.msra.mxu0 0
        %1759 = vmatprep.mubr.bf16.mxu0 0
        %1760 = vmatmul.mubr.bf16.gmra.mxu0 %v1725
        %v1761 = vpop.f32.mrf.mxu0
        %v1762 = vadd.f32 0.0, %v1761
        %v1763 = vpop.f32.mrf.mxu0
        %v1764 = vpop.f32.mrf.mxu0
        %v1765 = vadd.f32 0.0, %v1764
        %v1766 = vpop.f32.mrf.mxu0
        %1767 = vdwg.mxu0
        %1770 = vrot.lane.b32.xlu0 %v1519, 64
        %v1771 = vpop.permute.xlu0 %1770
        %1772 = vrot.lane.b32.xlu0 %v1522, 64
        %v1773 = vpop.permute.xlu0 %1772
        %1778 = vrot.lane.b32.xlu0 %v1762, 64
        %v1779 = vpop.permute.xlu0 %1778
        %1780 = vrot.lane.b32.xlu0 %v1765, 64
        %v1781 = vpop.permute.xlu0 %1780
        %v1784 = vsel %vm1285, %v1395, %v1771
        %v1785 = vsel %vm1285, %v1398, %v1773
        %v1786 = vsel %vm1285, %v1638, %v1779
        %v1787 = vsel %vm1285, %v1641, %v1781
        %v1788 = vpack.c.bf16 %v1785, %v1784
        %v1789 = vpack.c.bf16 %v1787, %v1786
        %v1790 = vld [vmem:[#allocation7] sm:$0xff]
        %v1791 = vld [vmem:[#allocation7 + $0x8] sm:$0xff]
        %v1792 = vld [vmem:[#allocation7 + $0x10] sm:$0xff]
        %v1793 = vld [vmem:[#allocation7 + $0x18] sm:$0xff]
        %v1794 = vld [vmem:[#allocation7 + $0x20] sm:$0xff]
        %v1795 = vld [vmem:[#allocation7 + $0x28] sm:$0xff]
        %v1796 = vld [vmem:[#allocation7 + $0x30] sm:$0xff]
        %v1797 = vld [vmem:[#allocation7 + $0x38] sm:$0xff]
        %v1798 = vld [vmem:[#allocation7 + $0x40] sm:$0xff]
        %v1799 = vld [vmem:[#allocation7 + $0x48] sm:$0xff]
        %v1800 = vld [vmem:[#allocation7 + $0x50] sm:$0xff]
        %v1801 = vld [vmem:[#allocation7 + $0x58] sm:$0xff]
        %v1802 = vld [vmem:[#allocation7 + $0x60] sm:$0xff]
        %v1803 = vld [vmem:[#allocation7 + $0x68] sm:$0xff]
        %v1804 = vld [vmem:[#allocation7 + $0x70] sm:$0xff]
        %v1805 = vld [vmem:[#allocation7 + $0x78] sm:$0xff]
        %v1806 = vld [vmem:[#allocation7 + $0x80] sm:$0xff]
        %v1807 = vld [vmem:[#allocation7 + $0x88] sm:$0xff]
        %v1808 = vld [vmem:[#allocation7 + $0x90] sm:$0xff]
        %v1809 = vld [vmem:[#allocation7 + $0x98] sm:$0xff]
        %v1810 = vld [vmem:[#allocation7 + $0xa0] sm:$0xff]
        %v1811 = vld [vmem:[#allocation7 + $0xa8] sm:$0xff]
        %v1812 = vld [vmem:[#allocation7 + $0xb0] sm:$0xff]
        %v1813 = vld [vmem:[#allocation7 + $0xb8] sm:$0xff]
        %v1814 = vld [vmem:[#allocation7 + $0xc0] sm:$0xff]
        %v1815 = vld [vmem:[#allocation7 + $0xc8] sm:$0xff]
        %v1816 = vld [vmem:[#allocation7 + $0xd0] sm:$0xff]
        %v1817 = vld [vmem:[#allocation7 + $0xd8] sm:$0xff]
        %v1818 = vld [vmem:[#allocation7 + $0xe0] sm:$0xff]
        %v1819 = vld [vmem:[#allocation7 + $0xe8] sm:$0xff]
        %v1820 = vld [vmem:[#allocation7 + $0xf0] sm:$0xff]
        %v1821 = vld [vmem:[#allocation7 + $0xf8] sm:$0xff]
        %v1854 = vunpack.c.l.b16 %v1790
        %v1855 = vunpack.c.h.b16 %v1790
        %v1856 = vunpack.c.l.b16 %v1791
        %v1857 = vunpack.c.h.b16 %v1791
        %v1858 = vunpack.c.l.b16 %v1792
        %v1859 = vunpack.c.h.b16 %v1792
        %v1860 = vunpack.c.l.b16 %v1793
        %v1861 = vunpack.c.h.b16 %v1793
        %v1862 = vunpack.c.l.b16 %v1794
        %v1863 = vunpack.c.h.b16 %v1794
        %v1864 = vunpack.c.l.b16 %v1795
        %v1865 = vunpack.c.h.b16 %v1795
        %v1866 = vunpack.c.l.b16 %v1796
        %v1867 = vunpack.c.h.b16 %v1796
        %v1868 = vunpack.c.l.b16 %v1797
        %v1869 = vunpack.c.h.b16 %v1797
        %v1870 = vunpack.c.l.b16 %v1798
        %v1871 = vunpack.c.h.b16 %v1798
        %v1872 = vunpack.c.l.b16 %v1799
        %v1873 = vunpack.c.h.b16 %v1799
        %v1874 = vunpack.c.l.b16 %v1800
        %v1875 = vunpack.c.h.b16 %v1800
        %v1876 = vunpack.c.l.b16 %v1801
        %v1877 = vunpack.c.h.b16 %v1801
        %v1878 = vunpack.c.l.b16 %v1802
        %v1879 = vunpack.c.h.b16 %v1802
        %v1880 = vunpack.c.l.b16 %v1803
        %v1881 = vunpack.c.h.b16 %v1803
        %v1882 = vunpack.c.l.b16 %v1804
        %v1883 = vunpack.c.h.b16 %v1804
        %v1884 = vunpack.c.l.b16 %v1805
        %v1885 = vunpack.c.h.b16 %v1805
        %v1886 = vunpack.c.l.b16 %v1806
        %v1887 = vunpack.c.h.b16 %v1806
        %v1888 = vunpack.c.l.b16 %v1807
        %v1889 = vunpack.c.h.b16 %v1807
        %v1890 = vunpack.c.l.b16 %v1808
        %v1891 = vunpack.c.h.b16 %v1808
        %v1892 = vunpack.c.l.b16 %v1809
        %v1893 = vunpack.c.h.b16 %v1809
        %v1894 = vunpack.c.l.b16 %v1810
        %v1895 = vunpack.c.h.b16 %v1810
        %v1896 = vunpack.c.l.b16 %v1811
        %v1897 = vunpack.c.h.b16 %v1811
        %v1898 = vunpack.c.l.b16 %v1812
        %v1899 = vunpack.c.h.b16 %v1812
        %v1900 = vunpack.c.l.b16 %v1813
        %v1901 = vunpack.c.h.b16 %v1813
        %v1902 = vunpack.c.l.b16 %v1814
        %v1903 = vunpack.c.h.b16 %v1814
        %v1904 = vunpack.c.l.b16 %v1815
        %v1905 = vunpack.c.h.b16 %v1815
        %v1906 = vunpack.c.l.b16 %v1816
        %v1907 = vunpack.c.h.b16 %v1816
        %v1908 = vunpack.c.l.b16 %v1817
        %v1909 = vunpack.c.h.b16 %v1817
        %v1910 = vunpack.c.l.b16 %v1818
        %v1911 = vunpack.c.h.b16 %v1818
        %v1912 = vunpack.c.l.b16 %v1819
        %v1913 = vunpack.c.h.b16 %v1819
        %v1914 = vunpack.c.l.b16 %v1820
        %v1915 = vunpack.c.h.b16 %v1820
        %v1916 = vunpack.c.l.b16 %v1821
        %v1917 = vunpack.c.h.b16 %v1821
        %v1918 = vpack.c.b16 %v1856, %v1854
        %v1919 = vpack.c.b16 %v1857, %v1855
        %v1920 = vpack.c.b16 %v1860, %v1858
        %v1921 = vpack.c.b16 %v1861, %v1859
        %v1922 = vpack.c.b16 %v1864, %v1862
        %v1923 = vpack.c.b16 %v1865, %v1863
        %v1924 = vpack.c.b16 %v1868, %v1866
        %v1925 = vpack.c.b16 %v1869, %v1867
        %v1926 = vpack.c.b16 %v1872, %v1870
        %v1927 = vpack.c.b16 %v1873, %v1871
        %v1928 = vpack.c.b16 %v1876, %v1874
        %v1929 = vpack.c.b16 %v1877, %v1875
        %v1930 = vpack.c.b16 %v1880, %v1878
        %v1931 = vpack.c.b16 %v1881, %v1879
        %v1932 = vpack.c.b16 %v1884, %v1882
        %v1933 = vpack.c.b16 %v1885, %v1883
        %v1934 = vpack.c.b16 %v1888, %v1886
        %v1935 = vpack.c.b16 %v1889, %v1887
        %v1936 = vpack.c.b16 %v1892, %v1890
        %v1937 = vpack.c.b16 %v1893, %v1891
        %v1938 = vpack.c.b16 %v1896, %v1894
        %v1939 = vpack.c.b16 %v1897, %v1895
        %v1940 = vpack.c.b16 %v1900, %v1898
        %v1941 = vpack.c.b16 %v1901, %v1899
        %v1942 = vpack.c.b16 %v1904, %v1902
        %v1943 = vpack.c.b16 %v1905, %v1903
        %v1944 = vpack.c.b16 %v1908, %v1906
        %v1945 = vpack.c.b16 %v1909, %v1907
        %v1946 = vpack.c.b16 %v1912, %v1910
        %v1947 = vpack.c.b16 %v1913, %v1911
        %v1948 = vpack.c.b16 %v1916, %v1914
        %v1949 = vpack.c.b16 %v1917, %v1915
        %1982 = vmatprep.subr.bf16.mxu0 %v1933
        %1983 = vmatpush1.bf16.msra.mxu0 %v1932
        %1984 = vmatprep.subr.bf16.mxu0 %v1931
        %1985 = vmatpush1.bf16.msra.mxu0 %v1930
        %1986 = vmatprep.subr.bf16.mxu0 %v1929
        %1987 = vmatpush1.bf16.msra.mxu0 %v1928
        %1988 = vmatprep.subr.bf16.mxu0 %v1927
        %1989 = vmatpush1.bf16.msra.mxu0 %v1926
        %1990 = vmatprep.subr.bf16.mxu0 %v1925
        %1991 = vmatpush1.bf16.msra.mxu0 %v1924
        %1992 = vmatprep.subr.bf16.mxu0 %v1923
        %1993 = vmatpush1.bf16.msra.mxu0 %v1922
        %1994 = vmatprep.subr.bf16.mxu0 %v1921
        %1995 = vmatpush1.bf16.msra.mxu0 %v1920
        %1996 = vmatprep.subr.bf16.mxu0 %v1919
        %1997 = vmatpush1.bf16.msra.mxu0 %v1918
        %1998 = vmatprep.subr.bf16.mxu0 %v1949
        %1999 = vmatpush2.bf16.msra.mxu0 %v1948
        %2000 = vmatprep.subr.bf16.mxu0 %v1947
        %2001 = vmatpush2.bf16.msra.mxu0 %v1946
        %2002 = vmatprep.subr.bf16.mxu0 %v1945
        %2003 = vmatpush2.bf16.msra.mxu0 %v1944
        %2004 = vmatprep.subr.bf16.mxu0 %v1943
        %2005 = vmatpush2.bf16.msra.mxu0 %v1942
        %2006 = vmatprep.subr.bf16.mxu0 %v1941
        %2007 = vmatpush2.bf16.msra.mxu0 %v1940
        %2008 = vmatprep.subr.bf16.mxu0 %v1939
        %2009 = vmatpush2.bf16.msra.mxu0 %v1938
        %2010 = vmatprep.subr.bf16.mxu0 %v1937
        %2011 = vmatpush2.bf16.msra.mxu0 %v1936
        %2012 = vmatprep.subr.bf16.mxu0 %v1935
        %2013 = vmatpush2.bf16.msra.mxu0 %v1934
        %2014 = vmatprep.mubr.bf16.mxu0 %v1789
        %2015 = vmatmul.mubr.bf16.gmra.mxu0 %v1788
        %v2016 = vpop.f32.mrf.mxu0
        %v2017 = vadd.f32 0.0, %v2016
        %v2018 = vpop.f32.mrf.mxu0
        %v2019 = vadd.f32 0.0, %v2018
        %v2020 = vpop.f32.mrf.mxu0
        %v2021 = vadd.f32 0.0, %v2020
        %v2022 = vpop.f32.mrf.mxu0
        %v2023 = vadd.f32 0.0, %v2022
        %2024 = vdwg.mxu0
        %v2025 = vadd.f32 %v504, %v2017
        %v2026 = vadd.f32 %v505, %v2019
        %v2027 = vadd.f32 %v506, %v2021
        %v2028 = vadd.f32 %v507, %v2023
        %v2029 = vld [vmem:[%s7] sm:$0x3]
        %v2031 = vlaneseq
        %v2032 = vshrl.u32 %v2031, 7
        %v2033 = vsub.s32 0, %v2032
        %v2034 = vrot.slane %v2029, %v2033
        %v2035 = vlaneseq
        %v2036 = vshrl.u32 %v2035, 7
        %v2037 = vsub.s32 1, %v2036
        %v2038 = vrot.slane %v2029, %v2037
        %v2041 = vadd.f32 %v2025, %v2034
        %v2042 = vadd.f32 %v2026, %v2038
        %v2043 = vadd.f32 %v2027, %v2034
        %v2044 = vadd.f32 %v2028, %v2038
        %v2045 = vld [vmem:[%s3] sm:$0x3]
        %v2046 = vld [vmem:[%s4] sm:$0x3]
        %v2047 = vadd.f32 %v2041, %v2042
        %2048 = vadd.xlane.f32.xlu0 %v2047
        %v2049 = vpop.xlane.xlu0 %2048
        %v2050 = vadd.f32 %v2043, %v2044
        %2051 = vadd.xlane.f32.xlu0 %v2050
        %v2052 = vpop.xlane.xlu0 %2051
        %v2053 = vmul.f32 %v2049, %v516
        %v2054 = vmul.f32 %v2052, %v516
        %v2055 = vsub.f32 %v2041, %v2053
        %v2056 = vsub.f32 %v2042, %v2053
        %v2057 = vsub.f32 %v2043, %v2054
        %v2058 = vsub.f32 %v2044, %v2054
        %v2059 = vmul.f32 %v2055, %v2055
        %v2060 = vmul.f32 %v2056, %v2056
        %v2061 = vmul.f32 %v2057, %v2057
        %v2062 = vmul.f32 %v2058, %v2058
        %v2063 = vadd.f32 %v2059, %v2060
        %2064 = vadd.xlane.f32.xlu0 %v2063
        %v2065 = vpop.xlane.xlu0 %2064
        %v2066 = vadd.f32 %v2061, %v2062
        %2067 = vadd.xlane.f32.xlu0 %v2066
        %v2068 = vpop.xlane.xlu0 %2067
        %v2069 = vmul.f32 %v2065, %v516
        %v2070 = vmul.f32 %v2068, %v516
        %v2071 = vadd.f32 %v2069, 1e-05
        %v2072 = vadd.f32 %v2070, 1e-05
        %v2073 = vrsqrt.pop %v2071
        %v2074 = vrsqrt.pop %v2072
        %v2075 = vmul.f32 %v2055, %v2073
        %v2076 = vmul.f32 %v2056, %v2073
        %v2077 = vmul.f32 %v2057, %v2074
        %v2078 = vmul.f32 %v2058, %v2074
        %v2080 = vlaneseq
        %v2081 = vshrl.u32 %v2080, 7
        %v2082 = vsub.s32 0, %v2081
        %v2083 = vrot.slane %v2045, %v2082
        %v2084 = vlaneseq
        %v2085 = vshrl.u32 %v2084, 7
        %v2086 = vsub.s32 1, %v2085
        %v2087 = vrot.slane %v2045, %v2086
        %v2090 = vmul.f32 %v2075, %v2083
        %v2091 = vmul.f32 %v2076, %v2087
        %v2092 = vmul.f32 %v2077, %v2083
        %v2093 = vmul.f32 %v2078, %v2087
        %v2095 = vlaneseq
        %v2096 = vshrl.u32 %v2095, 7
        %v2097 = vsub.s32 0, %v2096
        %v2098 = vrot.slane %v2046, %v2097
        %v2099 = vlaneseq
        %v2100 = vshrl.u32 %v2099, 7
        %v2101 = vsub.s32 1, %v2100
        %v2102 = vrot.slane %v2046, %v2101
        %v2105 = vadd.f32 %v2090, %v2098
        %v2106 = vadd.f32 %v2091, %v2102
        %v2107 = vadd.f32 %v2092, %v2098
        %v2108 = vadd.f32 %v2093, %v2102
        %v2109 = vpack.c.bf16 %v2107, %v2105
        %v2110 = vpack.c.bf16 %v2108, %v2106
        %v2111 = vld [vmem:[#allocation8] sm:$0xff]
        %v2112 = vld [vmem:[#allocation8 + $0x8] sm:$0xff]
        %v2113 = vld [vmem:[#allocation8 + $0x10] sm:$0xff]
        %v2114 = vld [vmem:[#allocation8 + $0x18] sm:$0xff]
        %v2115 = vld [vmem:[#allocation8 + $0x20] sm:$0xff]
        %v2116 = vld [vmem:[#allocation8 + $0x28] sm:$0xff]
        %v2117 = vld [vmem:[#allocation8 + $0x30] sm:$0xff]
        %v2118 = vld [vmem:[#allocation8 + $0x38] sm:$0xff]
        %v2119 = vld [vmem:[#allocation8 + $0x40] sm:$0xff]
        %v2120 = vld [vmem:[#allocation8 + $0x48] sm:$0xff]
        %v2121 = vld [vmem:[#allocation8 + $0x50] sm:$0xff]
        %v2122 = vld [vmem:[#allocation8 + $0x58] sm:$0xff]
        %v2123 = vld [vmem:[#allocation8 + $0x60] sm:$0xff]
        %v2124 = vld [vmem:[#allocation8 + $0x68] sm:$0xff]
        %v2125 = vld [vmem:[#allocation8 + $0x70] sm:$0xff]
        %v2126 = vld [vmem:[#allocation8 + $0x78] sm:$0xff]
        %v2127 = vld [vmem:[#allocation8 + $0x80] sm:$0xff]
        %v2128 = vld [vmem:[#allocation8 + $0x88] sm:$0xff]
        %v2129 = vld [vmem:[#allocation8 + $0x90] sm:$0xff]
        %v2130 = vld [vmem:[#allocation8 + $0x98] sm:$0xff]
        %v2131 = vld [vmem:[#allocation8 + $0xa0] sm:$0xff]
        %v2132 = vld [vmem:[#allocation8 + $0xa8] sm:$0xff]
        %v2133 = vld [vmem:[#allocation8 + $0xb0] sm:$0xff]
        %v2134 = vld [vmem:[#allocation8 + $0xb8] sm:$0xff]
        %v2135 = vld [vmem:[#allocation8 + $0xc0] sm:$0xff]
        %v2136 = vld [vmem:[#allocation8 + $0xc8] sm:$0xff]
        %v2137 = vld [vmem:[#allocation8 + $0xd0] sm:$0xff]
        %v2138 = vld [vmem:[#allocation8 + $0xd8] sm:$0xff]
        %v2139 = vld [vmem:[#allocation8 + $0xe0] sm:$0xff]
        %v2140 = vld [vmem:[#allocation8 + $0xe8] sm:$0xff]
        %v2141 = vld [vmem:[#allocation8 + $0xf0] sm:$0xff]
        %v2142 = vld [vmem:[#allocation8 + $0xf8] sm:$0xff]
        %v2143 = vld [vmem:[#allocation8 + $0x100] sm:$0xff]
        %v2144 = vld [vmem:[#allocation8 + $0x108] sm:$0xff]
        %v2145 = vld [vmem:[#allocation8 + $0x110] sm:$0xff]
        %v2146 = vld [vmem:[#allocation8 + $0x118] sm:$0xff]
        %v2147 = vld [vmem:[#allocation8 + $0x120] sm:$0xff]
        %v2148 = vld [vmem:[#allocation8 + $0x128] sm:$0xff]
        %v2149 = vld [vmem:[#allocation8 + $0x130] sm:$0xff]
        %v2150 = vld [vmem:[#allocation8 + $0x138] sm:$0xff]
        %v2151 = vld [vmem:[#allocation8 + $0x140] sm:$0xff]
        %v2152 = vld [vmem:[#allocation8 + $0x148] sm:$0xff]
        %v2153 = vld [vmem:[#allocation8 + $0x150] sm:$0xff]
        %v2154 = vld [vmem:[#allocation8 + $0x158] sm:$0xff]
        %v2155 = vld [vmem:[#allocation8 + $0x160] sm:$0xff]
        %v2156 = vld [vmem:[#allocation8 + $0x168] sm:$0xff]
        %v2157 = vld [vmem:[#allocation8 + $0x170] sm:$0xff]
        %v2158 = vld [vmem:[#allocation8 + $0x178] sm:$0xff]
        %v2159 = vld [vmem:[#allocation8 + $0x180] sm:$0xff]
        %v2160 = vld [vmem:[#allocation8 + $0x188] sm:$0xff]
        %v2161 = vld [vmem:[#allocation8 + $0x190] sm:$0xff]
        %v2162 = vld [vmem:[#allocation8 + $0x198] sm:$0xff]
        %v2163 = vld [vmem:[#allocation8 + $0x1a0] sm:$0xff]
        %v2164 = vld [vmem:[#allocation8 + $0x1a8] sm:$0xff]
        %v2165 = vld [vmem:[#allocation8 + $0x1b0] sm:$0xff]
        %v2166 = vld [vmem:[#allocation8 + $0x1b8] sm:$0xff]
        %v2167 = vld [vmem:[#allocation8 + $0x1c0] sm:$0xff]
        %v2168 = vld [vmem:[#allocation8 + $0x1c8] sm:$0xff]
        %v2169 = vld [vmem:[#allocation8 + $0x1d0] sm:$0xff]
        %v2170 = vld [vmem:[#allocation8 + $0x1d8] sm:$0xff]
        %v2171 = vld [vmem:[#allocation8 + $0x1e0] sm:$0xff]
        %v2172 = vld [vmem:[#allocation8 + $0x1e8] sm:$0xff]
        %v2173 = vld [vmem:[#allocation8 + $0x1f0] sm:$0xff]
        %v2174 = vld [vmem:[#allocation8 + $0x1f8] sm:$0xff]
        %v2175 = vld [vmem:[#allocation8 + $0x200] sm:$0xff]
        %v2176 = vld [vmem:[#allocation8 + $0x208] sm:$0xff]
        %v2177 = vld [vmem:[#allocation8 + $0x210] sm:$0xff]
        %v2178 = vld [vmem:[#allocation8 + $0x218] sm:$0xff]
        %v2179 = vld [vmem:[#allocation8 + $0x220] sm:$0xff]
        %v2180 = vld [vmem:[#allocation8 + $0x228] sm:$0xff]
        %v2181 = vld [vmem:[#allocation8 + $0x230] sm:$0xff]
        %v2182 = vld [vmem:[#allocation8 + $0x238] sm:$0xff]
        %v2183 = vld [vmem:[#allocation8 + $0x240] sm:$0xff]
        %v2184 = vld [vmem:[#allocation8 + $0x248] sm:$0xff]
        %v2185 = vld [vmem:[#allocation8 + $0x250] sm:$0xff]
        %v2186 = vld [vmem:[#allocation8 + $0x258] sm:$0xff]
        %v2187 = vld [vmem:[#allocation8 + $0x260] sm:$0xff]
        %v2188 = vld [vmem:[#allocation8 + $0x268] sm:$0xff]
        %v2189 = vld [vmem:[#allocation8 + $0x270] sm:$0xff]
        %v2190 = vld [vmem:[#allocation8 + $0x278] sm:$0xff]
        %v2191 = vld [vmem:[#allocation8 + $0x280] sm:$0xff]
        %v2192 = vld [vmem:[#allocation8 + $0x288] sm:$0xff]
        %v2193 = vld [vmem:[#allocation8 + $0x290] sm:$0xff]
        %v2194 = vld [vmem:[#allocation8 + $0x298] sm:$0xff]
        %v2195 = vld [vmem:[#allocation8 + $0x2a0] sm:$0xff]
        %v2196 = vld [vmem:[#allocation8 + $0x2a8] sm:$0xff]
        %v2197 = vld [vmem:[#allocation8 + $0x2b0] sm:$0xff]
        %v2198 = vld [vmem:[#allocation8 + $0x2b8] sm:$0xff]
        %v2199 = vld [vmem:[#allocation8 + $0x2c0] sm:$0xff]
        %v2200 = vld [vmem:[#allocation8 + $0x2c8] sm:$0xff]
        %v2201 = vld [vmem:[#allocation8 + $0x2d0] sm:$0xff]
        %v2202 = vld [vmem:[#allocation8 + $0x2d8] sm:$0xff]
        %v2203 = vld [vmem:[#allocation8 + $0x2e0] sm:$0xff]
        %v2204 = vld [vmem:[#allocation8 + $0x2e8] sm:$0xff]
        %v2205 = vld [vmem:[#allocation8 + $0x2f0] sm:$0xff]
        %v2206 = vld [vmem:[#allocation8 + $0x2f8] sm:$0xff]
        %v2207 = vld [vmem:[#allocation8 + $0x300] sm:$0xff]
        %v2208 = vld [vmem:[#allocation8 + $0x308] sm:$0xff]
        %v2209 = vld [vmem:[#allocation8 + $0x310] sm:$0xff]
        %v2210 = vld [vmem:[#allocation8 + $0x318] sm:$0xff]
        %v2211 = vld [vmem:[#allocation8 + $0x320] sm:$0xff]
        %v2212 = vld [vmem:[#allocation8 + $0x328] sm:$0xff]
        %v2213 = vld [vmem:[#allocation8 + $0x330] sm:$0xff]
        %v2214 = vld [vmem:[#allocation8 + $0x338] sm:$0xff]
        %v2215 = vld [vmem:[#allocation8 + $0x340] sm:$0xff]
        %v2216 = vld [vmem:[#allocation8 + $0x348] sm:$0xff]
        %v2217 = vld [vmem:[#allocation8 + $0x350] sm:$0xff]
        %v2218 = vld [vmem:[#allocation8 + $0x358] sm:$0xff]
        %v2219 = vld [vmem:[#allocation8 + $0x360] sm:$0xff]
        %v2220 = vld [vmem:[#allocation8 + $0x368] sm:$0xff]
        %v2221 = vld [vmem:[#allocation8 + $0x370] sm:$0xff]
        %v2222 = vld [vmem:[#allocation8 + $0x378] sm:$0xff]
        %v2223 = vld [vmem:[#allocation8 + $0x380] sm:$0xff]
        %v2224 = vld [vmem:[#allocation8 + $0x388] sm:$0xff]
        %v2225 = vld [vmem:[#allocation8 + $0x390] sm:$0xff]
        %v2226 = vld [vmem:[#allocation8 + $0x398] sm:$0xff]
        %v2227 = vld [vmem:[#allocation8 + $0x3a0] sm:$0xff]
        %v2228 = vld [vmem:[#allocation8 + $0x3a8] sm:$0xff]
        %v2229 = vld [vmem:[#allocation8 + $0x3b0] sm:$0xff]
        %v2230 = vld [vmem:[#allocation8 + $0x3b8] sm:$0xff]
        %v2231 = vld [vmem:[#allocation8 + $0x3c0] sm:$0xff]
        %v2232 = vld [vmem:[#allocation8 + $0x3c8] sm:$0xff]
        %v2233 = vld [vmem:[#allocation8 + $0x3d0] sm:$0xff]
        %v2234 = vld [vmem:[#allocation8 + $0x3d8] sm:$0xff]
        %v2235 = vld [vmem:[#allocation8 + $0x3e0] sm:$0xff]
        %v2236 = vld [vmem:[#allocation8 + $0x3e8] sm:$0xff]
        %v2237 = vld [vmem:[#allocation8 + $0x3f0] sm:$0xff]
        %v2238 = vld [vmem:[#allocation8 + $0x3f8] sm:$0xff]
        %v2239 = vld [vmem:[%s9] sm:$0xff]
        %v2241 = vlaneseq
        %v2242 = vshrl.u32 %v2241, 7
        %v2243 = vsub.s32 0, %v2242
        %v2244 = vrot.slane %v2239, %v2243
        %v2245 = vlaneseq
        %v2246 = vshrl.u32 %v2245, 7
        %v2247 = vsub.s32 1, %v2246
        %v2248 = vrot.slane %v2239, %v2247
        %v2249 = vlaneseq
        %v2250 = vshrl.u32 %v2249, 7
        %v2251 = vsub.s32 2, %v2250
        %v2252 = vrot.slane %v2239, %v2251
        %v2253 = vlaneseq
        %v2254 = vshrl.u32 %v2253, 7
        %v2255 = vsub.s32 3, %v2254
        %v2256 = vrot.slane %v2239, %v2255
        %v2257 = vlaneseq
        %v2258 = vshrl.u32 %v2257, 7
        %v2259 = vsub.s32 4, %v2258
        %v2260 = vrot.slane %v2239, %v2259
        %v2261 = vlaneseq
        %v2262 = vshrl.u32 %v2261, 7
        %v2263 = vsub.s32 5, %v2262
        %v2264 = vrot.slane %v2239, %v2263
        %v2265 = vlaneseq
        %v2266 = vshrl.u32 %v2265, 7
        %v2267 = vsub.s32 6, %v2266
        %v2268 = vrot.slane %v2239, %v2267
        %v2269 = vlaneseq
        %v2270 = vshrl.u32 %v2269, 7
        %v2271 = vsub.s32 7, %v2270
        %v2272 = vrot.slane %v2239, %v2271
        %v2409 = vunpack.c.l.b16 %v2111
        %v2410 = vunpack.c.h.b16 %v2111
        %v2411 = vunpack.c.l.b16 %v2112
        %v2412 = vunpack.c.h.b16 %v2112
        %v2413 = vunpack.c.l.b16 %v2113
        %v2414 = vunpack.c.h.b16 %v2113
        %v2415 = vunpack.c.l.b16 %v2114
        %v2416 = vunpack.c.h.b16 %v2114
        %v2417 = vunpack.c.l.b16 %v2115
        %v2418 = vunpack.c.h.b16 %v2115
        %v2419 = vunpack.c.l.b16 %v2116
        %v2420 = vunpack.c.h.b16 %v2116
        %v2421 = vunpack.c.l.b16 %v2117
        %v2422 = vunpack.c.h.b16 %v2117
        %v2423 = vunpack.c.l.b16 %v2118
        %v2424 = vunpack.c.h.b16 %v2118
        %v2425 = vunpack.c.l.b16 %v2119
        %v2426 = vunpack.c.h.b16 %v2119
        %v2427 = vunpack.c.l.b16 %v2120
        %v2428 = vunpack.c.h.b16 %v2120
        %v2429 = vunpack.c.l.b16 %v2121
        %v2430 = vunpack.c.h.b16 %v2121
        %v2431 = vunpack.c.l.b16 %v2122
        %v2432 = vunpack.c.h.b16 %v2122
        %v2433 = vunpack.c.l.b16 %v2123
        %v2434 = vunpack.c.h.b16 %v2123
        %v2435 = vunpack.c.l.b16 %v2124
        %v2436 = vunpack.c.h.b16 %v2124
        %v2437 = vunpack.c.l.b16 %v2125
        %v2438 = vunpack.c.h.b16 %v2125
        %v2439 = vunpack.c.l.b16 %v2126
        %v2440 = vunpack.c.h.b16 %v2126
        %v2441 = vunpack.c.l.b16 %v2127
        %v2442 = vunpack.c.h.b16 %v2127
        %v2443 = vunpack.c.l.b16 %v2128
        %v2444 = vunpack.c.h.b16 %v2128
        %v2445 = vunpack.c.l.b16 %v2129
        %v2446 = vunpack.c.h.b16 %v2129
        %v2447 = vunpack.c.l.b16 %v2130
        %v2448 = vunpack.c.h.b16 %v2130
        %v2449 = vunpack.c.l.b16 %v2131
        %v2450 = vunpack.c.h.b16 %v2131
        %v2451 = vunpack.c.l.b16 %v2132
        %v2452 = vunpack.c.h.b16 %v2132
        %v2453 = vunpack.c.l.b16 %v2133
        %v2454 = vunpack.c.h.b16 %v2133
        %v2455 = vunpack.c.l.b16 %v2134
        %v2456 = vunpack.c.h.b16 %v2134
        %v2457 = vunpack.c.l.b16 %v2135
        %v2458 = vunpack.c.h.b16 %v2135
        %v2459 = vunpack.c.l.b16 %v2136
        %v2460 = vunpack.c.h.b16 %v2136
        %v2461 = vunpack.c.l.b16 %v2137
        %v2462 = vunpack.c.h.b16 %v2137
        %v2463 = vunpack.c.l.b16 %v2138
        %v2464 = vunpack.c.h.b16 %v2138
        %v2465 = vunpack.c.l.b16 %v2139
        %v2466 = vunpack.c.h.b16 %v2139
        %v2467 = vunpack.c.l.b16 %v2140
        %v2468 = vunpack.c.h.b16 %v2140
        %v2469 = vunpack.c.l.b16 %v2141
        %v2470 = vunpack.c.h.b16 %v2141
        %v2471 = vunpack.c.l.b16 %v2142
        %v2472 = vunpack.c.h.b16 %v2142
        %v2473 = vunpack.c.l.b16 %v2143
        %v2474 = vunpack.c.h.b16 %v2143
        %v2475 = vunpack.c.l.b16 %v2144
        %v2476 = vunpack.c.h.b16 %v2144
        %v2477 = vunpack.c.l.b16 %v2145
        %v2478 = vunpack.c.h.b16 %v2145
        %v2479 = vunpack.c.l.b16 %v2146
        %v2480 = vunpack.c.h.b16 %v2146
        %v2481 = vunpack.c.l.b16 %v2147
        %v2482 = vunpack.c.h.b16 %v2147
        %v2483 = vunpack.c.l.b16 %v2148
        %v2484 = vunpack.c.h.b16 %v2148
        %v2485 = vunpack.c.l.b16 %v2149
        %v2486 = vunpack.c.h.b16 %v2149
        %v2487 = vunpack.c.l.b16 %v2150
        %v2488 = vunpack.c.h.b16 %v2150
        %v2489 = vunpack.c.l.b16 %v2151
        %v2490 = vunpack.c.h.b16 %v2151
        %v2491 = vunpack.c.l.b16 %v2152
        %v2492 = vunpack.c.h.b16 %v2152
        %v2493 = vunpack.c.l.b16 %v2153
        %v2494 = vunpack.c.h.b16 %v2153
        %v2495 = vunpack.c.l.b16 %v2154
        %v2496 = vunpack.c.h.b16 %v2154
        %v2497 = vunpack.c.l.b16 %v2155
        %v2498 = vunpack.c.h.b16 %v2155
        %v2499 = vunpack.c.l.b16 %v2156
        %v2500 = vunpack.c.h.b16 %v2156
        %v2501 = vunpack.c.l.b16 %v2157
        %v2502 = vunpack.c.h.b16 %v2157
        %v2503 = vunpack.c.l.b16 %v2158
        %v2504 = vunpack.c.h.b16 %v2158
        %v2505 = vunpack.c.l.b16 %v2159
        %v2506 = vunpack.c.h.b16 %v2159
        %v2507 = vunpack.c.l.b16 %v2160
        %v2508 = vunpack.c.h.b16 %v2160
        %v2509 = vunpack.c.l.b16 %v2161
        %v2510 = vunpack.c.h.b16 %v2161
        %v2511 = vunpack.c.l.b16 %v2162
        %v2512 = vunpack.c.h.b16 %v2162
        %v2513 = vunpack.c.l.b16 %v2163
        %v2514 = vunpack.c.h.b16 %v2163
        %v2515 = vunpack.c.l.b16 %v2164
        %v2516 = vunpack.c.h.b16 %v2164
        %v2517 = vunpack.c.l.b16 %v2165
        %v2518 = vunpack.c.h.b16 %v2165
        %v2519 = vunpack.c.l.b16 %v2166
        %v2520 = vunpack.c.h.b16 %v2166
        %v2521 = vunpack.c.l.b16 %v2167
        %v2522 = vunpack.c.h.b16 %v2167
        %v2523 = vunpack.c.l.b16 %v2168
        %v2524 = vunpack.c.h.b16 %v2168
        %v2525 = vunpack.c.l.b16 %v2169
        %v2526 = vunpack.c.h.b16 %v2169
        %v2527 = vunpack.c.l.b16 %v2170
        %v2528 = vunpack.c.h.b16 %v2170
        %v2529 = vunpack.c.l.b16 %v2171
        %v2530 = vunpack.c.h.b16 %v2171
        %v2531 = vunpack.c.l.b16 %v2172
        %v2532 = vunpack.c.h.b16 %v2172
        %v2533 = vunpack.c.l.b16 %v2173
        %v2534 = vunpack.c.h.b16 %v2173
        %v2535 = vunpack.c.l.b16 %v2174
        %v2536 = vunpack.c.h.b16 %v2174
        %v2537 = vunpack.c.l.b16 %v2175
        %v2538 = vunpack.c.h.b16 %v2175
        %v2539 = vunpack.c.l.b16 %v2176
        %v2540 = vunpack.c.h.b16 %v2176
        %v2541 = vunpack.c.l.b16 %v2177
        %v2542 = vunpack.c.h.b16 %v2177
        %v2543 = vunpack.c.l.b16 %v2178
        %v2544 = vunpack.c.h.b16 %v2178
        %v2545 = vunpack.c.l.b16 %v2179
        %v2546 = vunpack.c.h.b16 %v2179
        %v2547 = vunpack.c.l.b16 %v2180
        %v2548 = vunpack.c.h.b16 %v2180
        %v2549 = vunpack.c.l.b16 %v2181
        %v2550 = vunpack.c.h.b16 %v2181
        %v2551 = vunpack.c.l.b16 %v2182
        %v2552 = vunpack.c.h.b16 %v2182
        %v2553 = vunpack.c.l.b16 %v2183
        %v2554 = vunpack.c.h.b16 %v2183
        %v2555 = vunpack.c.l.b16 %v2184
        %v2556 = vunpack.c.h.b16 %v2184
        %v2557 = vunpack.c.l.b16 %v2185
        %v2558 = vunpack.c.h.b16 %v2185
        %v2559 = vunpack.c.l.b16 %v2186
        %v2560 = vunpack.c.h.b16 %v2186
        %v2561 = vunpack.c.l.b16 %v2187
        %v2562 = vunpack.c.h.b16 %v2187
        %v2563 = vunpack.c.l.b16 %v2188
        %v2564 = vunpack.c.h.b16 %v2188
        %v2565 = vunpack.c.l.b16 %v2189
        %v2566 = vunpack.c.h.b16 %v2189
        %v2567 = vunpack.c.l.b16 %v2190
        %v2568 = vunpack.c.h.b16 %v2190
        %v2569 = vunpack.c.l.b16 %v2191
        %v2570 = vunpack.c.h.b16 %v2191
        %v2571 = vunpack.c.l.b16 %v2192
        %v2572 = vunpack.c.h.b16 %v2192
        %v2573 = vunpack.c.l.b16 %v2193
        %v2574 = vunpack.c.h.b16 %v2193
        %v2575 = vunpack.c.l.b16 %v2194
        %v2576 = vunpack.c.h.b16 %v2194
        %v2577 = vunpack.c.l.b16 %v2195
        %v2578 = vunpack.c.h.b16 %v2195
        %v2579 = vunpack.c.l.b16 %v2196
        %v2580 = vunpack.c.h.b16 %v2196
        %v2581 = vunpack.c.l.b16 %v2197
        %v2582 = vunpack.c.h.b16 %v2197
        %v2583 = vunpack.c.l.b16 %v2198
        %v2584 = vunpack.c.h.b16 %v2198
        %v2585 = vunpack.c.l.b16 %v2199
        %v2586 = vunpack.c.h.b16 %v2199
        %v2587 = vunpack.c.l.b16 %v2200
        %v2588 = vunpack.c.h.b16 %v2200
        %v2589 = vunpack.c.l.b16 %v2201
        %v2590 = vunpack.c.h.b16 %v2201
        %v2591 = vunpack.c.l.b16 %v2202
        %v2592 = vunpack.c.h.b16 %v2202
        %v2593 = vunpack.c.l.b16 %v2203
        %v2594 = vunpack.c.h.b16 %v2203
        %v2595 = vunpack.c.l.b16 %v2204
        %v2596 = vunpack.c.h.b16 %v2204
        %v2597 = vunpack.c.l.b16 %v2205
        %v2598 = vunpack.c.h.b16 %v2205
        %v2599 = vunpack.c.l.b16 %v2206
        %v2600 = vunpack.c.h.b16 %v2206
        %v2601 = vunpack.c.l.b16 %v2207
        %v2602 = vunpack.c.h.b16 %v2207
        %v2603 = vunpack.c.l.b16 %v2208
        %v2604 = vunpack.c.h.b16 %v2208
        %v2605 = vunpack.c.l.b16 %v2209
        %v2606 = vunpack.c.h.b16 %v2209
        %v2607 = vunpack.c.l.b16 %v2210
        %v2608 = vunpack.c.h.b16 %v2210
        %v2609 = vunpack.c.l.b16 %v2211
        %v2610 = vunpack.c.h.b16 %v2211
        %v2611 = vunpack.c.l.b16 %v2212
        %v2612 = vunpack.c.h.b16 %v2212
        %v2613 = vunpack.c.l.b16 %v2213
        %v2614 = vunpack.c.h.b16 %v2213
        %v2615 = vunpack.c.l.b16 %v2214
        %v2616 = vunpack.c.h.b16 %v2214
        %v2617 = vunpack.c.l.b16 %v2215
        %v2618 = vunpack.c.h.b16 %v2215
        %v2619 = vunpack.c.l.b16 %v2216
        %v2620 = vunpack.c.h.b16 %v2216
        %v2621 = vunpack.c.l.b16 %v2217
        %v2622 = vunpack.c.h.b16 %v2217
        %v2623 = vunpack.c.l.b16 %v2218
        %v2624 = vunpack.c.h.b16 %v2218
        %v2625 = vunpack.c.l.b16 %v2219
        %v2626 = vunpack.c.h.b16 %v2219
        %v2627 = vunpack.c.l.b16 %v2220
        %v2628 = vunpack.c.h.b16 %v2220
        %v2629 = vunpack.c.l.b16 %v2221
        %v2630 = vunpack.c.h.b16 %v2221
        %v2631 = vunpack.c.l.b16 %v2222
        %v2632 = vunpack.c.h.b16 %v2222
        %v2633 = vunpack.c.l.b16 %v2223
        %v2634 = vunpack.c.h.b16 %v2223
        %v2635 = vunpack.c.l.b16 %v2224
        %v2636 = vunpack.c.h.b16 %v2224
        %v2637 = vunpack.c.l.b16 %v2225
        %v2638 = vunpack.c.h.b16 %v2225
        %v2639 = vunpack.c.l.b16 %v2226
        %v2640 = vunpack.c.h.b16 %v2226
        %v2641 = vunpack.c.l.b16 %v2227
        %v2642 = vunpack.c.h.b16 %v2227
        %v2643 = vunpack.c.l.b16 %v2228
        %v2644 = vunpack.c.h.b16 %v2228
        %v2645 = vunpack.c.l.b16 %v2229
        %v2646 = vunpack.c.h.b16 %v2229
        %v2647 = vunpack.c.l.b16 %v2230
        %v2648 = vunpack.c.h.b16 %v2230
        %v2649 = vunpack.c.l.b16 %v2231
        %v2650 = vunpack.c.h.b16 %v2231
        %v2651 = vunpack.c.l.b16 %v2232
        %v2652 = vunpack.c.h.b16 %v2232
        %v2653 = vunpack.c.l.b16 %v2233
        %v2654 = vunpack.c.h.b16 %v2233
        %v2655 = vunpack.c.l.b16 %v2234
        %v2656 = vunpack.c.h.b16 %v2234
        %v2657 = vunpack.c.l.b16 %v2235
        %v2658 = vunpack.c.h.b16 %v2235
        %v2659 = vunpack.c.l.b16 %v2236
        %v2660 = vunpack.c.h.b16 %v2236
        %v2661 = vunpack.c.l.b16 %v2237
        %v2662 = vunpack.c.h.b16 %v2237
        %v2663 = vunpack.c.l.b16 %v2238
        %v2664 = vunpack.c.h.b16 %v2238
        %v2665 = vpack.c.b16 %v2417, %v2409
        %v2666 = vpack.c.b16 %v2418, %v2410
        %v2667 = vpack.c.b16 %v2419, %v2411
        %v2668 = vpack.c.b16 %v2420, %v2412
        %v2669 = vpack.c.b16 %v2421, %v2413
        %v2670 = vpack.c.b16 %v2422, %v2414
        %v2671 = vpack.c.b16 %v2423, %v2415
        %v2672 = vpack.c.b16 %v2424, %v2416
        %v2673 = vpack.c.b16 %v2433, %v2425
        %v2674 = vpack.c.b16 %v2434, %v2426
        %v2675 = vpack.c.b16 %v2435, %v2427
        %v2676 = vpack.c.b16 %v2436, %v2428
        %v2677 = vpack.c.b16 %v2437, %v2429
        %v2678 = vpack.c.b16 %v2438, %v2430
        %v2679 = vpack.c.b16 %v2439, %v2431
        %v2680 = vpack.c.b16 %v2440, %v2432
        %v2681 = vpack.c.b16 %v2449, %v2441
        %v2682 = vpack.c.b16 %v2450, %v2442
        %v2683 = vpack.c.b16 %v2451, %v2443
        %v2684 = vpack.c.b16 %v2452, %v2444
        %v2685 = vpack.c.b16 %v2453, %v2445
        %v2686 = vpack.c.b16 %v2454, %v2446
        %v2687 = vpack.c.b16 %v2455, %v2447
        %v2688 = vpack.c.b16 %v2456, %v2448
        %v2689 = vpack.c.b16 %v2465, %v2457
        %v2690 = vpack.c.b16 %v2466, %v2458
        %v2691 = vpack.c.b16 %v2467, %v2459
        %v2692 = vpack.c.b16 %v2468, %v2460
        %v2693 = vpack.c.b16 %v2469, %v2461
        %v2694 = vpack.c.b16 %v2470, %v2462
        %v2695 = vpack.c.b16 %v2471, %v2463
        %v2696 = vpack.c.b16 %v2472, %v2464
        %v2697 = vpack.c.b16 %v2481, %v2473
        %v2698 = vpack.c.b16 %v2482, %v2474
        %v2699 = vpack.c.b16 %v2483, %v2475
        %v2700 = vpack.c.b16 %v2484, %v2476
        %v2701 = vpack.c.b16 %v2485, %v2477
        %v2702 = vpack.c.b16 %v2486, %v2478
        %v2703 = vpack.c.b16 %v2487, %v2479
        %v2704 = vpack.c.b16 %v2488, %v2480
        %v2705 = vpack.c.b16 %v2497, %v2489
        %v2706 = vpack.c.b16 %v2498, %v2490
        %v2707 = vpack.c.b16 %v2499, %v2491
        %v2708 = vpack.c.b16 %v2500, %v2492
        %v2709 = vpack.c.b16 %v2501, %v2493
        %v2710 = vpack.c.b16 %v2502, %v2494
        %v2711 = vpack.c.b16 %v2503, %v2495
        %v2712 = vpack.c.b16 %v2504, %v2496
        %v2713 = vpack.c.b16 %v2513, %v2505
        %v2714 = vpack.c.b16 %v2514, %v2506
        %v2715 = vpack.c.b16 %v2515, %v2507
        %v2716 = vpack.c.b16 %v2516, %v2508
        %v2717 = vpack.c.b16 %v2517, %v2509
        %v2718 = vpack.c.b16 %v2518, %v2510
        %v2719 = vpack.c.b16 %v2519, %v2511
        %v2720 = vpack.c.b16 %v2520, %v2512
        %v2721 = vpack.c.b16 %v2529, %v2521
        %v2722 = vpack.c.b16 %v2530, %v2522
        %v2723 = vpack.c.b16 %v2531, %v2523
        %v2724 = vpack.c.b16 %v2532, %v2524
        %v2725 = vpack.c.b16 %v2533, %v2525
        %v2726 = vpack.c.b16 %v2534, %v2526
        %v2727 = vpack.c.b16 %v2535, %v2527
        %v2728 = vpack.c.b16 %v2536, %v2528
        %v2729 = vpack.c.b16 %v2545, %v2537
        %v2730 = vpack.c.b16 %v2546, %v2538
        %v2731 = vpack.c.b16 %v2547, %v2539
        %v2732 = vpack.c.b16 %v2548, %v2540
        %v2733 = vpack.c.b16 %v2549, %v2541
        %v2734 = vpack.c.b16 %v2550, %v2542
        %v2735 = vpack.c.b16 %v2551, %v2543
        %v2736 = vpack.c.b16 %v2552, %v2544
        %v2737 = vpack.c.b16 %v2561, %v2553
        %v2738 = vpack.c.b16 %v2562, %v2554
        %v2739 = vpack.c.b16 %v2563, %v2555
        %v2740 = vpack.c.b16 %v2564, %v2556
        %v2741 = vpack.c.b16 %v2565, %v2557
        %v2742 = vpack.c.b16 %v2566, %v2558
        %v2743 = vpack.c.b16 %v2567, %v2559
        %v2744 = vpack.c.b16 %v2568, %v2560
        %v2745 = vpack.c.b16 %v2577, %v2569
        %v2746 = vpack.c.b16 %v2578, %v2570
        %v2747 = vpack.c.b16 %v2579, %v2571
        %v2748 = vpack.c.b16 %v2580, %v2572
        %v2749 = vpack.c.b16 %v2581, %v2573
        %v2750 = vpack.c.b16 %v2582, %v2574
        %v2751 = vpack.c.b16 %v2583, %v2575
        %v2752 = vpack.c.b16 %v2584, %v2576
        %v2753 = vpack.c.b16 %v2593, %v2585
        %v2754 = vpack.c.b16 %v2594, %v2586
        %v2755 = vpack.c.b16 %v2595, %v2587
        %v2756 = vpack.c.b16 %v2596, %v2588
        %v2757 = vpack.c.b16 %v2597, %v2589
        %v2758 = vpack.c.b16 %v2598, %v2590
        %v2759 = vpack.c.b16 %v2599, %v2591
        %v2760 = vpack.c.b16 %v2600, %v2592
        %v2761 = vpack.c.b16 %v2609, %v2601
        %v2762 = vpack.c.b16 %v2610, %v2602
        %v2763 = vpack.c.b16 %v2611, %v2603
        %v2764 = vpack.c.b16 %v2612, %v2604
        %v2765 = vpack.c.b16 %v2613, %v2605
        %v2766 = vpack.c.b16 %v2614, %v2606
        %v2767 = vpack.c.b16 %v2615, %v2607
        %v2768 = vpack.c.b16 %v2616, %v2608
        %v2769 = vpack.c.b16 %v2625, %v2617
        %v2770 = vpack.c.b16 %v2626, %v2618
        %v2771 = vpack.c.b16 %v2627, %v2619
        %v2772 = vpack.c.b16 %v2628, %v2620
        %v2773 = vpack.c.b16 %v2629, %v2621
        %v2774 = vpack.c.b16 %v2630, %v2622
        %v2775 = vpack.c.b16 %v2631, %v2623
        %v2776 = vpack.c.b16 %v2632, %v2624
        %v2777 = vpack.c.b16 %v2641, %v2633
        %v2778 = vpack.c.b16 %v2642, %v2634
        %v2779 = vpack.c.b16 %v2643, %v2635
        %v2780 = vpack.c.b16 %v2644, %v2636
        %v2781 = vpack.c.b16 %v2645, %v2637
        %v2782 = vpack.c.b16 %v2646, %v2638
        %v2783 = vpack.c.b16 %v2647, %v2639
        %v2784 = vpack.c.b16 %v2648, %v2640
        %v2785 = vpack.c.b16 %v2657, %v2649
        %v2786 = vpack.c.b16 %v2658, %v2650
        %v2787 = vpack.c.b16 %v2659, %v2651
        %v2788 = vpack.c.b16 %v2660, %v2652
        %v2789 = vpack.c.b16 %v2661, %v2653
        %v2790 = vpack.c.b16 %v2662, %v2654
        %v2791 = vpack.c.b16 %v2663, %v2655
        %v2792 = vpack.c.b16 %v2664, %v2656
        %2921 = vmatprep.subr.bf16.mxu0 %v2722
        %2922 = vmatpush1.bf16.msra.mxu0 %v2721
        %2923 = vmatprep.subr.bf16.mxu0 %v2714
        %2924 = vmatpush1.bf16.msra.mxu0 %v2713
        %2925 = vmatprep.subr.bf16.mxu0 %v2706
        %2926 = vmatpush1.bf16.msra.mxu0 %v2705
        %2927 = vmatprep.subr.bf16.mxu0 %v2698
        %2928 = vmatpush1.bf16.msra.mxu0 %v2697
        %2929 = vmatprep.subr.bf16.mxu0 %v2690
        %2930 = vmatpush1.bf16.msra.mxu0 %v2689
        %2931 = vmatprep.subr.bf16.mxu0 %v2682
        %2932 = vmatpush1.bf16.msra.mxu0 %v2681
        %2933 = vmatprep.subr.bf16.mxu0 %v2674
        %2934 = vmatpush1.bf16.msra.mxu0 %v2673
        %2935 = vmatprep.subr.bf16.mxu0 %v2666
        %2936 = vmatpush1.bf16.msra.mxu0 %v2665
        %2937 = vmatprep.subr.bf16.mxu0 %v2786
        %2938 = vmatpush2.bf16.msra.mxu0 %v2785
        %2939 = vmatprep.subr.bf16.mxu0 %v2778
        %2940 = vmatpush2.bf16.msra.mxu0 %v2777
        %2941 = vmatprep.subr.bf16.mxu0 %v2770
        %2942 = vmatpush2.bf16.msra.mxu0 %v2769
        %2943 = vmatprep.subr.bf16.mxu0 %v2762
        %2944 = vmatpush2.bf16.msra.mxu0 %v2761
        %2945 = vmatprep.subr.bf16.mxu0 %v2754
        %2946 = vmatpush2.bf16.msra.mxu0 %v2753
        %2947 = vmatprep.subr.bf16.mxu0 %v2746
        %2948 = vmatpush2.bf16.msra.mxu0 %v2745
        %2949 = vmatprep.subr.bf16.mxu0 %v2738
        %2950 = vmatpush2.bf16.msra.mxu0 %v2737
        %2951 = vmatprep.subr.bf16.mxu0 %v2730
        %2952 = vmatpush2.bf16.msra.mxu0 %v2729
        %2953 = vmatprep.mubr.bf16.mxu0 %v2110
        %2954 = vmatmul.mubr.bf16.gmra.mxu0 %v2109
        %v2955 = vpop.f32.mrf.mxu0
        %v2956 = vadd.f32 %v2244, %v2955
        %v2957 = vpop.f32.mrf.mxu0
        %v2958 = vadd.f32 %v2248, %v2957
        %v2959 = vpop.f32.mrf.mxu0
        %v2960 = vadd.f32 %v2244, %v2959
        %v2961 = vpop.f32.mrf.mxu0
        %v2962 = vadd.f32 %v2248, %v2961
        %2963 = vdwg.mxu0
        %2964 = vmatprep.subr.bf16.mxu0 %v2724
        %2965 = vmatpush1.bf16.msra.mxu0 %v2723
        %2966 = vmatprep.subr.bf16.mxu0 %v2716
        %2967 = vmatpush1.bf16.msra.mxu0 %v2715
        %2968 = vmatprep.subr.bf16.mxu0 %v2708
        %2969 = vmatpush1.bf16.msra.mxu0 %v2707
        %2970 = vmatprep.subr.bf16.mxu0 %v2700
        %2971 = vmatpush1.bf16.msra.mxu0 %v2699
        %2972 = vmatprep.subr.bf16.mxu0 %v2692
        %2973 = vmatpush1.bf16.msra.mxu0 %v2691
        %2974 = vmatprep.subr.bf16.mxu0 %v2684
        %2975 = vmatpush1.bf16.msra.mxu0 %v2683
        %2976 = vmatprep.subr.bf16.mxu0 %v2676
        %2977 = vmatpush1.bf16.msra.mxu0 %v2675
        %2978 = vmatprep.subr.bf16.mxu0 %v2668
        %2979 = vmatpush1.bf16.msra.mxu0 %v2667
        %2980 = vmatprep.subr.bf16.mxu0 %v2788
        %2981 = vmatpush2.bf16.msra.mxu0 %v2787
        %2982 = vmatprep.subr.bf16.mxu0 %v2780
        %2983 = vmatpush2.bf16.msra.mxu0 %v2779
        %2984 = vmatprep.subr.bf16.mxu0 %v2772
        %2985 = vmatpush2.bf16.msra.mxu0 %v2771
        %2986 = vmatprep.subr.bf16.mxu0 %v2764
        %2987 = vmatpush2.bf16.msra.mxu0 %v2763
        %2988 = vmatprep.subr.bf16.mxu0 %v2756
        %2989 = vmatpush2.bf16.msra.mxu0 %v2755
        %2990 = vmatprep.subr.bf16.mxu0 %v2748
        %2991 = vmatpush2.bf16.msra.mxu0 %v2747
        %2992 = vmatprep.subr.bf16.mxu0 %v2740
        %2993 = vmatpush2.bf16.msra.mxu0 %v2739
        %2994 = vmatprep.subr.bf16.mxu0 %v2732
        %2995 = vmatpush2.bf16.msra.mxu0 %v2731
        %2996 = vmatprep.mubr.bf16.mxu0 %v2110
        %2997 = vmatmul.mubr.bf16.gmra.mxu0 %v2109
        %v2998 = vpop.f32.mrf.mxu0
        %v2999 = vadd.f32 %v2252, %v2998
        %v3000 = vpop.f32.mrf.mxu0
        %v3001 = vadd.f32 %v2256, %v3000
        %v3002 = vpop.f32.mrf.mxu0
        %v3003 = vadd.f32 %v2252, %v3002
        %v3004 = vpop.f32.mrf.mxu0
        %v3005 = vadd.f32 %v2256, %v3004
        %3006 = vdwg.mxu0
        %3007 = vmatprep.subr.bf16.mxu0 %v2726
        %3008 = vmatpush1.bf16.msra.mxu0 %v2725
        %3009 = vmatprep.subr.bf16.mxu0 %v2718
        %3010 = vmatpush1.bf16.msra.mxu0 %v2717
        %3011 = vmatprep.subr.bf16.mxu0 %v2710
        %3012 = vmatpush1.bf16.msra.mxu0 %v2709
        %3013 = vmatprep.subr.bf16.mxu0 %v2702
        %3014 = vmatpush1.bf16.msra.mxu0 %v2701
        %3015 = vmatprep.subr.bf16.mxu0 %v2694
        %3016 = vmatpush1.bf16.msra.mxu0 %v2693
        %3017 = vmatprep.subr.bf16.mxu0 %v2686
        %3018 = vmatpush1.bf16.msra.mxu0 %v2685
        %3019 = vmatprep.subr.bf16.mxu0 %v2678
        %3020 = vmatpush1.bf16.msra.mxu0 %v2677
        %3021 = vmatprep.subr.bf16.mxu0 %v2670
        %3022 = vmatpush1.bf16.msra.mxu0 %v2669
        %3023 = vmatprep.subr.bf16.mxu0 %v2790
        %3024 = vmatpush2.bf16.msra.mxu0 %v2789
        %3025 = vmatprep.subr.bf16.mxu0 %v2782
        %3026 = vmatpush2.bf16.msra.mxu0 %v2781
        %3027 = vmatprep.subr.bf16.mxu0 %v2774
        %3028 = vmatpush2.bf16.msra.mxu0 %v2773
        %3029 = vmatprep.subr.bf16.mxu0 %v2766
        %3030 = vmatpush2.bf16.msra.mxu0 %v2765
        %3031 = vmatprep.subr.bf16.mxu0 %v2758
        %3032 = vmatpush2.bf16.msra.mxu0 %v2757
        %3033 = vmatprep.subr.bf16.mxu0 %v2750
        %3034 = vmatpush2.bf16.msra.mxu0 %v2749
        %3035 = vmatprep.subr.bf16.mxu0 %v2742
        %3036 = vmatpush2.bf16.msra.mxu0 %v2741
        %3037 = vmatprep.subr.bf16.mxu0 %v2734
        %3038 = vmatpush2.bf16.msra.mxu0 %v2733
        %3039 = vmatprep.mubr.bf16.mxu0 %v2110
        %3040 = vmatmul.mubr.bf16.gmra.mxu0 %v2109
        %v3041 = vpop.f32.mrf.mxu0
        %v3042 = vadd.f32 %v2260, %v3041
        %v3043 = vpop.f32.mrf.mxu0
        %v3044 = vadd.f32 %v2264, %v3043
        %v3045 = vpop.f32.mrf.mxu0
        %v3046 = vadd.f32 %v2260, %v3045
        %v3047 = vpop.f32.mrf.mxu0
        %v3048 = vadd.f32 %v2264, %v3047
        %3049 = vdwg.mxu0
        %3050 = vmatprep.subr.bf16.mxu0 %v2728
        %3051 = vmatpush1.bf16.msra.mxu0 %v2727
        %3052 = vmatprep.subr.bf16.mxu0 %v2720
        %3053 = vmatpush1.bf16.msra.mxu0 %v2719
        %3054 = vmatprep.subr.bf16.mxu0 %v2712
        %3055 = vmatpush1.bf16.msra.mxu0 %v2711
        %3056 = vmatprep.subr.bf16.mxu0 %v2704
        %3057 = vmatpush1.bf16.msra.mxu0 %v2703
        %3058 = vmatprep.subr.bf16.mxu0 %v2696
        %3059 = vmatpush1.bf16.msra.mxu0 %v2695
        %3060 = vmatprep.subr.bf16.mxu0 %v2688
        %3061 = vmatpush1.bf16.msra.mxu0 %v2687
        %3062 = vmatprep.subr.bf16.mxu0 %v2680
        %3063 = vmatpush1.bf16.msra.mxu0 %v2679
        %3064 = vmatprep.subr.bf16.mxu0 %v2672
        %3065 = vmatpush1.bf16.msra.mxu0 %v2671
        %3066 = vmatprep.subr.bf16.mxu0 %v2792
        %3067 = vmatpush2.bf16.msra.mxu0 %v2791
        %3068 = vmatprep.subr.bf16.mxu0 %v2784
        %3069 = vmatpush2.bf16.msra.mxu0 %v2783
        %3070 = vmatprep.subr.bf16.mxu0 %v2776
        %3071 = vmatpush2.bf16.msra.mxu0 %v2775
        %3072 = vmatprep.subr.bf16.mxu0 %v2768
        %3073 = vmatpush2.bf16.msra.mxu0 %v2767
        %3074 = vmatprep.subr.bf16.mxu0 %v2760
        %3075 = vmatpush2.bf16.msra.mxu0 %v2759
        %3076 = vmatprep.subr.bf16.mxu0 %v2752
        %3077 = vmatpush2.bf16.msra.mxu0 %v2751
        %3078 = vmatprep.subr.bf16.mxu0 %v2744
        %3079 = vmatpush2.bf16.msra.mxu0 %v2743
        %3080 = vmatprep.subr.bf16.mxu0 %v2736
        %3081 = vmatpush2.bf16.msra.mxu0 %v2735
        %3082 = vmatprep.mubr.bf16.mxu0 %v2110
        %3083 = vmatmul.mubr.bf16.gmra.mxu0 %v2109
        %v3084 = vpop.f32.mrf.mxu0
        %v3085 = vadd.f32 %v2268, %v3084
        %v3086 = vpop.f32.mrf.mxu0
        %v3087 = vadd.f32 %v2272, %v3086
        %v3088 = vpop.f32.mrf.mxu0
        %v3089 = vadd.f32 %v2268, %v3088
        %v3090 = vpop.f32.mrf.mxu0
        %v3091 = vadd.f32 %v2272, %v3090
        %3092 = vdwg.mxu0
        %v3093 = vmul.f32 %v2956, 0.5
        %v3094 = vmul.f32 %v2958, 0.5
        %v3095 = vmul.f32 %v2999, 0.5
        %v3096 = vmul.f32 %v3001, 0.5
        %v3097 = vmul.f32 %v3042, 0.5
        %v3098 = vmul.f32 %v3044, 0.5
        %v3099 = vmul.f32 %v3085, 0.5
        %v3100 = vmul.f32 %v3087, 0.5
        %v3101 = vmul.f32 %v2960, 0.5
        %v3102 = vmul.f32 %v2962, 0.5
        %v3103 = vmul.f32 %v3003, 0.5
        %v3104 = vmul.f32 %v3005, 0.5
        %v3105 = vmul.f32 %v3046, 0.5
        %v3106 = vmul.f32 %v3048, 0.5
        %v3107 = vmul.f32 %v3089, 0.5
        %v3108 = vmul.f32 %v3091, 0.5
        %v3109 = vmul.f32 %v2956, 0.044715
        %v3110 = vmul.f32 %v2958, 0.044715
        %v3111 = vmul.f32 %v2999, 0.044715
        %v3112 = vmul.f32 %v3001, 0.044715
        %v3113 = vmul.f32 %v3042, 0.044715
        %v3114 = vmul.f32 %v3044, 0.044715
        %v3115 = vmul.f32 %v3085, 0.044715
        %v3116 = vmul.f32 %v3087, 0.044715
        %v3117 = vmul.f32 %v2960, 0.044715
        %v3118 = vmul.f32 %v2962, 0.044715
        %v3119 = vmul.f32 %v3003, 0.044715
        %v3120 = vmul.f32 %v3005, 0.044715
        %v3121 = vmul.f32 %v3046, 0.044715
        %v3122 = vmul.f32 %v3048, 0.044715
        %v3123 = vmul.f32 %v3089, 0.044715
        %v3124 = vmul.f32 %v3091, 0.044715
        %v3125 = vmul.f32 %v3109, %v2956
        %v3126 = vmul.f32 %v3110, %v2958
        %v3127 = vmul.f32 %v3111, %v2999
        %v3128 = vmul.f32 %v3112, %v3001
        %v3129 = vmul.f32 %v3113, %v3042
        %v3130 = vmul.f32 %v3114, %v3044
        %v3131 = vmul.f32 %v3115, %v3085
        %v3132 = vmul.f32 %v3116, %v3087
        %v3133 = vmul.f32 %v3117, %v2960
        %v3134 = vmul.f32 %v3118, %v2962
        %v3135 = vmul.f32 %v3119, %v3003
        %v3136 = vmul.f32 %v3120, %v3005
        %v3137 = vmul.f32 %v3121, %v3046
        %v3138 = vmul.f32 %v3122, %v3048
        %v3139 = vmul.f32 %v3123, %v3089
        %v3140 = vmul.f32 %v3124, %v3091
        %v3141 = vmul.f32 %v3125, %v2956
        %v3142 = vmul.f32 %v3126, %v2958
        %v3143 = vmul.f32 %v3127, %v2999
        %v3144 = vmul.f32 %v3128, %v3001
        %v3145 = vmul.f32 %v3129, %v3042
        %v3146 = vmul.f32 %v3130, %v3044
        %v3147 = vmul.f32 %v3131, %v3085
        %v3148 = vmul.f32 %v3132, %v3087
        %v3149 = vmul.f32 %v3133, %v2960
        %v3150 = vmul.f32 %v3134, %v2962
        %v3151 = vmul.f32 %v3135, %v3003
        %v3152 = vmul.f32 %v3136, %v3005
        %v3153 = vmul.f32 %v3137, %v3046
        %v3154 = vmul.f32 %v3138, %v3048
        %v3155 = vmul.f32 %v3139, %v3089
        %v3156 = vmul.f32 %v3140, %v3091
        %v3157 = vadd.f32 %v2956, %v3141
        %v3158 = vadd.f32 %v2958, %v3142
        %v3159 = vadd.f32 %v2999, %v3143
        %v3160 = vadd.f32 %v3001, %v3144
        %v3161 = vadd.f32 %v3042, %v3145
        %v3162 = vadd.f32 %v3044, %v3146
        %v3163 = vadd.f32 %v3085, %v3147
        %v3164 = vadd.f32 %v3087, %v3148
        %v3165 = vadd.f32 %v2960, %v3149
        %v3166 = vadd.f32 %v2962, %v3150
        %v3167 = vadd.f32 %v3003, %v3151
        %v3168 = vadd.f32 %v3005, %v3152
        %v3169 = vadd.f32 %v3046, %v3153
        %v3170 = vadd.f32 %v3048, %v3154
        %v3171 = vadd.f32 %v3089, %v3155
        %v3172 = vadd.f32 %v3091, %v3156
        %v3173 = vmul.f32 %v3157, 0.7978846
        %v3174 = vmul.f32 %v3158, 0.7978846
        %v3175 = vmul.f32 %v3159, 0.7978846
        %v3176 = vmul.f32 %v3160, 0.7978846
        %v3177 = vmul.f32 %v3161, 0.7978846
        %v3178 = vmul.f32 %v3162, 0.7978846
        %v3179 = vmul.f32 %v3163, 0.7978846
        %v3180 = vmul.f32 %v3164, 0.7978846
        %v3181 = vmul.f32 %v3165, 0.7978846
        %v3182 = vmul.f32 %v3166, 0.7978846
        %v3183 = vmul.f32 %v3167, 0.7978846
        %v3184 = vmul.f32 %v3168, 0.7978846
        %v3185 = vmul.f32 %v3169, 0.7978846
        %v3186 = vmul.f32 %v3170, 0.7978846
        %v3187 = vmul.f32 %v3171, 0.7978846
        %v3188 = vmul.f32 %v3172, 0.7978846
        %v3189 = vtanh.pop %v3173
        %v3190 = vtanh.pop %v3174
        %v3191 = vtanh.pop %v3175
        %v3192 = vtanh.pop %v3176
        %v3193 = vtanh.pop %v3177
        %v3194 = vtanh.pop %v3178
        %v3195 = vtanh.pop %v3179
        %v3196 = vtanh.pop %v3180
        %v3197 = vtanh.pop %v3181
        %v3198 = vtanh.pop %v3182
        %v3199 = vtanh.pop %v3183
        %v3200 = vtanh.pop %v3184
        %v3201 = vtanh.pop %v3185
        %v3202 = vtanh.pop %v3186
        %v3203 = vtanh.pop %v3187
        %v3204 = vtanh.pop %v3188
        %v3205 = vadd.f32 %v3189, 1.0
        %v3206 = vadd.f32 %v3190, 1.0
        %v3207 = vadd.f32 %v3191, 1.0
        %v3208 = vadd.f32 %v3192, 1.0
        %v3209 = vadd.f32 %v3193, 1.0
        %v3210 = vadd.f32 %v3194, 1.0
        %v3211 = vadd.f32 %v3195, 1.0
        %v3212 = vadd.f32 %v3196, 1.0
        %v3213 = vadd.f32 %v3197, 1.0
        %v3214 = vadd.f32 %v3198, 1.0
        %v3215 = vadd.f32 %v3199, 1.0
        %v3216 = vadd.f32 %v3200, 1.0
        %v3217 = vadd.f32 %v3201, 1.0
        %v3218 = vadd.f32 %v3202, 1.0
        %v3219 = vadd.f32 %v3203, 1.0
        %v3220 = vadd.f32 %v3204, 1.0
        %v3221 = vmul.f32 %v3093, %v3205
        %v3222 = vmul.f32 %v3094, %v3206
        %v3223 = vmul.f32 %v3095, %v3207
        %v3224 = vmul.f32 %v3096, %v3208
        %v3225 = vmul.f32 %v3097, %v3209
        %v3226 = vmul.f32 %v3098, %v3210
        %v3227 = vmul.f32 %v3099, %v3211
        %v3228 = vmul.f32 %v3100, %v3212
        %v3229 = vmul.f32 %v3101, %v3213
        %v3230 = vmul.f32 %v3102, %v3214
        %v3231 = vmul.f32 %v3103, %v3215
        %v3232 = vmul.f32 %v3104, %v3216
        %v3233 = vmul.f32 %v3105, %v3217
        %v3234 = vmul.f32 %v3106, %v3218
        %v3235 = vmul.f32 %v3107, %v3219
        %v3236 = vmul.f32 %v3108, %v3220
        %v3237 = vpack.c.bf16 %v3229, %v3221
        %v3238 = vpack.c.bf16 %v3230, %v3222
        %v3239 = vpack.c.bf16 %v3231, %v3223
        %v3240 = vpack.c.bf16 %v3232, %v3224
        %v3241 = vpack.c.bf16 %v3233, %v3225
        %v3242 = vpack.c.bf16 %v3234, %v3226
        %v3243 = vpack.c.bf16 %v3235, %v3227
        %v3244 = vpack.c.bf16 %v3236, %v3228
        %v3245 = vld [vmem:[#allocation10] sm:$0xff]
        %v3246 = vld [vmem:[#allocation10 + $0x8] sm:$0xff]
        %v3247 = vld [vmem:[#allocation10 + $0x10] sm:$0xff]
        %v3248 = vld [vmem:[#allocation10 + $0x18] sm:$0xff]
        %v3249 = vld [vmem:[#allocation10 + $0x20] sm:$0xff]
        %v3250 = vld [vmem:[#allocation10 + $0x28] sm:$0xff]
        %v3251 = vld [vmem:[#allocation10 + $0x30] sm:$0xff]
        %v3252 = vld [vmem:[#allocation10 + $0x38] sm:$0xff]
        %v3253 = vld [vmem:[#allocation10 + $0x40] sm:$0xff]
        %v3254 = vld [vmem:[#allocation10 + $0x48] sm:$0xff]
        %v3255 = vld [vmem:[#allocation10 + $0x50] sm:$0xff]
        %v3256 = vld [vmem:[#allocation10 + $0x58] sm:$0xff]
        %v3257 = vld [vmem:[#allocation10 + $0x60] sm:$0xff]
        %v3258 = vld [vmem:[#allocation10 + $0x68] sm:$0xff]
        %v3259 = vld [vmem:[#allocation10 + $0x70] sm:$0xff]
        %v3260 = vld [vmem:[#allocation10 + $0x78] sm:$0xff]
        %v3261 = vld [vmem:[#allocation10 + $0x80] sm:$0xff]
        %v3262 = vld [vmem:[#allocation10 + $0x88] sm:$0xff]
        %v3263 = vld [vmem:[#allocation10 + $0x90] sm:$0xff]
        %v3264 = vld [vmem:[#allocation10 + $0x98] sm:$0xff]
        %v3265 = vld [vmem:[#allocation10 + $0xa0] sm:$0xff]
        %v3266 = vld [vmem:[#allocation10 + $0xa8] sm:$0xff]
        %v3267 = vld [vmem:[#allocation10 + $0xb0] sm:$0xff]
        %v3268 = vld [vmem:[#allocation10 + $0xb8] sm:$0xff]
        %v3269 = vld [vmem:[#allocation10 + $0xc0] sm:$0xff]
        %v3270 = vld [vmem:[#allocation10 + $0xc8] sm:$0xff]
        %v3271 = vld [vmem:[#allocation10 + $0xd0] sm:$0xff]
        %v3272 = vld [vmem:[#allocation10 + $0xd8] sm:$0xff]
        %v3273 = vld [vmem:[#allocation10 + $0xe0] sm:$0xff]
        %v3274 = vld [vmem:[#allocation10 + $0xe8] sm:$0xff]
        %v3275 = vld [vmem:[#allocation10 + $0xf0] sm:$0xff]
        %v3276 = vld [vmem:[#allocation10 + $0xf8] sm:$0xff]
        %v3277 = vld [vmem:[#allocation10 + $0x100] sm:$0xff]
        %v3278 = vld [vmem:[#allocation10 + $0x108] sm:$0xff]
        %v3279 = vld [vmem:[#allocation10 + $0x110] sm:$0xff]
        %v3280 = vld [vmem:[#allocation10 + $0x118] sm:$0xff]
        %v3281 = vld [vmem:[#allocation10 + $0x120] sm:$0xff]
        %v3282 = vld [vmem:[#allocation10 + $0x128] sm:$0xff]
        %v3283 = vld [vmem:[#allocation10 + $0x130] sm:$0xff]
        %v3284 = vld [vmem:[#allocation10 + $0x138] sm:$0xff]
        %v3285 = vld [vmem:[#allocation10 + $0x140] sm:$0xff]
        %v3286 = vld [vmem:[#allocation10 + $0x148] sm:$0xff]
        %v3287 = vld [vmem:[#allocation10 + $0x150] sm:$0xff]
        %v3288 = vld [vmem:[#allocation10 + $0x158] sm:$0xff]
        %v3289 = vld [vmem:[#allocation10 + $0x160] sm:$0xff]
        %v3290 = vld [vmem:[#allocation10 + $0x168] sm:$0xff]
        %v3291 = vld [vmem:[#allocation10 + $0x170] sm:$0xff]
        %v3292 = vld [vmem:[#allocation10 + $0x178] sm:$0xff]
        %v3293 = vld [vmem:[#allocation10 + $0x180] sm:$0xff]
        %v3294 = vld [vmem:[#allocation10 + $0x188] sm:$0xff]
        %v3295 = vld [vmem:[#allocation10 + $0x190] sm:$0xff]
        %v3296 = vld [vmem:[#allocation10 + $0x198] sm:$0xff]
        %v3297 = vld [vmem:[#allocation10 + $0x1a0] sm:$0xff]
        %v3298 = vld [vmem:[#allocation10 + $0x1a8] sm:$0xff]
        %v3299 = vld [vmem:[#allocation10 + $0x1b0] sm:$0xff]
        %v3300 = vld [vmem:[#allocation10 + $0x1b8] sm:$0xff]
        %v3301 = vld [vmem:[#allocation10 + $0x1c0] sm:$0xff]
        %v3302 = vld [vmem:[#allocation10 + $0x1c8] sm:$0xff]
        %v3303 = vld [vmem:[#allocation10 + $0x1d0] sm:$0xff]
        %v3304 = vld [vmem:[#allocation10 + $0x1d8] sm:$0xff]
        %v3305 = vld [vmem:[#allocation10 + $0x1e0] sm:$0xff]
        %v3306 = vld [vmem:[#allocation10 + $0x1e8] sm:$0xff]
        %v3307 = vld [vmem:[#allocation10 + $0x1f0] sm:$0xff]
        %v3308 = vld [vmem:[#allocation10 + $0x1f8] sm:$0xff]
        %v3309 = vld [vmem:[#allocation10 + $0x200] sm:$0xff]
        %v3310 = vld [vmem:[#allocation10 + $0x208] sm:$0xff]
        %v3311 = vld [vmem:[#allocation10 + $0x210] sm:$0xff]
        %v3312 = vld [vmem:[#allocation10 + $0x218] sm:$0xff]
        %v3313 = vld [vmem:[#allocation10 + $0x220] sm:$0xff]
        %v3314 = vld [vmem:[#allocation10 + $0x228] sm:$0xff]
        %v3315 = vld [vmem:[#allocation10 + $0x230] sm:$0xff]
        %v3316 = vld [vmem:[#allocation10 + $0x238] sm:$0xff]
        %v3317 = vld [vmem:[#allocation10 + $0x240] sm:$0xff]
        %v3318 = vld [vmem:[#allocation10 + $0x248] sm:$0xff]
        %v3319 = vld [vmem:[#allocation10 + $0x250] sm:$0xff]
        %v3320 = vld [vmem:[#allocation10 + $0x258] sm:$0xff]
        %v3321 = vld [vmem:[#allocation10 + $0x260] sm:$0xff]
        %v3322 = vld [vmem:[#allocation10 + $0x268] sm:$0xff]
        %v3323 = vld [vmem:[#allocation10 + $0x270] sm:$0xff]
        %v3324 = vld [vmem:[#allocation10 + $0x278] sm:$0xff]
        %v3325 = vld [vmem:[#allocation10 + $0x280] sm:$0xff]
        %v3326 = vld [vmem:[#allocation10 + $0x288] sm:$0xff]
        %v3327 = vld [vmem:[#allocation10 + $0x290] sm:$0xff]
        %v3328 = vld [vmem:[#allocation10 + $0x298] sm:$0xff]
        %v3329 = vld [vmem:[#allocation10 + $0x2a0] sm:$0xff]
        %v3330 = vld [vmem:[#allocation10 + $0x2a8] sm:$0xff]
        %v3331 = vld [vmem:[#allocation10 + $0x2b0] sm:$0xff]
        %v3332 = vld [vmem:[#allocation10 + $0x2b8] sm:$0xff]
        %v3333 = vld [vmem:[#allocation10 + $0x2c0] sm:$0xff]
        %v3334 = vld [vmem:[#allocation10 + $0x2c8] sm:$0xff]
        %v3335 = vld [vmem:[#allocation10 + $0x2d0] sm:$0xff]
        %v3336 = vld [vmem:[#allocation10 + $0x2d8] sm:$0xff]
        %v3337 = vld [vmem:[#allocation10 + $0x2e0] sm:$0xff]
        %v3338 = vld [vmem:[#allocation10 + $0x2e8] sm:$0xff]
        %v3339 = vld [vmem:[#allocation10 + $0x2f0] sm:$0xff]
        %v3340 = vld [vmem:[#allocation10 + $0x2f8] sm:$0xff]
        %v3341 = vld [vmem:[#allocation10 + $0x300] sm:$0xff]
        %v3342 = vld [vmem:[#allocation10 + $0x308] sm:$0xff]
        %v3343 = vld [vmem:[#allocation10 + $0x310] sm:$0xff]
        %v3344 = vld [vmem:[#allocation10 + $0x318] sm:$0xff]
        %v3345 = vld [vmem:[#allocation10 + $0x320] sm:$0xff]
        %v3346 = vld [vmem:[#allocation10 + $0x328] sm:$0xff]
        %v3347 = vld [vmem:[#allocation10 + $0x330] sm:$0xff]
        %v3348 = vld [vmem:[#allocation10 + $0x338] sm:$0xff]
        %v3349 = vld [vmem:[#allocation10 + $0x340] sm:$0xff]
        %v3350 = vld [vmem:[#allocation10 + $0x348] sm:$0xff]
        %v3351 = vld [vmem:[#allocation10 + $0x350] sm:$0xff]
        %v3352 = vld [vmem:[#allocation10 + $0x358] sm:$0xff]
        %v3353 = vld [vmem:[#allocation10 + $0x360] sm:$0xff]
        %v3354 = vld [vmem:[#allocation10 + $0x368] sm:$0xff]
        %v3355 = vld [vmem:[#allocation10 + $0x370] sm:$0xff]
        %v3356 = vld [vmem:[#allocation10 + $0x378] sm:$0xff]
        %v3357 = vld [vmem:[#allocation10 + $0x380] sm:$0xff]
        %v3358 = vld [vmem:[#allocation10 + $0x388] sm:$0xff]
        %v3359 = vld [vmem:[#allocation10 + $0x390] sm:$0xff]
        %v3360 = vld [vmem:[#allocation10 + $0x398] sm:$0xff]
        %v3361 = vld [vmem:[#allocation10 + $0x3a0] sm:$0xff]
        %v3362 = vld [vmem:[#allocation10 + $0x3a8] sm:$0xff]
        %v3363 = vld [vmem:[#allocation10 + $0x3b0] sm:$0xff]
        %v3364 = vld [vmem:[#allocation10 + $0x3b8] sm:$0xff]
        %v3365 = vld [vmem:[#allocation10 + $0x3c0] sm:$0xff]
        %v3366 = vld [vmem:[#allocation10 + $0x3c8] sm:$0xff]
        %v3367 = vld [vmem:[#allocation10 + $0x3d0] sm:$0xff]
        %v3368 = vld [vmem:[#allocation10 + $0x3d8] sm:$0xff]
        %v3369 = vld [vmem:[#allocation10 + $0x3e0] sm:$0xff]
        %v3370 = vld [vmem:[#allocation10 + $0x3e8] sm:$0xff]
        %v3371 = vld [vmem:[#allocation10 + $0x3f0] sm:$0xff]
        %v3372 = vld [vmem:[#allocation10 + $0x3f8] sm:$0xff]
        %v3501 = vunpack.c.l.b16 %v3245
        %v3502 = vunpack.c.h.b16 %v3245
        %v3503 = vunpack.c.l.b16 %v3246
        %v3504 = vunpack.c.h.b16 %v3246
        %v3505 = vunpack.c.l.b16 %v3247
        %v3506 = vunpack.c.h.b16 %v3247
        %v3507 = vunpack.c.l.b16 %v3248
        %v3508 = vunpack.c.h.b16 %v3248
        %v3509 = vunpack.c.l.b16 %v3249
        %v3510 = vunpack.c.h.b16 %v3249
        %v3511 = vunpack.c.l.b16 %v3250
        %v3512 = vunpack.c.h.b16 %v3250
        %v3513 = vunpack.c.l.b16 %v3251
        %v3514 = vunpack.c.h.b16 %v3251
        %v3515 = vunpack.c.l.b16 %v3252
        %v3516 = vunpack.c.h.b16 %v3252
        %v3517 = vunpack.c.l.b16 %v3253
        %v3518 = vunpack.c.h.b16 %v3253
        %v3519 = vunpack.c.l.b16 %v3254
        %v3520 = vunpack.c.h.b16 %v3254
        %v3521 = vunpack.c.l.b16 %v3255
        %v3522 = vunpack.c.h.b16 %v3255
        %v3523 = vunpack.c.l.b16 %v3256
        %v3524 = vunpack.c.h.b16 %v3256
        %v3525 = vunpack.c.l.b16 %v3257
        %v3526 = vunpack.c.h.b16 %v3257
        %v3527 = vunpack.c.l.b16 %v3258
        %v3528 = vunpack.c.h.b16 %v3258
        %v3529 = vunpack.c.l.b16 %v3259
        %v3530 = vunpack.c.h.b16 %v3259
        %v3531 = vunpack.c.l.b16 %v3260
        %v3532 = vunpack.c.h.b16 %v3260
        %v3533 = vunpack.c.l.b16 %v3261
        %v3534 = vunpack.c.h.b16 %v3261
        %v3535 = vunpack.c.l.b16 %v3262
        %v3536 = vunpack.c.h.b16 %v3262
        %v3537 = vunpack.c.l.b16 %v3263
        %v3538 = vunpack.c.h.b16 %v3263
        %v3539 = vunpack.c.l.b16 %v3264
        %v3540 = vunpack.c.h.b16 %v3264
        %v3541 = vunpack.c.l.b16 %v3265
        %v3542 = vunpack.c.h.b16 %v3265
        %v3543 = vunpack.c.l.b16 %v3266
        %v3544 = vunpack.c.h.b16 %v3266
        %v3545 = vunpack.c.l.b16 %v3267
        %v3546 = vunpack.c.h.b16 %v3267
        %v3547 = vunpack.c.l.b16 %v3268
        %v3548 = vunpack.c.h.b16 %v3268
        %v3549 = vunpack.c.l.b16 %v3269
        %v3550 = vunpack.c.h.b16 %v3269
        %v3551 = vunpack.c.l.b16 %v3270
        %v3552 = vunpack.c.h.b16 %v3270
        %v3553 = vunpack.c.l.b16 %v3271
        %v3554 = vunpack.c.h.b16 %v3271
        %v3555 = vunpack.c.l.b16 %v3272
        %v3556 = vunpack.c.h.b16 %v3272
        %v3557 = vunpack.c.l.b16 %v3273
        %v3558 = vunpack.c.h.b16 %v3273
        %v3559 = vunpack.c.l.b16 %v3274
        %v3560 = vunpack.c.h.b16 %v3274
        %v3561 = vunpack.c.l.b16 %v3275
        %v3562 = vunpack.c.h.b16 %v3275
        %v3563 = vunpack.c.l.b16 %v3276
        %v3564 = vunpack.c.h.b16 %v3276
        %v3565 = vunpack.c.l.b16 %v3277
        %v3566 = vunpack.c.h.b16 %v3277
        %v3567 = vunpack.c.l.b16 %v3278
        %v3568 = vunpack.c.h.b16 %v3278
        %v3569 = vunpack.c.l.b16 %v3279
        %v3570 = vunpack.c.h.b16 %v3279
        %v3571 = vunpack.c.l.b16 %v3280
        %v3572 = vunpack.c.h.b16 %v3280
        %v3573 = vunpack.c.l.b16 %v3281
        %v3574 = vunpack.c.h.b16 %v3281
        %v3575 = vunpack.c.l.b16 %v3282
        %v3576 = vunpack.c.h.b16 %v3282
        %v3577 = vunpack.c.l.b16 %v3283
        %v3578 = vunpack.c.h.b16 %v3283
        %v3579 = vunpack.c.l.b16 %v3284
        %v3580 = vunpack.c.h.b16 %v3284
        %v3581 = vunpack.c.l.b16 %v3285
        %v3582 = vunpack.c.h.b16 %v3285
        %v3583 = vunpack.c.l.b16 %v3286
        %v3584 = vunpack.c.h.b16 %v3286
        %v3585 = vunpack.c.l.b16 %v3287
        %v3586 = vunpack.c.h.b16 %v3287
        %v3587 = vunpack.c.l.b16 %v3288
        %v3588 = vunpack.c.h.b16 %v3288
        %v3589 = vunpack.c.l.b16 %v3289
        %v3590 = vunpack.c.h.b16 %v3289
        %v3591 = vunpack.c.l.b16 %v3290
        %v3592 = vunpack.c.h.b16 %v3290
        %v3593 = vunpack.c.l.b16 %v3291
        %v3594 = vunpack.c.h.b16 %v3291
        %v3595 = vunpack.c.l.b16 %v3292
        %v3596 = vunpack.c.h.b16 %v3292
        %v3597 = vunpack.c.l.b16 %v3293
        %v3598 = vunpack.c.h.b16 %v3293
        %v3599 = vunpack.c.l.b16 %v3294
        %v3600 = vunpack.c.h.b16 %v3294
        %v3601 = vunpack.c.l.b16 %v3295
        %v3602 = vunpack.c.h.b16 %v3295
        %v3603 = vunpack.c.l.b16 %v3296
        %v3604 = vunpack.c.h.b16 %v3296
        %v3605 = vunpack.c.l.b16 %v3297
        %v3606 = vunpack.c.h.b16 %v3297
        %v3607 = vunpack.c.l.b16 %v3298
        %v3608 = vunpack.c.h.b16 %v3298
        %v3609 = vunpack.c.l.b16 %v3299
        %v3610 = vunpack.c.h.b16 %v3299
        %v3611 = vunpack.c.l.b16 %v3300
        %v3612 = vunpack.c.h.b16 %v3300
        %v3613 = vunpack.c.l.b16 %v3301
        %v3614 = vunpack.c.h.b16 %v3301
        %v3615 = vunpack.c.l.b16 %v3302
        %v3616 = vunpack.c.h.b16 %v3302
        %v3617 = vunpack.c.l.b16 %v3303
        %v3618 = vunpack.c.h.b16 %v3303
        %v3619 = vunpack.c.l.b16 %v3304
        %v3620 = vunpack.c.h.b16 %v3304
        %v3621 = vunpack.c.l.b16 %v3305
        %v3622 = vunpack.c.h.b16 %v3305
        %v3623 = vunpack.c.l.b16 %v3306
        %v3624 = vunpack.c.h.b16 %v3306
        %v3625 = vunpack.c.l.b16 %v3307
        %v3626 = vunpack.c.h.b16 %v3307
        %v3627 = vunpack.c.l.b16 %v3308
        %v3628 = vunpack.c.h.b16 %v3308
        %v3629 = vunpack.c.l.b16 %v3309
        %v3630 = vunpack.c.h.b16 %v3309
        %v3631 = vunpack.c.l.b16 %v3310
        %v3632 = vunpack.c.h.b16 %v3310
        %v3633 = vunpack.c.l.b16 %v3311
        %v3634 = vunpack.c.h.b16 %v3311
        %v3635 = vunpack.c.l.b16 %v3312
        %v3636 = vunpack.c.h.b16 %v3312
        %v3637 = vunpack.c.l.b16 %v3313
        %v3638 = vunpack.c.h.b16 %v3313
        %v3639 = vunpack.c.l.b16 %v3314
        %v3640 = vunpack.c.h.b16 %v3314
        %v3641 = vunpack.c.l.b16 %v3315
        %v3642 = vunpack.c.h.b16 %v3315
        %v3643 = vunpack.c.l.b16 %v3316
        %v3644 = vunpack.c.h.b16 %v3316
        %v3645 = vunpack.c.l.b16 %v3317
        %v3646 = vunpack.c.h.b16 %v3317
        %v3647 = vunpack.c.l.b16 %v3318
        %v3648 = vunpack.c.h.b16 %v3318
        %v3649 = vunpack.c.l.b16 %v3319
        %v3650 = vunpack.c.h.b16 %v3319
        %v3651 = vunpack.c.l.b16 %v3320
        %v3652 = vunpack.c.h.b16 %v3320
        %v3653 = vunpack.c.l.b16 %v3321
        %v3654 = vunpack.c.h.b16 %v3321
        %v3655 = vunpack.c.l.b16 %v3322
        %v3656 = vunpack.c.h.b16 %v3322
        %v3657 = vunpack.c.l.b16 %v3323
        %v3658 = vunpack.c.h.b16 %v3323
        %v3659 = vunpack.c.l.b16 %v3324
        %v3660 = vunpack.c.h.b16 %v3324
        %v3661 = vunpack.c.l.b16 %v3325
        %v3662 = vunpack.c.h.b16 %v3325
        %v3663 = vunpack.c.l.b16 %v3326
        %v3664 = vunpack.c.h.b16 %v3326
        %v3665 = vunpack.c.l.b16 %v3327
        %v3666 = vunpack.c.h.b16 %v3327
        %v3667 = vunpack.c.l.b16 %v3328
        %v3668 = vunpack.c.h.b16 %v3328
        %v3669 = vunpack.c.l.b16 %v3329
        %v3670 = vunpack.c.h.b16 %v3329
        %v3671 = vunpack.c.l.b16 %v3330
        %v3672 = vunpack.c.h.b16 %v3330
        %v3673 = vunpack.c.l.b16 %v3331
        %v3674 = vunpack.c.h.b16 %v3331
        %v3675 = vunpack.c.l.b16 %v3332
        %v3676 = vunpack.c.h.b16 %v3332
        %v3677 = vunpack.c.l.b16 %v3333
        %v3678 = vunpack.c.h.b16 %v3333
        %v3679 = vunpack.c.l.b16 %v3334
        %v3680 = vunpack.c.h.b16 %v3334
        %v3681 = vunpack.c.l.b16 %v3335
        %v3682 = vunpack.c.h.b16 %v3335
        %v3683 = vunpack.c.l.b16 %v3336
        %v3684 = vunpack.c.h.b16 %v3336
        %v3685 = vunpack.c.l.b16 %v3337
        %v3686 = vunpack.c.h.b16 %v3337
        %v3687 = vunpack.c.l.b16 %v3338
        %v3688 = vunpack.c.h.b16 %v3338
        %v3689 = vunpack.c.l.b16 %v3339
        %v3690 = vunpack.c.h.b16 %v3339
        %v3691 = vunpack.c.l.b16 %v3340
        %v3692 = vunpack.c.h.b16 %v3340
        %v3693 = vunpack.c.l.b16 %v3341
        %v3694 = vunpack.c.h.b16 %v3341
        %v3695 = vunpack.c.l.b16 %v3342
        %v3696 = vunpack.c.h.b16 %v3342
        %v3697 = vunpack.c.l.b16 %v3343
        %v3698 = vunpack.c.h.b16 %v3343
        %v3699 = vunpack.c.l.b16 %v3344
        %v3700 = vunpack.c.h.b16 %v3344
        %v3701 = vunpack.c.l.b16 %v3345
        %v3702 = vunpack.c.h.b16 %v3345
        %v3703 = vunpack.c.l.b16 %v3346
        %v3704 = vunpack.c.h.b16 %v3346
        %v3705 = vunpack.c.l.b16 %v3347
        %v3706 = vunpack.c.h.b16 %v3347
        %v3707 = vunpack.c.l.b16 %v3348
        %v3708 = vunpack.c.h.b16 %v3348
        %v3709 = vunpack.c.l.b16 %v3349
        %v3710 = vunpack.c.h.b16 %v3349
        %v3711 = vunpack.c.l.b16 %v3350
        %v3712 = vunpack.c.h.b16 %v3350
        %v3713 = vunpack.c.l.b16 %v3351
        %v3714 = vunpack.c.h.b16 %v3351
        %v3715 = vunpack.c.l.b16 %v3352
        %v3716 = vunpack.c.h.b16 %v3352
        %v3717 = vunpack.c.l.b16 %v3353
        %v3718 = vunpack.c.h.b16 %v3353
        %v3719 = vunpack.c.l.b16 %v3354
        %v3720 = vunpack.c.h.b16 %v3354
        %v3721 = vunpack.c.l.b16 %v3355
        %v3722 = vunpack.c.h.b16 %v3355
        %v3723 = vunpack.c.l.b16 %v3356
        %v3724 = vunpack.c.h.b16 %v3356
        %v3725 = vunpack.c.l.b16 %v3357
        %v3726 = vunpack.c.h.b16 %v3357
        %v3727 = vunpack.c.l.b16 %v3358
        %v3728 = vunpack.c.h.b16 %v3358
        %v3729 = vunpack.c.l.b16 %v3359
        %v3730 = vunpack.c.h.b16 %v3359
        %v3731 = vunpack.c.l.b16 %v3360
        %v3732 = vunpack.c.h.b16 %v3360
        %v3733 = vunpack.c.l.b16 %v3361
        %v3734 = vunpack.c.h.b16 %v3361
        %v3735 = vunpack.c.l.b16 %v3362
        %v3736 = vunpack.c.h.b16 %v3362
        %v3737 = vunpack.c.l.b16 %v3363
        %v3738 = vunpack.c.h.b16 %v3363
        %v3739 = vunpack.c.l.b16 %v3364
        %v3740 = vunpack.c.h.b16 %v3364
        %v3741 = vunpack.c.l.b16 %v3365
        %v3742 = vunpack.c.h.b16 %v3365
        %v3743 = vunpack.c.l.b16 %v3366
        %v3744 = vunpack.c.h.b16 %v3366
        %v3745 = vunpack.c.l.b16 %v3367
        %v3746 = vunpack.c.h.b16 %v3367
        %v3747 = vunpack.c.l.b16 %v3368
        %v3748 = vunpack.c.h.b16 %v3368
        %v3749 = vunpack.c.l.b16 %v3369
        %v3750 = vunpack.c.h.b16 %v3369
        %v3751 = vunpack.c.l.b16 %v3370
        %v3752 = vunpack.c.h.b16 %v3370
        %v3753 = vunpack.c.l.b16 %v3371
        %v3754 = vunpack.c.h.b16 %v3371
        %v3755 = vunpack.c.l.b16 %v3372
        %v3756 = vunpack.c.h.b16 %v3372
        %v3757 = vpack.c.b16 %v3503, %v3501
        %v3758 = vpack.c.b16 %v3504, %v3502
        %v3759 = vpack.c.b16 %v3507, %v3505
        %v3760 = vpack.c.b16 %v3508, %v3506
        %v3761 = vpack.c.b16 %v3511, %v3509
        %v3762 = vpack.c.b16 %v3512, %v3510
        %v3763 = vpack.c.b16 %v3515, %v3513
        %v3764 = vpack.c.b16 %v3516, %v3514
        %v3765 = vpack.c.b16 %v3519, %v3517
        %v3766 = vpack.c.b16 %v3520, %v3518
        %v3767 = vpack.c.b16 %v3523, %v3521
        %v3768 = vpack.c.b16 %v3524, %v3522
        %v3769 = vpack.c.b16 %v3527, %v3525
        %v3770 = vpack.c.b16 %v3528, %v3526
        %v3771 = vpack.c.b16 %v3531, %v3529
        %v3772 = vpack.c.b16 %v3532, %v3530
        %v3773 = vpack.c.b16 %v3535, %v3533
        %v3774 = vpack.c.b16 %v3536, %v3534
        %v3775 = vpack.c.b16 %v3539, %v3537
        %v3776 = vpack.c.b16 %v3540, %v3538
        %v3777 = vpack.c.b16 %v3543, %v3541
        %v3778 = vpack.c.b16 %v3544, %v3542
        %v3779 = vpack.c.b16 %v3547, %v3545
        %v3780 = vpack.c.b16 %v3548, %v3546
        %v3781 = vpack.c.b16 %v3551, %v3549
        %v3782 = vpack.c.b16 %v3552, %v3550
        %v3783 = vpack.c.b16 %v3555, %v3553
        %v3784 = vpack.c.b16 %v3556, %v3554
        %v3785 = vpack.c.b16 %v3559, %v3557
        %v3786 = vpack.c.b16 %v3560, %v3558
        %v3787 = vpack.c.b16 %v3563, %v3561
        %v3788 = vpack.c.b16 %v3564, %v3562
        %v3789 = vpack.c.b16 %v3567, %v3565
        %v3790 = vpack.c.b16 %v3568, %v3566
        %v3791 = vpack.c.b16 %v3571, %v3569
        %v3792 = vpack.c.b16 %v3572, %v3570
        %v3793 = vpack.c.b16 %v3575, %v3573
        %v3794 = vpack.c.b16 %v3576, %v3574
        %v3795 = vpack.c.b16 %v3579, %v3577
        %v3796 = vpack.c.b16 %v3580, %v3578
        %v3797 = vpack.c.b16 %v3583, %v3581
        %v3798 = vpack.c.b16 %v3584, %v3582
        %v3799 = vpack.c.b16 %v3587, %v3585
        %v3800 = vpack.c.b16 %v3588, %v3586
        %v3801 = vpack.c.b16 %v3591, %v3589
        %v3802 = vpack.c.b16 %v3592, %v3590
        %v3803 = vpack.c.b16 %v3595, %v3593
        %v3804 = vpack.c.b16 %v3596, %v3594
        %v3805 = vpack.c.b16 %v3599, %v3597
        %v3806 = vpack.c.b16 %v3600, %v3598
        %v3807 = vpack.c.b16 %v3603, %v3601
        %v3808 = vpack.c.b16 %v3604, %v3602
        %v3809 = vpack.c.b16 %v3607, %v3605
        %v3810 = vpack.c.b16 %v3608, %v3606
        %v3811 = vpack.c.b16 %v3611, %v3609
        %v3812 = vpack.c.b16 %v3612, %v3610
        %v3813 = vpack.c.b16 %v3615, %v3613
        %v3814 = vpack.c.b16 %v3616, %v3614
        %v3815 = vpack.c.b16 %v3619, %v3617
        %v3816 = vpack.c.b16 %v3620, %v3618
        %v3817 = vpack.c.b16 %v3623, %v3621
        %v3818 = vpack.c.b16 %v3624, %v3622
        %v3819 = vpack.c.b16 %v3627, %v3625
        %v3820 = vpack.c.b16 %v3628, %v3626
        %v3821 = vpack.c.b16 %v3631, %v3629
        %v3822 = vpack.c.b16 %v3632, %v3630
        %v3823 = vpack.c.b16 %v3635, %v3633
        %v3824 = vpack.c.b16 %v3636, %v3634
        %v3825 = vpack.c.b16 %v3639, %v3637
        %v3826 = vpack.c.b16 %v3640, %v3638
        %v3827 = vpack.c.b16 %v3643, %v3641
        %v3828 = vpack.c.b16 %v3644, %v3642
        %v3829 = vpack.c.b16 %v3647, %v3645
        %v3830 = vpack.c.b16 %v3648, %v3646
        %v3831 = vpack.c.b16 %v3651, %v3649
        %v3832 = vpack.c.b16 %v3652, %v3650
        %v3833 = vpack.c.b16 %v3655, %v3653
        %v3834 = vpack.c.b16 %v3656, %v3654
        %v3835 = vpack.c.b16 %v3659, %v3657
        %v3836 = vpack.c.b16 %v3660, %v3658
        %v3837 = vpack.c.b16 %v3663, %v3661
        %v3838 = vpack.c.b16 %v3664, %v3662
        %v3839 = vpack.c.b16 %v3667, %v3665
        %v3840 = vpack.c.b16 %v3668, %v3666
        %v3841 = vpack.c.b16 %v3671, %v3669
        %v3842 = vpack.c.b16 %v3672, %v3670
        %v3843 = vpack.c.b16 %v3675, %v3673
        %v3844 = vpack.c.b16 %v3676, %v3674
        %v3845 = vpack.c.b16 %v3679, %v3677
        %v3846 = vpack.c.b16 %v3680, %v3678
        %v3847 = vpack.c.b16 %v3683, %v3681
        %v3848 = vpack.c.b16 %v3684, %v3682
        %v3849 = vpack.c.b16 %v3687, %v3685
        %v3850 = vpack.c.b16 %v3688, %v3686
        %v3851 = vpack.c.b16 %v3691, %v3689
        %v3852 = vpack.c.b16 %v3692, %v3690
        %v3853 = vpack.c.b16 %v3695, %v3693
        %v3854 = vpack.c.b16 %v3696, %v3694
        %v3855 = vpack.c.b16 %v3699, %v3697
        %v3856 = vpack.c.b16 %v3700, %v3698
        %v3857 = vpack.c.b16 %v3703, %v3701
        %v3858 = vpack.c.b16 %v3704, %v3702
        %v3859 = vpack.c.b16 %v3707, %v3705
        %v3860 = vpack.c.b16 %v3708, %v3706
        %v3861 = vpack.c.b16 %v3711, %v3709
        %v3862 = vpack.c.b16 %v3712, %v3710
        %v3863 = vpack.c.b16 %v3715, %v3713
        %v3864 = vpack.c.b16 %v3716, %v3714
        %v3865 = vpack.c.b16 %v3719, %v3717
        %v3866 = vpack.c.b16 %v3720, %v3718
        %v3867 = vpack.c.b16 %v3723, %v3721
        %v3868 = vpack.c.b16 %v3724, %v3722
        %v3869 = vpack.c.b16 %v3727, %v3725
        %v3870 = vpack.c.b16 %v3728, %v3726
        %v3871 = vpack.c.b16 %v3731, %v3729
        %v3872 = vpack.c.b16 %v3732, %v3730
        %v3873 = vpack.c.b16 %v3735, %v3733
        %v3874 = vpack.c.b16 %v3736, %v3734
        %v3875 = vpack.c.b16 %v3739, %v3737
        %v3876 = vpack.c.b16 %v3740, %v3738
        %v3877 = vpack.c.b16 %v3743, %v3741
        %v3878 = vpack.c.b16 %v3744, %v3742
        %v3879 = vpack.c.b16 %v3747, %v3745
        %v3880 = vpack.c.b16 %v3748, %v3746
        %v3881 = vpack.c.b16 %v3751, %v3749
        %v3882 = vpack.c.b16 %v3752, %v3750
        %v3883 = vpack.c.b16 %v3755, %v3753
        %v3884 = vpack.c.b16 %v3756, %v3754
        %4013 = vmatprep.subr.bf16.mxu0 %v3772
        %4014 = vmatpush1.bf16.msra.mxu0 %v3771
        %4015 = vmatprep.subr.bf16.mxu0 %v3770
        %4016 = vmatpush1.bf16.msra.mxu0 %v3769
        %4017 = vmatprep.subr.bf16.mxu0 %v3768
        %4018 = vmatpush1.bf16.msra.mxu0 %v3767
        %4019 = vmatprep.subr.bf16.mxu0 %v3766
        %4020 = vmatpush1.bf16.msra.mxu0 %v3765
        %4021 = vmatprep.subr.bf16.mxu0 %v3764
        %4022 = vmatpush1.bf16.msra.mxu0 %v3763
        %4023 = vmatprep.subr.bf16.mxu0 %v3762
        %4024 = vmatpush1.bf16.msra.mxu0 %v3761
        %4025 = vmatprep.subr.bf16.mxu0 %v3760
        %4026 = vmatpush1.bf16.msra.mxu0 %v3759
        %4027 = vmatprep.subr.bf16.mxu0 %v3758
        %4028 = vmatpush1.bf16.msra.mxu0 %v3757
        %4029 = vmatprep.subr.bf16.mxu0 %v3788
        %4030 = vmatpush2.bf16.msra.mxu0 %v3787
        %4031 = vmatprep.subr.bf16.mxu0 %v3786
        %4032 = vmatpush2.bf16.msra.mxu0 %v3785
        %4033 = vmatprep.subr.bf16.mxu0 %v3784
        %4034 = vmatpush2.bf16.msra.mxu0 %v3783
        %4035 = vmatprep.subr.bf16.mxu0 %v3782
        %4036 = vmatpush2.bf16.msra.mxu0 %v3781
        %4037 = vmatprep.subr.bf16.mxu0 %v3780
        %4038 = vmatpush2.bf16.msra.mxu0 %v3779
        %4039 = vmatprep.subr.bf16.mxu0 %v3778
        %4040 = vmatpush2.bf16.msra.mxu0 %v3777
        %4041 = vmatprep.subr.bf16.mxu0 %v3776
        %4042 = vmatpush2.bf16.msra.mxu0 %v3775
        %4043 = vmatprep.subr.bf16.mxu0 %v3774
        %4044 = vmatpush2.bf16.msra.mxu0 %v3773
        %4045 = vmatprep.mubr.bf16.mxu0 %v3238
        %4046 = vmatmul.mubr.bf16.gmra.mxu0 %v3237
        %v4047 = vpop.f32.mrf.mxu0
        %v4048 = vadd.f32 0.0, %v4047
        %v4049 = vpop.f32.mrf.mxu0
        %v4050 = vadd.f32 0.0, %v4049
        %v4051 = vpop.f32.mrf.mxu0
        %v4052 = vadd.f32 0.0, %v4051
        %v4053 = vpop.f32.mrf.mxu0
        %v4054 = vadd.f32 0.0, %v4053
        %4055 = vdwg.mxu0
        %4056 = vmatprep.subr.bf16.mxu0 %v3804
        %4057 = vmatpush1.bf16.msra.mxu0 %v3803
        %4058 = vmatprep.subr.bf16.mxu0 %v3802
        %4059 = vmatpush1.bf16.msra.mxu0 %v3801
        %4060 = vmatprep.subr.bf16.mxu0 %v3800
        %4061 = vmatpush1.bf16.msra.mxu0 %v3799
        %4062 = vmatprep.subr.bf16.mxu0 %v3798
        %4063 = vmatpush1.bf16.msra.mxu0 %v3797
        %4064 = vmatprep.subr.bf16.mxu0 %v3796
        %4065 = vmatpush1.bf16.msra.mxu0 %v3795
        %4066 = vmatprep.subr.bf16.mxu0 %v3794
        %4067 = vmatpush1.bf16.msra.mxu0 %v3793
        %4068 = vmatprep.subr.bf16.mxu0 %v3792
        %4069 = vmatpush1.bf16.msra.mxu0 %v3791
        %4070 = vmatprep.subr.bf16.mxu0 %v3790
        %4071 = vmatpush1.bf16.msra.mxu0 %v3789
        %4072 = vmatprep.subr.bf16.mxu0 %v3820
        %4073 = vmatpush2.bf16.msra.mxu0 %v3819
        %4074 = vmatprep.subr.bf16.mxu0 %v3818
        %4075 = vmatpush2.bf16.msra.mxu0 %v3817
        %4076 = vmatprep.subr.bf16.mxu0 %v3816
        %4077 = vmatpush2.bf16.msra.mxu0 %v3815
        %4078 = vmatprep.subr.bf16.mxu0 %v3814
        %4079 = vmatpush2.bf16.msra.mxu0 %v3813
        %4080 = vmatprep.subr.bf16.mxu0 %v3812
        %4081 = vmatpush2.bf16.msra.mxu0 %v3811
        %4082 = vmatprep.subr.bf16.mxu0 %v3810
        %4083 = vmatpush2.bf16.msra.mxu0 %v3809
        %4084 = vmatprep.subr.bf16.mxu0 %v3808
        %4085 = vmatpush2.bf16.msra.mxu0 %v3807
        %4086 = vmatprep.subr.bf16.mxu0 %v3806
        %4087 = vmatpush2.bf16.msra.mxu0 %v3805
        %4088 = vmatprep.mubr.bf16.mxu0 %v3240
        %4089 = vmatmul.mubr.bf16.gmra.mxu0 %v3239
        %v4090 = vpop.f32.mrf.mxu0
        %v4091 = vadd.f32 %v4048, %v4090
        %v4092 = vpop.f32.mrf.mxu0
        %v4093 = vadd.f32 %v4050, %v4092
        %v4094 = vpop.f32.mrf.mxu0
        %v4095 = vadd.f32 %v4052, %v4094
        %v4096 = vpop.f32.mrf.mxu0
        %v4097 = vadd.f32 %v4054, %v4096
        %4098 = vdwg.mxu0
        %4099 = vmatprep.subr.bf16.mxu0 %v3836
        %4100 = vmatpush1.bf16.msra.mxu0 %v3835
        %4101 = vmatprep.subr.bf16.mxu0 %v3834
        %4102 = vmatpush1.bf16.msra.mxu0 %v3833
        %4103 = vmatprep.subr.bf16.mxu0 %v3832
        %4104 = vmatpush1.bf16.msra.mxu0 %v3831
        %4105 = vmatprep.subr.bf16.mxu0 %v3830
        %4106 = vmatpush1.bf16.msra.mxu0 %v3829
        %4107 = vmatprep.subr.bf16.mxu0 %v3828
        %4108 = vmatpush1.bf16.msra.mxu0 %v3827
        %4109 = vmatprep.subr.bf16.mxu0 %v3826
        %4110 = vmatpush1.bf16.msra.mxu0 %v3825
        %4111 = vmatprep.subr.bf16.mxu0 %v3824
        %4112 = vmatpush1.bf16.msra.mxu0 %v3823
        %4113 = vmatprep.subr.bf16.mxu0 %v3822
        %4114 = vmatpush1.bf16.msra.mxu0 %v3821
        %4115 = vmatprep.subr.bf16.mxu0 %v3852
        %4116 = vmatpush2.bf16.msra.mxu0 %v3851
        %4117 = vmatprep.subr.bf16.mxu0 %v3850
        %4118 = vmatpush2.bf16.msra.mxu0 %v3849
        %4119 = vmatprep.subr.bf16.mxu0 %v3848
        %4120 = vmatpush2.bf16.msra.mxu0 %v3847
        %4121 = vmatprep.subr.bf16.mxu0 %v3846
        %4122 = vmatpush2.bf16.msra.mxu0 %v3845
        %4123 = vmatprep.subr.bf16.mxu0 %v3844
        %4124 = vmatpush2.bf16.msra.mxu0 %v3843
        %4125 = vmatprep.subr.bf16.mxu0 %v3842
        %4126 = vmatpush2.bf16.msra.mxu0 %v3841
        %4127 = vmatprep.subr.bf16.mxu0 %v3840
        %4128 = vmatpush2.bf16.msra.mxu0 %v3839
        %4129 = vmatprep.subr.bf16.mxu0 %v3838
        %4130 = vmatpush2.bf16.msra.mxu0 %v3837
        %4131 = vmatprep.mubr.bf16.mxu0 %v3242
        %4132 = vmatmul.mubr.bf16.gmra.mxu0 %v3241
        %v4133 = vpop.f32.mrf.mxu0
        %v4134 = vadd.f32 %v4091, %v4133
        %v4135 = vpop.f32.mrf.mxu0
        %v4136 = vadd.f32 %v4093, %v4135
        %v4137 = vpop.f32.mrf.mxu0
        %v4138 = vadd.f32 %v4095, %v4137
        %v4139 = vpop.f32.mrf.mxu0
        %v4140 = vadd.f32 %v4097, %v4139
        %4141 = vdwg.mxu0
        %4142 = vmatprep.subr.bf16.mxu0 %v3868
        %4143 = vmatpush1.bf16.msra.mxu0 %v3867
        %4144 = vmatprep.subr.bf16.mxu0 %v3866
        %4145 = vmatpush1.bf16.msra.mxu0 %v3865
        %4146 = vmatprep.subr.bf16.mxu0 %v3864
        %4147 = vmatpush1.bf16.msra.mxu0 %v3863
        %4148 = vmatprep.subr.bf16.mxu0 %v3862
        %4149 = vmatpush1.bf16.msra.mxu0 %v3861
        %4150 = vmatprep.subr.bf16.mxu0 %v3860
        %4151 = vmatpush1.bf16.msra.mxu0 %v3859
        %4152 = vmatprep.subr.bf16.mxu0 %v3858
        %4153 = vmatpush1.bf16.msra.mxu0 %v3857
        %4154 = vmatprep.subr.bf16.mxu0 %v3856
        %4155 = vmatpush1.bf16.msra.mxu0 %v3855
        %4156 = vmatprep.subr.bf16.mxu0 %v3854
        %4157 = vmatpush1.bf16.msra.mxu0 %v3853
        %4158 = vmatprep.subr.bf16.mxu0 %v3884
        %4159 = vmatpush2.bf16.msra.mxu0 %v3883
        %4160 = vmatprep.subr.bf16.mxu0 %v3882
        %4161 = vmatpush2.bf16.msra.mxu0 %v3881
        %4162 = vmatprep.subr.bf16.mxu0 %v3880
        %4163 = vmatpush2.bf16.msra.mxu0 %v3879
        %4164 = vmatprep.subr.bf16.mxu0 %v3878
        %4165 = vmatpush2.bf16.msra.mxu0 %v3877
        %4166 = vmatprep.subr.bf16.mxu0 %v3876
        %4167 = vmatpush2.bf16.msra.mxu0 %v3875
        %4168 = vmatprep.subr.bf16.mxu0 %v3874
        %4169 = vmatpush2.bf16.msra.mxu0 %v3873
        %4170 = vmatprep.subr.bf16.mxu0 %v3872
        %4171 = vmatpush2.bf16.msra.mxu0 %v3871
        %4172 = vmatprep.subr.bf16.mxu0 %v3870
        %4173 = vmatpush2.bf16.msra.mxu0 %v3869
        %4174 = vmatprep.mubr.bf16.mxu0 %v3244
        %4175 = vmatmul.mubr.bf16.gmra.mxu0 %v3243
        %v4176 = vpop.f32.mrf.mxu0
        %v4177 = vadd.f32 %v4134, %v4176
        %v4178 = vpop.f32.mrf.mxu0
        %v4179 = vadd.f32 %v4136, %v4178
        %v4180 = vpop.f32.mrf.mxu0
        %v4181 = vadd.f32 %v4138, %v4180
        %v4182 = vpop.f32.mrf.mxu0
        %v4183 = vadd.f32 %v4140, %v4182
        %4184 = vdwg.mxu0
        %v4185 = vadd.f32 %v2041, %v4177
        %v4186 = vadd.f32 %v2042, %v4179
        %v4187 = vadd.f32 %v2043, %v4181
        %v4188 = vadd.f32 %v2044, %v4183
        %v4189 = vld [vmem:[#allocation11] sm:$0x3]
        %v4191 = vlaneseq
        %v4192 = vshrl.u32 %v4191, 7
        %v4193 = vsub.s32 0, %v4192
        %v4194 = vrot.slane %v4189, %v4193
        %v4195 = vlaneseq
        %v4196 = vshrl.u32 %v4195, 7
        %v4197 = vsub.s32 1, %v4196
        %v4198 = vrot.slane %v4189, %v4197
        %v4201 = vadd.f32 %v4185, %v4194
        %v4202 = vadd.f32 %v4186, %v4198
        %v4203 = vadd.f32 %v4187, %v4194
        %v4204 = vadd.f32 %v4188, %v4198
        %4205 = vst [vmem:[%s502] sm:$0xff] %v4201
        %4206 = vst [vmem:[%s502 + $0x8] sm:$0xff] %v4202
        %4207 = vst [vmem:[%s502 + $0x10] sm:$0xff] %v4203
        %4208 = vst [vmem:[%s502 + $0x18] sm:$0xff] %v4204
        %s4209 = sand.u32 %s297, 1
        %s4210 = scalar_lea.sflag [#allocation4], %s4209
        %s4211 = sand.u32 %s297, 1
        %s4212 = smul.addr %s4211, 32
        %s4213 = scalar_lea.vmem [#allocation13], %s4212
        // Predicated region
        $region93: #{transformer_block.1} parent=67 // pred_check
          %p4214 = pneg %p307
        $region94: #{transformer_block.1} parent=67 // pred_check_branch
          %4216 = sbr.rel (%p4214) target = $region96
        $region95: #{transformer_block.1} parent=67 // pred_region
          %s4218 = ssub.s32 512, 512
          %4219 = vsyncadd %s4210, %s4218
          %s4220 = smul.addr %s32, 4
          %s4221 = smul.addr %s4220, 128
          %s4222 = scalar_lea.hbm %s12, %s4221
          %s4223 = sshll.u32 %s4213, 4
          %s4224 = int_to_ptr.vmem [resolvable:$true] %s4223
          %4229 = dma.vmem_to_hbm [thread:$0]  %s4224, 512, %s4222, %s4210, 256, 256, 16
        $region96: #{transformer_block.1} parent=67 // pred_fallthru
          _
      $region68: #{transformer_block.1} parent=5 // pred_fallthru
        _
      %p4230 = scmp.le.s32.totalorder 2, %s27
      // Predicated region
      $region97: #{transformer_block.1} parent=5 // pred_check
        %p4231 = pneg %p4230
      $region98: #{transformer_block.1} parent=5 // pred_check_branch
        %4233 = sbr.rel (%p4231) target = $region100
      $region99: #{transformer_block.1} parent=5 // pred_region
        %s4234 = ssub.s32 %s27, 2
        // Predicated region
        $region101: #{transformer_block.1} parent=99 // pred_check
          %p4235 = pneg %p313
        $region102: #{transformer_block.1} parent=99 // pred_check_branch
          %4237 = sbr.rel (%p4235) target = $region104
        $region103: #{transformer_block.1} parent=99 // pred_region
          %s4238 = sand.u32 %s298, 1
          %s4239 = scalar_lea.sflag [#allocation4], %s4238
          %s4240 = sand.u32 %s298, 1
          %s4241 = smul.addr %s4240, 32
          %s4242 = scalar_lea.vmem [#allocation13], %s4241
          %4243 = dma.done %s4239, 512
        $region104: #{transformer_block.1} parent=99 // pred_fallthru
          _
      $region100: #{transformer_block.1} parent=5 // pred_fallthru
        _
    $region6: #{transformer_block.1} parent=1 // loop_footer
      %s31 = sadd.s32 1, %s27
    $region7: #{transformer_block.1} parent=1 // loop_footer_branch
      %26 = sbr.rel target = $region3
    $region8: #{transformer_block.1} parent=1 // loop_exit
      _
    %4244 = vsyncpa [#allocation3], 1
    %s4245 = scalar_lea.sflag [#allocation3], 1
    %4246 = vsyncpa %s4245, 1
    %4247 = vsyncpa [#allocation6], 1
    %4248 = vsyncpa [#allocation9], 1
    %4249 = vsyncpa [#allocation12], 1
    %4250 = vsyncpa [#allocation4], 1
    %s4251 = scalar_lea.sflag [#allocation4], 1
    %4252 = vsyncpa %s4251, 1

</llo_original>
